<compile_context>
chip_gen: v6e
topology: v6e:2x2x1
jax: 0.10.0
libtpu: 0.0.40
codegen_flags: <defaults>
</compile_context>

<pallas_src>
import functools
import math

import jax
import jax.numpy as jnp
from jax import lax
from jax.experimental import pallas as pl
from jax.experimental.pallas import tpu as pltpu


_MIB = 1024 * 1024


def _vmem_limit(est_bytes, *, headroom=4 * _MIB, cap=56 * _MIB):
    """Per-kernel scoped-VMEM limit: estimate + headroom, capped so it stays
    under v7x's 64 MiB physical VMEM (v5e/v6e have 128 MiB)."""
    return int(min(max(int(est_bytes) + headroom, 8 * _MIB), cap))


def _params(dims, vmem_limit):
    return pltpu.CompilerParams(
        dimension_semantics=dims,
        vmem_limit_bytes=vmem_limit,
    )


def _q_tile(lq, target=256):
    """Query-row tile: whole Lq when small, else a divisor <= target that keeps
    the (8, 128) layout rule happy."""
    if lq <= target:
        return lq
    for t in (target, 128, 64, 32, 16, 8):
        if lq % t == 0:
            return t
    return lq


def _row_tile(m, target=512):
    """Row tile for flattened-token kernels: bigger tiles amortize the
    ~0.35 us per-grid-step overhead and approach the HBM roofline."""
    if m <= target:
        return m
    for t in (target, 256, 128, 64, 32, 16, 8):
        if m % t == 0:
            return t
    return target  # ragged last block is masked by Pallas


# --------------------- fused attention block (one kernel) -------------------

def _attn_layer_kernel(xq_ref, xkv_ref, wq_ref, bq_ref, wkv_ref, bkv_ref,
                       wo_ref, bo_ref, g_ref, beta_ref, o_ref, oacc_ref,
                       *, n_heads, scale, causal, eps):
    # LayerNorm(xq + MHA(xq, xkv) @ Wo + bo), fully fused in VMEM.
    tq, D = xq_ref.shape[1], xq_ref.shape[2]
    dh = D // n_heads

    xq = xq_ref[0].astype(jnp.float32)                      # [tq, D] residual
    # Q projection (query tile) and fused K|V projection (full kv sequence);
    # the MXU path follows the weight dtype (bf16 params -> bf16 MXU).
    q = jnp.dot(xq_ref[0].astype(wq_ref.dtype), wq_ref[...],
                preferred_element_type=jnp.float32)
    q = q + bq_ref[...].astype(jnp.float32)                 # [tq, D]
    kv = jnp.dot(xkv_ref[0].astype(wkv_ref.dtype), wkv_ref[...],
                 preferred_element_type=jnp.float32)
    kv = kv + bkv_ref[...].astype(jnp.float32)              # [Lk, 2D]
    k = kv[:, :D]
    v = kv[:, D:]
    Lk = k.shape[0]

    if causal:
        q_off = pl.program_id(1) * tq
        rows = lax.broadcasted_iota(jnp.int32, (tq, Lk), 0) + q_off
        cols = lax.broadcasted_iota(jnp.int32, (tq, Lk), 1)
        keep = cols <= rows

    # Per-head attention; each head's PV result streams into the VMEM f32
    # scratch (lane slice of [tq, D]) so no pile of per-head tiles stays live.
    for h in range(n_heads):
        lo, hi = h * dh, (h + 1) * dh
        qh, kh, vh = q[:, lo:hi], k[:, lo:hi], v[:, lo:hi]
        # contract on the last dims directly -- no explicit K transpose
        s = lax.dot_general(qh, kh, (((1,), (1,)), ((), ())),
                            preferred_element_type=jnp.float32) * scale
        if causal:
            s = jnp.where(keep, s, -1e30)
        s = s - jnp.max(s, axis=-1, keepdims=True)
        p = jnp.exp(s)
        p = p * pl.reciprocal(jnp.sum(p, axis=-1, keepdims=True), approx=True)
        oacc_ref[:, lo:hi] = jnp.dot(p, vh, preferred_element_type=jnp.float32)

    # epilogue: Wo projection + residual + LayerNorm (single lane-dense store)
    attn = oacc_ref[...]                                     # [tq, D] f32
    r = xq + jnp.dot(attn.astype(wo_ref.dtype), wo_ref[...],
                     preferred_element_type=jnp.float32)
    r = r + bo_ref[...].astype(jnp.float32)
    mu = jnp.mean(r, axis=-1, keepdims=True)
    rc = r - mu
    var = jnp.mean(rc * rc, axis=-1, keepdims=True)
    inv = lax.rsqrt(var + eps)
    o_ref[0] = (rc * inv * g_ref[...].astype(jnp.float32)
                + beta_ref[...].astype(jnp.float32)).astype(o_ref.dtype)


def attention_layer(x, kv_src, wq, bq, wkv, bkv, wo, bo, gamma, beta,
                    *, n_heads, causal, eps=1e-5, q_block=256):
    """One fused pallas_call for LayerNorm(x + MHA(x, kv_src) @ Wo + bo).

    x: [B, Lq, D] (query side + residual), kv_src: [B, Lk, D].
    Heads stay folded in the lane dim; only x, kv_src, the pinned weights and
    the normalized output touch HBM."""
    B, Lq, D = x.shape
    Lk = kv_src.shape[1]
    dh = D // n_heads
    tq = _q_tile(Lq, q_block)

    ab = x.dtype.itemsize
    wb = wq.dtype.itemsize
    est = (2 * (2 * tq * D + Lk * D) * ab           # double-buffered act blocks
           + 2 * (4 * D * D + 7 * D) * wb           # double-buffered weights/bias/LN
           + tq * D * 4                             # f32 PV scratch
           + (tq * Lk + 3 * (tq + Lk) * D) * 4)     # f32 working set
    kern = functools.partial(_attn_layer_kernel, n_heads=n_heads,
                             scale=1.0 / math.sqrt(dh), causal=causal, eps=eps)
    return pl.pallas_call(
        kern,
        out_shape=jax.ShapeDtypeStruct((B, Lq, D), x.dtype),
        grid=(B, pl.cdiv(Lq, tq)),
        in_specs=[
            pl.BlockSpec((1, tq, D), lambda b, qi: (b, qi, 0)),
            pl.BlockSpec((1, Lk, D), lambda b, qi: (b, 0, 0)),
            pl.BlockSpec((D, D), lambda b, qi: (0, 0)),
            pl.BlockSpec((1, D), lambda b, qi: (0, 0)),
            pl.BlockSpec((D, 2 * D), lambda b, qi: (0, 0)),
            pl.BlockSpec((1, 2 * D), lambda b, qi: (0, 0)),
            pl.BlockSpec((D, D), lambda b, qi: (0, 0)),
            pl.BlockSpec((1, D), lambda b, qi: (0, 0)),
            pl.BlockSpec((1, D), lambda b, qi: (0, 0)),
            pl.BlockSpec((1, D), lambda b, qi: (0, 0)),
        ],
        out_specs=pl.BlockSpec((1, tq, D), lambda b, qi: (b, qi, 0)),
        scratch_shapes=[pltpu.VMEM((tq, D), jnp.float32)],
        compiler_params=_params(("parallel", "parallel"), _vmem_limit(est)),
    )(x, kv_src, wq, bq.reshape(1, D), wkv, bkv.reshape(1, 2 * D),
      wo, bo.reshape(1, D), gamma.reshape(1, D), beta.reshape(1, D))


# ------------------- fused FFN + residual + LayerNorm kernel ----------------

def _ffn_res_ln_kernel(x_ref, w1_ref, b1_ref, w2_ref, b2_ref, g_ref, beta_ref,
                       o_ref, *, eps):
    # LayerNorm(x + W2 @ relu(W1 @ x + b1) + b2)   (Conv1d k=1 == matmul)
    x = x_ref[...].astype(jnp.float32)
    h = jnp.dot(x.astype(w1_ref.dtype), w1_ref[...],
                preferred_element_type=jnp.float32)
    h = jnp.maximum(h + b1_ref[...].astype(jnp.float32), 0.0)
    y = jnp.dot(h.astype(w2_ref.dtype), w2_ref[...],
                preferred_element_type=jnp.float32)
    r = x + y + b2_ref[...].astype(jnp.float32)
    mu = jnp.mean(r, axis=-1, keepdims=True)
    rc = r - mu
    var = jnp.mean(rc * rc, axis=-1, keepdims=True)
    inv = lax.rsqrt(var + eps)
    o_ref[...] = (rc * inv * g_ref[...].astype(jnp.float32)
                  + beta_ref[...].astype(jnp.float32)).astype(o_ref.dtype)


def ffn_residual_layernorm(x2d, w1, b1, w2, b2, gamma, beta, *, eps=1e-5,
                           block_m=512):
    M, D = x2d.shape
    F = w1.shape[1]
    ab = x2d.dtype.itemsize
    wb = w1.dtype.itemsize
    weight_bytes = 2 * (2 * D * F + F + 3 * D) * wb        # double-buffered
    tm = _row_tile(M, block_m)
    # shrink the row tile if weights + activation blocks would blow the budget
    while tm > 8 and (weight_bytes + 4 * tm * D * ab
                      + (tm * F + 2 * tm * D) * 4) > 40 * _MIB:
        tm = max(tm // 2, 8)
    est = weight_bytes + 4 * tm * D * ab + (tm * F + 2 * tm * D) * 4
    kern = functools.partial(_ffn_res_ln_kernel, eps=eps)
    return pl.pallas_call(
        kern,
        out_shape=jax.ShapeDtypeStruct((M, D), x2d.dtype),
        grid=(pl.cdiv(M, tm),),
        in_specs=[
            pl.BlockSpec((tm, D), lambda i: (i, 0)),
            pl.BlockSpec((D, F), lambda i: (0, 0)),
            pl.BlockSpec((1, F), lambda i: (0, 0)),
            pl.BlockSpec((F, D), lambda i: (0, 0)),
            pl.BlockSpec((1, D), lambda i: (0, 0)),
            pl.BlockSpec((1, D), lambda i: (0, 0)),
            pl.BlockSpec((1, D), lambda i: (0, 0)),
        ],
        out_specs=pl.BlockSpec((tm, D), lambda i: (i, 0)),
        compiler_params=_params(("parallel",), _vmem_limit(est)),
    )(x2d, w1, b1.reshape(1, F), w2, b2.reshape(1, D),
      gamma.reshape(1, D), beta.reshape(1, D))


# ------------------------------ final LayerNorm -----------------------------

def _ln_kernel(x_ref, g_ref, b_ref, o_ref, *, eps):
    x = x_ref[...].astype(jnp.float32)
    mu = jnp.mean(x, axis=-1, keepdims=True)
    xc = x - mu
    var = jnp.mean(xc * xc, axis=-1, keepdims=True)
    inv = lax.rsqrt(var + eps)
    o_ref[...] = (xc * inv * g_ref[...].astype(jnp.float32)
                  + b_ref[...].astype(jnp.float32)).astype(o_ref.dtype)


def layer_norm(x2d, gamma, beta, *, eps=1e-5, block_m=512):
    M, D = x2d.shape
    tm = _row_tile(M, block_m)
    est = 4 * tm * D * x2d.dtype.itemsize + 2 * tm * D * 4 + 4 * D * 4
    kern = functools.partial(_ln_kernel, eps=eps)
    return pl.pallas_call(
        kern,
        out_shape=jax.ShapeDtypeStruct((M, D), x2d.dtype),
        grid=(pl.cdiv(M, tm),),
        in_specs=[
            pl.BlockSpec((tm, D), lambda i: (i, 0)),
            pl.BlockSpec((1, D), lambda i: (0, 0)),
            pl.BlockSpec((1, D), lambda i: (0, 0)),
        ],
        out_specs=pl.BlockSpec((tm, D), lambda i: (i, 0)),
        compiler_params=_params(("parallel",), _vmem_limit(est)),
    )(x2d, gamma.reshape(1, D), beta.reshape(1, D))


# -------------------------- Decoder forward (glue) --------------------------

def decoder_layer(x, cross, p, n_heads):
    B, L, D = x.shape
    # self-attention block (causal): one fused pallas_call
    x = attention_layer(x, x, p["sa_wq"], p["sa_bq"], p["sa_wkv"], p["sa_bkv"],
                        p["sa_wo"], p["sa_bo"], p["ln1_g"], p["ln1_b"],
                        n_heads=n_heads, causal=True)
    # cross-attention block (unmasked): one fused pallas_call
    x = attention_layer(x, cross, p["ca_wq"], p["ca_bq"], p["ca_wkv"],
                        p["ca_bkv"], p["ca_wo"], p["ca_bo"],
                        p["ln2_g"], p["ln2_b"], n_heads=n_heads, causal=False)
    # pointwise-conv FFN + residual + norm3: one fused pallas_call
    x2 = ffn_residual_layernorm(x.reshape(B * L, D), p["w1"], p["b1"],
                                p["w2"], p["b2"], p["ln3_g"], p["ln3_b"])
    return x2.reshape(B, L, D)


def decoder_forward(x, cross, layer_params, final_norm, n_heads):
    for p in layer_params:
        x = decoder_layer(x, cross, p, n_heads)
    if final_norm is not None:
        B, L, D = x.shape
        x = layer_norm(x.reshape(B * L, D), final_norm["g"],
                       final_norm["b"]).reshape(B, L, D)
    return x


# ------------------------------ parameter init ------------------------------

def init_layer_params(key, d_model, d_ff, dtype=jnp.float32):
    ks = jax.random.split(key, 8)

    def w(k, shp):
        return (0.02 * jax.random.normal(k, shp)).astype(dtype)

    p = {}
    # self-attention: Q weight + fused K|V weight
    p["sa_wq"] = w(ks[0], (d_model, d_model))
    p["sa_bq"] = jnp.zeros((d_model,), dtype)
    p["sa_wkv"] = w(ks[1], (d_model, 2 * d_model))
    p["sa_bkv"] = jnp.zeros((2 * d_model,), dtype)
    p["sa_wo"] = w(ks[2], (d_model, d_model))
    p["sa_bo"] = jnp.zeros((d_model,), dtype)
    # cross-attention: Q on x, fused K|V on cross
    p["ca_wq"] = w(ks[3], (d_model, d_model))
    p["ca_bq"] = jnp.zeros((d_model,), dtype)
    p["ca_wkv"] = w(ks[4], (d_model, 2 * d_model))
    p["ca_bkv"] = jnp.zeros((2 * d_model,), dtype)
    p["ca_wo"] = w(ks[5], (d_model, d_model))
    p["ca_bo"] = jnp.zeros((d_model,), dtype)
    # pointwise-conv FFN
    p["w1"] = w(ks[6], (d_model, d_ff)); p["b1"] = jnp.zeros((d_ff,), dtype)
    p["w2"] = w(ks[7], (d_ff, d_model)); p["b2"] = jnp.zeros((d_model,), dtype)
    for n in ("ln1", "ln2", "ln3"):
        p[f"{n}_g"] = jnp.ones((d_model,), dtype)
        p[f"{n}_b"] = jnp.zeros((d_model,), dtype)
    return p


# --------------------------- pure-JAX reference ------------------------------

def _ref_layer_norm(x, g, b, eps=1e-5):
    mu = jnp.mean(x, axis=-1, keepdims=True)
    var = jnp.mean((x - mu) ** 2, axis=-1, keepdims=True)
    return (x - mu) * lax.rsqrt(var + eps) * g + b


def _ref_mha(xq, xkv, wq, bq, wkv, bkv, wo, bo, n_heads, causal):
    B, Lq, D = xq.shape
    Lk = xkv.shape[1]
    dh = D // n_heads
    q = (xq @ wq + bq).reshape(B, Lq, n_heads, dh)
    kv = xkv @ wkv + bkv
    k = kv[..., :D].reshape(B, Lk, n_heads, dh)
    v = kv[..., D:].reshape(B, Lk, n_heads, dh)
    s = jnp.einsum("bqhd,bkhd->bhqk", q, k) / math.sqrt(dh)
    if causal:
        s = jnp.where(jnp.tril(jnp.ones((Lq, Lk), bool)), s, -1e30)
    pr = jax.nn.softmax(s, axis=-1)
    o = jnp.einsum("bhqk,bkhd->bqhd", pr, v).reshape(B, Lq, D)
    return o @ wo + bo


def _ref_decoder_forward(x, cross, layer_params, final_norm, n_heads):
    for p in layer_params:
        x = _ref_layer_norm(
            x + _ref_mha(x, x, p["sa_wq"], p["sa_bq"], p["sa_wkv"], p["sa_bkv"],
                         p["sa_wo"], p["sa_bo"], n_heads, True),
            p["ln1_g"], p["ln1_b"])
        x = _ref_layer_norm(
            x + _ref_mha(x, cross, p["ca_wq"], p["ca_bq"], p["ca_wkv"],
                         p["ca_bkv"], p["ca_wo"], p["ca_bo"], n_heads, False),
            p["ln2_g"], p["ln2_b"])
        y = jnp.maximum(x @ p["w1"] + p["b1"], 0.0) @ p["w2"] + p["b2"]
        x = _ref_layer_norm(x + y, p["ln3_g"], p["ln3_b"])
    if final_norm is not None:
        x = _ref_layer_norm(x, final_norm["g"], final_norm["b"])
    return x


# ----------------------------------- main -----------------------------------

if __name__ == "__main__":
    B, L_dec, L_enc = 2, 8, 16
    d_model, n_heads, d_ff, n_layers = 32, 4, 64, 2

    key = jax.random.PRNGKey(0)
    k_x, k_c, *k_layers = jax.random.split(key, 2 + n_layers)

    x = jax.random.normal(k_x, (B, L_dec, d_model), dtype=jnp.float32)
    cross = jax.random.normal(k_c, (B, L_enc, d_model), dtype=jnp.float32)

    layer_params = [init_layer_params(k, d_model, d_ff) for k in k_layers]
    final_norm = {"g": jnp.ones((d_model,), jnp.float32),
                  "b": jnp.zeros((d_model,), jnp.float32)}

    fwd = jax.jit(functools.partial(decoder_forward, n_heads=n_heads))
    out = jax.block_until_ready(fwd(x, cross, layer_params, final_norm))

    assert out.shape == (B, L_dec, d_model)
    assert bool(jnp.all(jnp.isfinite(out)))

    ref = _ref_decoder_forward(x, cross, layer_params, final_norm, n_heads)
    max_err = float(jnp.max(jnp.abs(out - ref)))
    assert max_err < 3e-2, f"mismatch vs reference: max abs err {max_err}"

    print("KERNEL_OK")
</pallas_src>

<mosaic_0001>
module attributes {stable_mosaic.version = 11 : i64} {
  func.func @_attn_layer_kernel(%arg0: i32, %arg1: i32, %arg2: memref<1x8x32xf32, #tpu.memory_space<vmem>>, %arg3: memref<1x16x32xf32, #tpu.memory_space<vmem>>, %arg4: memref<32x32xf32, #tpu.memory_space<vmem>>, %arg5: memref<1x32xf32, #tpu.memory_space<vmem>>, %arg6: memref<32x64xf32, #tpu.memory_space<vmem>>, %arg7: memref<1x64xf32, #tpu.memory_space<vmem>>, %arg8: memref<32x32xf32, #tpu.memory_space<vmem>>, %arg9: memref<1x32xf32, #tpu.memory_space<vmem>>, %arg10: memref<1x32xf32, #tpu.memory_space<vmem>>, %arg11: memref<1x32xf32, #tpu.memory_space<vmem>>, %arg12: memref<1x8x32xf32, #tpu.memory_space<vmem>>, %arg13: memref<8x32xf32, #tpu.memory_space<vmem>>) attributes {dimension_semantics = [#tpu.dimension_semantics<parallel>, #tpu.dimension_semantics<parallel>], iteration_bounds = array<i64: 2, 1>, scalar_prefetch = 0 : i64, scratch_operands = 1 : i64, tpu.core_type = #tpu.core_type<tc>, window_params = [{transform_indices = @transform_0, window_bounds = array<i64: 1, 8, 32>}, {transform_indices = @transform_1, window_bounds = array<i64: 1, 16, 32>}, {pipeline_mode = #tpu.pipeline_mode<synchronous>, transform_indices = @transform_2, window_bounds = array<i64: 32, 32>}, {pipeline_mode = #tpu.pipeline_mode<synchronous>, transform_indices = @transform_3, window_bounds = array<i64: 1, 32>}, {pipeline_mode = #tpu.pipeline_mode<synchronous>, transform_indices = @transform_4, window_bounds = array<i64: 32, 64>}, {pipeline_mode = #tpu.pipeline_mode<synchronous>, transform_indices = @transform_5, window_bounds = array<i64: 1, 64>}, {pipeline_mode = #tpu.pipeline_mode<synchronous>, transform_indices = @transform_6, window_bounds = array<i64: 32, 32>}, {pipeline_mode = #tpu.pipeline_mode<synchronous>, transform_indices = @transform_7, window_bounds = array<i64: 1, 32>}, {pipeline_mode = #tpu.pipeline_mode<synchronous>, transform_indices = @transform_8, window_bounds = array<i64: 1, 32>}, {pipeline_mode = #tpu.pipeline_mode<synchronous>, transform_indices = @transform_9, window_bounds = array<i64: 1, 32>}, {transform_indices = @transform_10, window_bounds = array<i64: 1, 8, 32>}]} {
    %c0 = arith.constant 0 : index
    %c0_0 = arith.constant 0 : index
    %c0_1 = arith.constant 0 : index
    %0 = vector.load %arg2[%c0, %c0_0, %c0_1] : memref<1x8x32xf32, #tpu.memory_space<vmem>>, vector<1x8x32xf32>
    %1 = vector.shape_cast %0 : vector<1x8x32xf32> to vector<8x32xf32>
    %c0_2 = arith.constant 0 : index
    %c0_3 = arith.constant 0 : index
    %c0_4 = arith.constant 0 : index
    %2 = vector.load %arg2[%c0_2, %c0_3, %c0_4] : memref<1x8x32xf32, #tpu.memory_space<vmem>>, vector<1x8x32xf32>
    %3 = vector.shape_cast %2 : vector<1x8x32xf32> to vector<8x32xf32>
    %c0_5 = arith.constant 0 : index
    %c0_6 = arith.constant 0 : index
    %4 = vector.load %arg4[%c0_5, %c0_6] : memref<32x32xf32, #tpu.memory_space<vmem>>, vector<32x32xf32>
    %cst = arith.constant dense<0.000000e+00> : vector<8x32xf32>
    %5 = tpu.matmul %3, %4, %cst {dimension_numbers = #tpu.dot_dimension_numbers<[1], [0], [0], [1], [0, 0, 1, 1], [], []>} : vector<8x32xf32>, vector<32x32xf32>, vector<8x32xf32> -> vector<8x32xf32>
    %c0_7 = arith.constant 0 : index
    %c0_8 = arith.constant 0 : index
    %6 = vector.load %arg5[%c0_7, %c0_8] : memref<1x32xf32, #tpu.memory_space<vmem>>, vector<1x32xf32>
    %7 = vector.broadcast %6 : vector<1x32xf32> to vector<8x32xf32>
    %8 = arith.addf %5, %7 : vector<8x32xf32>
    %c0_9 = arith.constant 0 : index
    %c0_10 = arith.constant 0 : index
    %c0_11 = arith.constant 0 : index
    %9 = vector.load %arg3[%c0_9, %c0_10, %c0_11] : memref<1x16x32xf32, #tpu.memory_space<vmem>>, vector<1x16x32xf32>
    %10 = vector.shape_cast %9 : vector<1x16x32xf32> to vector<16x32xf32>
    %c0_12 = arith.constant 0 : index
    %c0_13 = arith.constant 0 : index
    %11 = vector.load %arg6[%c0_12, %c0_13] : memref<32x64xf32, #tpu.memory_space<vmem>>, vector<32x64xf32>
    %cst_14 = arith.constant dense<0.000000e+00> : vector<16x64xf32>
    %12 = tpu.matmul %10, %11, %cst_14 {dimension_numbers = #tpu.dot_dimension_numbers<[1], [0], [0], [1], [0, 0, 1, 1], [], []>} : vector<16x32xf32>, vector<32x64xf32>, vector<16x64xf32> -> vector<16x64xf32>
    %c0_15 = arith.constant 0 : index
    %c0_16 = arith.constant 0 : index
    %13 = vector.load %arg7[%c0_15, %c0_16] : memref<1x64xf32, #tpu.memory_space<vmem>>, vector<1x64xf32>
    %14 = vector.broadcast %13 : vector<1x64xf32> to vector<16x64xf32>
    %15 = arith.addf %12, %14 : vector<16x64xf32>
    %16 = vector.extract_strided_slice %15 {offsets = [0, 0], sizes = [16, 32], strides = [1, 1]} : vector<16x64xf32> to vector<16x32xf32>
    %17 = vector.extract_strided_slice %15 {offsets = [0, 32], sizes = [16, 32], strides = [1, 1]} : vector<16x64xf32> to vector<16x32xf32>
    %18 = vector.extract_strided_slice %8 {offsets = [0, 0], sizes = [8, 8], strides = [1, 1]} : vector<8x32xf32> to vector<8x8xf32>
    %19 = vector.extract_strided_slice %16 {offsets = [0, 0], sizes = [16, 8], strides = [1, 1]} : vector<16x32xf32> to vector<16x8xf32>
    %20 = vector.extract_strided_slice %17 {offsets = [0, 0], sizes = [16, 8], strides = [1, 1]} : vector<16x32xf32> to vector<16x8xf32>
    %cst_17 = arith.constant dense<0.000000e+00> : vector<8x16xf32>
    %21 = tpu.matmul %18, %19, %cst_17 {dimension_numbers = #tpu.dot_dimension_numbers<[1], [1], [0], [0], [0, 0, 1, 0], [], []>} : vector<8x8xf32>, vector<16x8xf32>, vector<8x16xf32> -> vector<8x16xf32>
    %cst_18 = arith.constant 0.353553385 : f32
    %22 = vector.broadcast %cst_18 : f32 to vector<8x16xf32>
    %23 = arith.mulf %21, %22 : vector<8x16xf32>
    %cst_19 = arith.constant dense<0xFF800000> : vector<8xf32>
    %24 = vector.multi_reduction <maximumf>, %23, %cst_19 [1] : vector<8x16xf32> to vector<8xf32>
    %25 = vector.shape_cast %24 : vector<8xf32> to vector<8x1xf32>
    %26 = vector.broadcast %25 : vector<8x1xf32> to vector<8x16xf32>
    %27 = arith.subf %23, %26 : vector<8x16xf32>
    %28 = math.exp %27 : vector<8x16xf32>
    %cst_20 = arith.constant dense<0.000000e+00> : vector<8xf32>
    %29 = vector.multi_reduction <add>, %28, %cst_20 [1] : vector<8x16xf32> to vector<8xf32>
    %30 = vector.shape_cast %29 : vector<8xf32> to vector<8x1xf32>
    %31 = tpu.reciprocal %30 {approx = true} : vector<8x1xf32> -> vector<8x1xf32>
    %32 = vector.broadcast %31 : vector<8x1xf32> to vector<8x16xf32>
    %33 = arith.mulf %28, %32 : vector<8x16xf32>
    %cst_21 = arith.constant dense<0.000000e+00> : vector<8x8xf32>
    %34 = tpu.matmul %33, %20, %cst_21 {dimension_numbers = #tpu.dot_dimension_numbers<[1], [0], [0], [1], [0, 0, 1, 1], [], []>} : vector<8x16xf32>, vector<16x8xf32>, vector<8x8xf32> -> vector<8x8xf32>
    %c0_22 = arith.constant 0 : index
    %c0_23 = arith.constant 0 : index
    %35 = vector.load %arg13[%c0_22, %c0_23] : memref<8x32xf32, #tpu.memory_space<vmem>>, vector<8x8xf32>
    tpu.vector_store %arg13[%c0_22, %c0_23], %34 {strides = array<i32>} : memref<8x32xf32, #tpu.memory_space<vmem>>, vector<8x8xf32>,
    %36 = vector.extract_strided_slice %8 {offsets = [0, 8], sizes = [8, 8], strides = [1, 1]} : vector<8x32xf32> to vector<8x8xf32>
    %37 = vector.extract_strided_slice %16 {offsets = [0, 8], sizes = [16, 8], strides = [1, 1]} : vector<16x32xf32> to vector<16x8xf32>
    %38 = vector.extract_strided_slice %17 {offsets = [0, 8], sizes = [16, 8], strides = [1, 1]} : vector<16x32xf32> to vector<16x8xf32>
    %cst_24 = arith.constant dense<0.000000e+00> : vector<8x16xf32>
    %39 = tpu.matmul %36, %37, %cst_24 {dimension_numbers = #tpu.dot_dimension_numbers<[1], [1], [0], [0], [0, 0, 1, 0], [], []>} : vector<8x8xf32>, vector<16x8xf32>, vector<8x16xf32> -> vector<8x16xf32>
    %cst_25 = arith.constant 0.353553385 : f32
    %40 = vector.broadcast %cst_25 : f32 to vector<8x16xf32>
    %41 = arith.mulf %39, %40 : vector<8x16xf32>
    %cst_26 = arith.constant dense<0xFF800000> : vector<8xf32>
    %42 = vector.multi_reduction <maximumf>, %41, %cst_26 [1] : vector<8x16xf32> to vector<8xf32>
    %43 = vector.shape_cast %42 : vector<8xf32> to vector<8x1xf32>
    %44 = vector.broadcast %43 : vector<8x1xf32> to vector<8x16xf32>
    %45 = arith.subf %41, %44 : vector<8x16xf32>
    %46 = math.exp %45 : vector<8x16xf32>
    %cst_27 = arith.constant dense<0.000000e+00> : vector<8xf32>
    %47 = vector.multi_reduction <add>, %46, %cst_27 [1] : vector<8x16xf32> to vector<8xf32>
    %48 = vector.shape_cast %47 : vector<8xf32> to vector<8x1xf32>
    %49 = tpu.reciprocal %48 {approx = true} : vector<8x1xf32> -> vector<8x1xf32>
    %50 = vector.broadcast %49 : vector<8x1xf32> to vector<8x16xf32>
    %51 = arith.mulf %46, %50 : vector<8x16xf32>
    %cst_28 = arith.constant dense<0.000000e+00> : vector<8x8xf32>
    %52 = tpu.matmul %51, %38, %cst_28 {dimension_numbers = #tpu.dot_dimension_numbers<[1], [0], [0], [1], [0, 0, 1, 1], [], []>} : vector<8x16xf32>, vector<16x8xf32>, vector<8x8xf32> -> vector<8x8xf32>
    %c0_29 = arith.constant 0 : index
    %c8 = arith.constant 8 : index
    %53 = vector.load %arg13[%c0_29, %c8] : memref<8x32xf32, #tpu.memory_space<vmem>>, vector<8x8xf32>
    tpu.vector_store %arg13[%c0_29, %c8], %52 {strides = array<i32>} : memref<8x32xf32, #tpu.memory_space<vmem>>, vector<8x8xf32>,
    %54 = vector.extract_strided_slice %8 {offsets = [0, 16], sizes = [8, 8], strides = [1, 1]} : vector<8x32xf32> to vector<8x8xf32>
    %55 = vector.extract_strided_slice %16 {offsets = [0, 16], sizes = [16, 8], strides = [1, 1]} : vector<16x32xf32> to vector<16x8xf32>
    %56 = vector.extract_strided_slice %17 {offsets = [0, 16], sizes = [16, 8], strides = [1, 1]} : vector<16x32xf32> to vector<16x8xf32>
    %cst_30 = arith.constant dense<0.000000e+00> : vector<8x16xf32>
    %57 = tpu.matmul %54, %55, %cst_30 {dimension_numbers = #tpu.dot_dimension_numbers<[1], [1], [0], [0], [0, 0, 1, 0], [], []>} : vector<8x8xf32>, vector<16x8xf32>, vector<8x16xf32> -> vector<8x16xf32>
    %cst_31 = arith.constant 0.353553385 : f32
    %58 = vector.broadcast %cst_31 : f32 to vector<8x16xf32>
    %59 = arith.mulf %57, %58 : vector<8x16xf32>
    %cst_32 = arith.constant dense<0xFF800000> : vector<8xf32>
    %60 = vector.multi_reduction <maximumf>, %59, %cst_32 [1] : vector<8x16xf32> to vector<8xf32>
    %61 = vector.shape_cast %60 : vector<8xf32> to vector<8x1xf32>
    %62 = vector.broadcast %61 : vector<8x1xf32> to vector<8x16xf32>
    %63 = arith.subf %59, %62 : vector<8x16xf32>
    %64 = math.exp %63 : vector<8x16xf32>
    %cst_33 = arith.constant dense<0.000000e+00> : vector<8xf32>
    %65 = vector.multi_reduction <add>, %64, %cst_33 [1] : vector<8x16xf32> to vector<8xf32>
    %66 = vector.shape_cast %65 : vector<8xf32> to vector<8x1xf32>
    %67 = tpu.reciprocal %66 {approx = true} : vector<8x1xf32> -> vector<8x1xf32>
    %68 = vector.broadcast %67 : vector<8x1xf32> to vector<8x16xf32>
    %69 = arith.mulf %64, %68 : vector<8x16xf32>
    %cst_34 = arith.constant dense<0.000000e+00> : vector<8x8xf32>
    %70 = tpu.matmul %69, %56, %cst_34 {dimension_numbers = #tpu.dot_dimension_numbers<[1], [0], [0], [1], [0, 0, 1, 1], [], []>} : vector<8x16xf32>, vector<16x8xf32>, vector<8x8xf32> -> vector<8x8xf32>
    %c0_35 = arith.constant 0 : index
    %c16 = arith.constant 16 : index
    %71 = vector.load %arg13[%c0_35, %c16] : memref<8x32xf32, #tpu.memory_space<vmem>>, vector<8x8xf32>
    tpu.vector_store %arg13[%c0_35, %c16], %70 {strides = array<i32>} : memref<8x32xf32, #tpu.memory_space<vmem>>, vector<8x8xf32>,
    %72 = vector.extract_strided_slice %8 {offsets = [0, 24], sizes = [8, 8], strides = [1, 1]} : vector<8x32xf32> to vector<8x8xf32>
    %73 = vector.extract_strided_slice %16 {offsets = [0, 24], sizes = [16, 8], strides = [1, 1]} : vector<16x32xf32> to vector<16x8xf32>
    %74 = vector.extract_strided_slice %17 {offsets = [0, 24], sizes = [16, 8], strides = [1, 1]} : vector<16x32xf32> to vector<16x8xf32>
    %cst_36 = arith.constant dense<0.000000e+00> : vector<8x16xf32>
    %75 = tpu.matmul %72, %73, %cst_36 {dimension_numbers = #tpu.dot_dimension_numbers<[1], [1], [0], [0], [0, 0, 1, 0], [], []>} : vector<8x8xf32>, vector<16x8xf32>, vector<8x16xf32> -> vector<8x16xf32>
    %cst_37 = arith.constant 0.353553385 : f32
    %76 = vector.broadcast %cst_37 : f32 to vector<8x16xf32>
    %77 = arith.mulf %75, %76 : vector<8x16xf32>
    %cst_38 = arith.constant dense<0xFF800000> : vector<8xf32>
    %78 = vector.multi_reduction <maximumf>, %77, %cst_38 [1] : vector<8x16xf32> to vector<8xf32>
    %79 = vector.shape_cast %78 : vector<8xf32> to vector<8x1xf32>
    %80 = vector.broadcast %79 : vector<8x1xf32> to vector<8x16xf32>
    %81 = arith.subf %77, %80 : vector<8x16xf32>
    %82 = math.exp %81 : vector<8x16xf32>
    %cst_39 = arith.constant dense<0.000000e+00> : vector<8xf32>
    %83 = vector.multi_reduction <add>, %82, %cst_39 [1] : vector<8x16xf32> to vector<8xf32>
    %84 = vector.shape_cast %83 : vector<8xf32> to vector<8x1xf32>
    %85 = tpu.reciprocal %84 {approx = true} : vector<8x1xf32> -> vector<8x1xf32>
    %86 = vector.broadcast %85 : vector<8x1xf32> to vector<8x16xf32>
    %87 = arith.mulf %82, %86 : vector<8x16xf32>
    %cst_40 = arith.constant dense<0.000000e+00> : vector<8x8xf32>
    %88 = tpu.matmul %87, %74, %cst_40 {dimension_numbers = #tpu.dot_dimension_numbers<[1], [0], [0], [1], [0, 0, 1, 1], [], []>} : vector<8x16xf32>, vector<16x8xf32>, vector<8x8xf32> -> vector<8x8xf32>
    %c0_41 = arith.constant 0 : index
    %c24 = arith.constant 24 : index
    %89 = vector.load %arg13[%c0_41, %c24] : memref<8x32xf32, #tpu.memory_space<vmem>>, vector<8x8xf32>
    tpu.vector_store %arg13[%c0_41, %c24], %88 {strides = array<i32>} : memref<8x32xf32, #tpu.memory_space<vmem>>, vector<8x8xf32>,
    %c0_42 = arith.constant 0 : index
    %c0_43 = arith.constant 0 : index
    %90 = vector.load %arg13[%c0_42, %c0_43] : memref<8x32xf32, #tpu.memory_space<vmem>>, vector<8x32xf32>
    %c0_44 = arith.constant 0 : index
    %c0_45 = arith.constant 0 : index
    %91 = vector.load %arg8[%c0_44, %c0_45] : memref<32x32xf32, #tpu.memory_space<vmem>>, vector<32x32xf32>
    %cst_46 = arith.constant dense<0.000000e+00> : vector<8x32xf32>
    %92 = tpu.matmul %90, %91, %cst_46 {dimension_numbers = #tpu.dot_dimension_numbers<[1], [0], [0], [1], [0, 0, 1, 1], [], []>} : vector<8x32xf32>, vector<32x32xf32>, vector<8x32xf32> -> vector<8x32xf32>
    %93 = arith.addf %1, %92 : vector<8x32xf32>
    %c0_47 = arith.constant 0 : index
    %c0_48 = arith.constant 0 : index
    %94 = vector.load %arg9[%c0_47, %c0_48] : memref<1x32xf32, #tpu.memory_space<vmem>>, vector<1x32xf32>
    %95 = vector.broadcast %94 : vector<1x32xf32> to vector<8x32xf32>
    %96 = arith.addf %93, %95 : vector<8x32xf32>
    %cst_49 = arith.constant dense<0.000000e+00> : vector<8xf32>
    %97 = vector.multi_reduction <add>, %96, %cst_49 [1] : vector<8x32xf32> to vector<8xf32>
    %98 = vector.shape_cast %97 : vector<8xf32> to vector<8x1xf32>
    %cst_50 = arith.constant 3.200000e+01 : f32
    %99 = vector.broadcast %cst_50 : f32 to vector<8x1xf32>
    %100 = arith.divf %98, %99 : vector<8x1xf32>
    %101 = vector.broadcast %100 : vector<8x1xf32> to vector<8x32xf32>
    %102 = arith.subf %96, %101 : vector<8x32xf32>
    %103 = arith.mulf %102, %102 : vector<8x32xf32>
    %cst_51 = arith.constant dense<0.000000e+00> : vector<8xf32>
    %104 = vector.multi_reduction <add>, %103, %cst_51 [1] : vector<8x32xf32> to vector<8xf32>
    %105 = vector.shape_cast %104 : vector<8xf32> to vector<8x1xf32>
    %cst_52 = arith.constant 3.200000e+01 : f32
    %106 = vector.broadcast %cst_52 : f32 to vector<8x1xf32>
    %107 = arith.divf %105, %106 : vector<8x1xf32>
    %cst_53 = arith.constant 9.99999974E-6 : f32
    %108 = vector.broadcast %cst_53 : f32 to vector<8x1xf32>
    %109 = arith.addf %107, %108 : vector<8x1xf32>
    %110 = math.rsqrt %109 : vector<8x1xf32>
    %111 = vector.broadcast %110 : vector<8x1xf32> to vector<8x32xf32>
    %112 = arith.mulf %102, %111 : vector<8x32xf32>
    %c0_54 = arith.constant 0 : index
    %c0_55 = arith.constant 0 : index
    %113 = vector.load %arg10[%c0_54, %c0_55] : memref<1x32xf32, #tpu.memory_space<vmem>>, vector<1x32xf32>
    %114 = vector.broadcast %113 : vector<1x32xf32> to vector<8x32xf32>
    %115 = arith.mulf %112, %114 : vector<8x32xf32>
    %c0_56 = arith.constant 0 : index
    %c0_57 = arith.constant 0 : index
    %116 = vector.load %arg11[%c0_56, %c0_57] : memref<1x32xf32, #tpu.memory_space<vmem>>, vector<1x32xf32>
    %117 = vector.broadcast %116 : vector<1x32xf32> to vector<8x32xf32>
    %118 = arith.addf %115, %117 : vector<8x32xf32>
    %c0_58 = arith.constant 0 : index
    %c0_59 = arith.constant 0 : index
    %c0_60 = arith.constant 0 : index
    %119 = vector.load %arg12[%c0_58, %c0_59, %c0_60] : memref<1x8x32xf32, #tpu.memory_space<vmem>>, vector<1x8x32xf32>
    %120 = vector.shape_cast %119 : vector<1x8x32xf32> to vector<8x32xf32>
    %121 = vector.shape_cast %118 : vector<8x32xf32> to vector<1x8x32xf32>
    tpu.vector_store %arg12[%c0_58, %c0_59, %c0_60], %121 {strides = array<i32>} : memref<1x8x32xf32, #tpu.memory_space<vmem>>, vector<1x8x32xf32>,
    return
  }
  func.func @transform_0(%arg0: i32, %arg1: i32) -> (i32, i32, i32) {
    %c0_i32 = arith.constant 0 : i32
    %c0_i32_0 = arith.constant 0 : i32
    return %arg0, %arg1, %c0_i32 : i32, i32, i32
  }
  func.func @transform_1(%arg0: i32, %arg1: i32) -> (i32, i32, i32) {
    %c0_i32 = arith.constant 0 : i32
    %c0_i32_0 = arith.constant 0 : i32
    %c0_i32_1 = arith.constant 0 : i32
    return %arg0, %c0_i32, %c0_i32_0 : i32, i32, i32
  }
  func.func @transform_2(%arg0: i32, %arg1: i32) -> (i32, i32) {
    %c0_i32 = arith.constant 0 : i32
    %c0_i32_0 = arith.constant 0 : i32
    %c0_i32_1 = arith.constant 0 : i32
    return %c0_i32, %c0_i32_0 : i32, i32
  }
  func.func @transform_3(%arg0: i32, %arg1: i32) -> (i32, i32) {
    %c0_i32 = arith.constant 0 : i32
    %c0_i32_0 = arith.constant 0 : i32
    %c0_i32_1 = arith.constant 0 : i32
    return %c0_i32, %c0_i32_0 : i32, i32
  }
  func.func @transform_4(%arg0: i32, %arg1: i32) -> (i32, i32) {
    %c0_i32 = arith.constant 0 : i32
    %c0_i32_0 = arith.constant 0 : i32
    %c0_i32_1 = arith.constant 0 : i32
    return %c0_i32, %c0_i32_0 : i32, i32
  }
  func.func @transform_5(%arg0: i32, %arg1: i32) -> (i32, i32) {
    %c0_i32 = arith.constant 0 : i32
    %c0_i32_0 = arith.constant 0 : i32
    %c0_i32_1 = arith.constant 0 : i32
    return %c0_i32, %c0_i32_0 : i32, i32
  }
  func.func @transform_6(%arg0: i32, %arg1: i32) -> (i32, i32) {
    %c0_i32 = arith.constant 0 : i32
    %c0_i32_0 = arith.constant 0 : i32
    %c0_i32_1 = arith.constant 0 : i32
    return %c0_i32, %c0_i32_0 : i32, i32
  }
  func.func @transform_7(%arg0: i32, %arg1: i32) -> (i32, i32) {
    %c0_i32 = arith.constant 0 : i32
    %c0_i32_0 = arith.constant 0 : i32
    %c0_i32_1 = arith.constant 0 : i32
    return %c0_i32, %c0_i32_0 : i32, i32
  }
  func.func @transform_8(%arg0: i32, %arg1: i32) -> (i32, i32) {
    %c0_i32 = arith.constant 0 : i32
    %c0_i32_0 = arith.constant 0 : i32
    %c0_i32_1 = arith.constant 0 : i32
    return %c0_i32, %c0_i32_0 : i32, i32
  }
  func.func @transform_9(%arg0: i32, %arg1: i32) -> (i32, i32) {
    %c0_i32 = arith.constant 0 : i32
    %c0_i32_0 = arith.constant 0 : i32
    %c0_i32_1 = arith.constant 0 : i32
    return %c0_i32, %c0_i32_0 : i32, i32
  }
  func.func @transform_10(%arg0: i32, %arg1: i32) -> (i32, i32, i32) {
    %c0_i32 = arith.constant 0 : i32
    %c0_i32_0 = arith.constant 0 : i32
    return %arg0, %arg1, %c0_i32 : i32, i32, i32
  }
}

module attributes {stable_mosaic.version = 11 : i64} {
  func.func @_ffn_res_ln_kernel(%arg0: i32, %arg1: memref<16x32xf32, #tpu.memory_space<vmem>>, %arg2: memref<32x64xf32, #tpu.memory_space<vmem>>, %arg3: memref<1x64xf32, #tpu.memory_space<vmem>>, %arg4: memref<64x32xf32, #tpu.memory_space<vmem>>, %arg5: memref<1x32xf32, #tpu.memory_space<vmem>>, %arg6: memref<1x32xf32, #tpu.memory_space<vmem>>, %arg7: memref<1x32xf32, #tpu.memory_space<vmem>>, %arg8: memref<16x32xf32, #tpu.memory_space<vmem>>) attributes {dimension_semantics = [#tpu.dimension_semantics<parallel>], iteration_bounds = array<i64: 1>, scalar_prefetch = 0 : i64, scratch_operands = 0 : i64, tpu.core_type = #tpu.core_type<tc>, window_params = [{transform_indices = @transform_0, window_bounds = array<i64: 16, 32>}, {pipeline_mode = #tpu.pipeline_mode<synchronous>, transform_indices = @transform_1, window_bounds = array<i64: 32, 64>}, {pipeline_mode = #tpu.pipeline_mode<synchronous>, transform_indices = @transform_2, window_bounds = array<i64: 1, 64>}, {pipeline_mode = #tpu.pipeline_mode<synchronous>, transform_indices = @transform_3, window_bounds = array<i64: 64, 32>}, {pipeline_mode = #tpu.pipeline_mode<synchronous>, transform_indices = @transform_4, window_bounds = array<i64: 1, 32>}, {pipeline_mode = #tpu.pipeline_mode<synchronous>, transform_indices = @transform_5, window_bounds = array<i64: 1, 32>}, {pipeline_mode = #tpu.pipeline_mode<synchronous>, transform_indices = @transform_6, window_bounds = array<i64: 1, 32>}, {transform_indices = @transform_7, window_bounds = array<i64: 16, 32>}]} {
    %c0 = arith.constant 0 : index
    %c0_0 = arith.constant 0 : index
    %0 = vector.load %arg1[%c0, %c0_0] : memref<16x32xf32, #tpu.memory_space<vmem>>, vector<16x32xf32>
    %c0_1 = arith.constant 0 : index
    %c0_2 = arith.constant 0 : index
    %1 = vector.load %arg2[%c0_1, %c0_2] : memref<32x64xf32, #tpu.memory_space<vmem>>, vector<32x64xf32>
    %cst = arith.constant dense<0.000000e+00> : vector<16x64xf32>
    %2 = tpu.matmul %0, %1, %cst {dimension_numbers = #tpu.dot_dimension_numbers<[1], [0], [0], [1], [0, 0, 1, 1], [], []>} : vector<16x32xf32>, vector<32x64xf32>, vector<16x64xf32> -> vector<16x64xf32>
    %c0_3 = arith.constant 0 : index
    %c0_4 = arith.constant 0 : index
    %3 = vector.load %arg3[%c0_3, %c0_4] : memref<1x64xf32, #tpu.memory_space<vmem>>, vector<1x64xf32>
    %4 = vector.broadcast %3 : vector<1x64xf32> to vector<16x64xf32>
    %5 = arith.addf %2, %4 : vector<16x64xf32>
    %cst_5 = arith.constant 0.000000e+00 : f32
    %6 = vector.broadcast %cst_5 : f32 to vector<16x64xf32>
    %7 = arith.maximumf %5, %6 : vector<16x64xf32>
    %c0_6 = arith.constant 0 : index
    %c0_7 = arith.constant 0 : index
    %8 = vector.load %arg4[%c0_6, %c0_7] : memref<64x32xf32, #tpu.memory_space<vmem>>, vector<64x32xf32>
    %cst_8 = arith.constant dense<0.000000e+00> : vector<16x32xf32>
    %9 = tpu.matmul %7, %8, %cst_8 {dimension_numbers = #tpu.dot_dimension_numbers<[1], [0], [0], [1], [0, 0, 1, 1], [], []>} : vector<16x64xf32>, vector<64x32xf32>, vector<16x32xf32> -> vector<16x32xf32>
    %10 = arith.addf %0, %9 : vector<16x32xf32>
    %c0_9 = arith.constant 0 : index
    %c0_10 = arith.constant 0 : index
    %11 = vector.load %arg5[%c0_9, %c0_10] : memref<1x32xf32, #tpu.memory_space<vmem>>, vector<1x32xf32>
    %12 = vector.broadcast %11 : vector<1x32xf32> to vector<16x32xf32>
    %13 = arith.addf %10, %12 : vector<16x32xf32>
    %cst_11 = arith.constant dense<0.000000e+00> : vector<16xf32>
    %14 = vector.multi_reduction <add>, %13, %cst_11 [1] : vector<16x32xf32> to vector<16xf32>
    %15 = vector.shape_cast %14 : vector<16xf32> to vector<16x1xf32>
    %cst_12 = arith.constant 3.200000e+01 : f32
    %16 = vector.broadcast %cst_12 : f32 to vector<16x1xf32>
    %17 = arith.divf %15, %16 : vector<16x1xf32>
    %18 = vector.broadcast %17 : vector<16x1xf32> to vector<16x32xf32>
    %19 = arith.subf %13, %18 : vector<16x32xf32>
    %20 = arith.mulf %19, %19 : vector<16x32xf32>
    %cst_13 = arith.constant dense<0.000000e+00> : vector<16xf32>
    %21 = vector.multi_reduction <add>, %20, %cst_13 [1] : vector<16x32xf32> to vector<16xf32>
    %22 = vector.shape_cast %21 : vector<16xf32> to vector<16x1xf32>
    %cst_14 = arith.constant 3.200000e+01 : f32
    %23 = vector.broadcast %cst_14 : f32 to vector<16x1xf32>
    %24 = arith.divf %22, %23 : vector<16x1xf32>
    %cst_15 = arith.constant 9.99999974E-6 : f32
    %25 = vector.broadcast %cst_15 : f32 to vector<16x1xf32>
    %26 = arith.addf %24, %25 : vector<16x1xf32>
    %27 = math.rsqrt %26 : vector<16x1xf32>
    %28 = vector.broadcast %27 : vector<16x1xf32> to vector<16x32xf32>
    %29 = arith.mulf %19, %28 : vector<16x32xf32>
    %c0_16 = arith.constant 0 : index
    %c0_17 = arith.constant 0 : index
    %30 = vector.load %arg6[%c0_16, %c0_17] : memref<1x32xf32, #tpu.memory_space<vmem>>, vector<1x32xf32>
    %31 = vector.broadcast %30 : vector<1x32xf32> to vector<16x32xf32>
    %32 = arith.mulf %29, %31 : vector<16x32xf32>
    %c0_18 = arith.constant 0 : index
    %c0_19 = arith.constant 0 : index
    %33 = vector.load %arg7[%c0_18, %c0_19] : memref<1x32xf32, #tpu.memory_space<vmem>>, vector<1x32xf32>
    %34 = vector.broadcast %33 : vector<1x32xf32> to vector<16x32xf32>
    %35 = arith.addf %32, %34 : vector<16x32xf32>
    %c0_20 = arith.constant 0 : index
    %c0_21 = arith.constant 0 : index
    %36 = vector.load %arg8[%c0_20, %c0_21] : memref<16x32xf32, #tpu.memory_space<vmem>>, vector<16x32xf32>
    tpu.vector_store %arg8[%c0_20, %c0_21], %35 {strides = array<i32>} : memref<16x32xf32, #tpu.memory_space<vmem>>, vector<16x32xf32>,
    return
  }
  func.func @transform_0(%arg0: i32) -> (i32, i32) {
    %c0_i32 = arith.constant 0 : i32
    %c0_i32_0 = arith.constant 0 : i32
    return %arg0, %c0_i32 : i32, i32
  }
  func.func @transform_1(%arg0: i32) -> (i32, i32) {
    %c0_i32 = arith.constant 0 : i32
    %c0_i32_0 = arith.constant 0 : i32
    %c0_i32_1 = arith.constant 0 : i32
    return %c0_i32, %c0_i32_0 : i32, i32
  }
  func.func @transform_2(%arg0: i32) -> (i32, i32) {
    %c0_i32 = arith.constant 0 : i32
    %c0_i32_0 = arith.constant 0 : i32
    %c0_i32_1 = arith.constant 0 : i32
    return %c0_i32, %c0_i32_0 : i32, i32
  }
  func.func @transform_3(%arg0: i32) -> (i32, i32) {
    %c0_i32 = arith.constant 0 : i32
    %c0_i32_0 = arith.constant 0 : i32
    %c0_i32_1 = arith.constant 0 : i32
    return %c0_i32, %c0_i32_0 : i32, i32
  }
  func.func @transform_4(%arg0: i32) -> (i32, i32) {
    %c0_i32 = arith.constant 0 : i32
    %c0_i32_0 = arith.constant 0 : i32
    %c0_i32_1 = arith.constant 0 : i32
    return %c0_i32, %c0_i32_0 : i32, i32
  }
  func.func @transform_5(%arg0: i32) -> (i32, i32) {
    %c0_i32 = arith.constant 0 : i32
    %c0_i32_0 = arith.constant 0 : i32
    %c0_i32_1 = arith.constant 0 : i32
    return %c0_i32, %c0_i32_0 : i32, i32
  }
  func.func @transform_6(%arg0: i32) -> (i32, i32) {
    %c0_i32 = arith.constant 0 : i32
    %c0_i32_0 = arith.constant 0 : i32
    %c0_i32_1 = arith.constant 0 : i32
    return %c0_i32, %c0_i32_0 : i32, i32
  }
  func.func @transform_7(%arg0: i32) -> (i32, i32) {
    %c0_i32 = arith.constant 0 : i32
    %c0_i32_0 = arith.constant 0 : i32
    return %arg0, %c0_i32 : i32, i32
  }
}

module attributes {stable_mosaic.version = 11 : i64} {
  func.func @_attn_layer_kernel(%arg0: i32, %arg1: i32, %arg2: memref<1x8x32xf32, #tpu.memory_space<vmem>>, %arg3: memref<1x8x32xf32, #tpu.memory_space<vmem>>, %arg4: memref<32x32xf32, #tpu.memory_space<vmem>>, %arg5: memref<1x32xf32, #tpu.memory_space<vmem>>, %arg6: memref<32x64xf32, #tpu.memory_space<vmem>>, %arg7: memref<1x64xf32, #tpu.memory_space<vmem>>, %arg8: memref<32x32xf32, #tpu.memory_space<vmem>>, %arg9: memref<1x32xf32, #tpu.memory_space<vmem>>, %arg10: memref<1x32xf32, #tpu.memory_space<vmem>>, %arg11: memref<1x32xf32, #tpu.memory_space<vmem>>, %arg12: memref<1x8x32xf32, #tpu.memory_space<vmem>>, %arg13: memref<8x32xf32, #tpu.memory_space<vmem>>) attributes {dimension_semantics = [#tpu.dimension_semantics<parallel>, #tpu.dimension_semantics<parallel>], iteration_bounds = array<i64: 2, 1>, scalar_prefetch = 0 : i64, scratch_operands = 1 : i64, tpu.core_type = #tpu.core_type<tc>, window_params = [{transform_indices = @transform_0, window_bounds = array<i64: 1, 8, 32>}, {transform_indices = @transform_1, window_bounds = array<i64: 1, 8, 32>}, {pipeline_mode = #tpu.pipeline_mode<synchronous>, transform_indices = @transform_2, window_bounds = array<i64: 32, 32>}, {pipeline_mode = #tpu.pipeline_mode<synchronous>, transform_indices = @transform_3, window_bounds = array<i64: 1, 32>}, {pipeline_mode = #tpu.pipeline_mode<synchronous>, transform_indices = @transform_4, window_bounds = array<i64: 32, 64>}, {pipeline_mode = #tpu.pipeline_mode<synchronous>, transform_indices = @transform_5, window_bounds = array<i64: 1, 64>}, {pipeline_mode = #tpu.pipeline_mode<synchronous>, transform_indices = @transform_6, window_bounds = array<i64: 32, 32>}, {pipeline_mode = #tpu.pipeline_mode<synchronous>, transform_indices = @transform_7, window_bounds = array<i64: 1, 32>}, {pipeline_mode = #tpu.pipeline_mode<synchronous>, transform_indices = @transform_8, window_bounds = array<i64: 1, 32>}, {pipeline_mode = #tpu.pipeline_mode<synchronous>, transform_indices = @transform_9, window_bounds = array<i64: 1, 32>}, {transform_indices = @transform_10, window_bounds = array<i64: 1, 8, 32>}]} {
    %c0 = arith.constant 0 : index
    %c0_0 = arith.constant 0 : index
    %c0_1 = arith.constant 0 : index
    %0 = vector.load %arg2[%c0, %c0_0, %c0_1] : memref<1x8x32xf32, #tpu.memory_space<vmem>>, vector<1x8x32xf32>
    %1 = vector.shape_cast %0 : vector<1x8x32xf32> to vector<8x32xf32>
    %c0_2 = arith.constant 0 : index
    %c0_3 = arith.constant 0 : index
    %c0_4 = arith.constant 0 : index
    %2 = vector.load %arg2[%c0_2, %c0_3, %c0_4] : memref<1x8x32xf32, #tpu.memory_space<vmem>>, vector<1x8x32xf32>
    %3 = vector.shape_cast %2 : vector<1x8x32xf32> to vector<8x32xf32>
    %c0_5 = arith.constant 0 : index
    %c0_6 = arith.constant 0 : index
    %4 = vector.load %arg4[%c0_5, %c0_6] : memref<32x32xf32, #tpu.memory_space<vmem>>, vector<32x32xf32>
    %cst = arith.constant dense<0.000000e+00> : vector<8x32xf32>
    %5 = tpu.matmul %3, %4, %cst {dimension_numbers = #tpu.dot_dimension_numbers<[1], [0], [0], [1], [0, 0, 1, 1], [], []>} : vector<8x32xf32>, vector<32x32xf32>, vector<8x32xf32> -> vector<8x32xf32>
    %c0_7 = arith.constant 0 : index
    %c0_8 = arith.constant 0 : index
    %6 = vector.load %arg5[%c0_7, %c0_8] : memref<1x32xf32, #tpu.memory_space<vmem>>, vector<1x32xf32>
    %7 = vector.broadcast %6 : vector<1x32xf32> to vector<8x32xf32>
    %8 = arith.addf %5, %7 : vector<8x32xf32>
    %c0_9 = arith.constant 0 : index
    %c0_10 = arith.constant 0 : index
    %c0_11 = arith.constant 0 : index
    %9 = vector.load %arg3[%c0_9, %c0_10, %c0_11] : memref<1x8x32xf32, #tpu.memory_space<vmem>>, vector<1x8x32xf32>
    %10 = vector.shape_cast %9 : vector<1x8x32xf32> to vector<8x32xf32>
    %c0_12 = arith.constant 0 : index
    %c0_13 = arith.constant 0 : index
    %11 = vector.load %arg6[%c0_12, %c0_13] : memref<32x64xf32, #tpu.memory_space<vmem>>, vector<32x64xf32>
    %cst_14 = arith.constant dense<0.000000e+00> : vector<8x64xf32>
    %12 = tpu.matmul %10, %11, %cst_14 {dimension_numbers = #tpu.dot_dimension_numbers<[1], [0], [0], [1], [0, 0, 1, 1], [], []>} : vector<8x32xf32>, vector<32x64xf32>, vector<8x64xf32> -> vector<8x64xf32>
    %c0_15 = arith.constant 0 : index
    %c0_16 = arith.constant 0 : index
    %13 = vector.load %arg7[%c0_15, %c0_16] : memref<1x64xf32, #tpu.memory_space<vmem>>, vector<1x64xf32>
    %14 = vector.broadcast %13 : vector<1x64xf32> to vector<8x64xf32>
    %15 = arith.addf %12, %14 : vector<8x64xf32>
    %16 = vector.extract_strided_slice %15 {offsets = [0, 0], sizes = [8, 32], strides = [1, 1]} : vector<8x64xf32> to vector<8x32xf32>
    %17 = vector.extract_strided_slice %15 {offsets = [0, 32], sizes = [8, 32], strides = [1, 1]} : vector<8x64xf32> to vector<8x32xf32>
    %c8_i32 = arith.constant 8 : i32
    %18 = arith.muli %arg1, %c8_i32 : i32
    %19 = tpu.iota {dimensions = array<i32: 0>} : vector<8x8xi32>
    %20 = vector.broadcast %18 : i32 to vector<8x8xi32>
    %21 = arith.addi %19, %20 : vector<8x8xi32>
    %22 = tpu.iota {dimensions = array<i32: 1>} : vector<8x8xi32>
    %23 = arith.cmpi sle, %22, %21 : vector<8x8xi32>
    %24 = vector.extract_strided_slice %8 {offsets = [0, 0], sizes = [8, 8], strides = [1, 1]} : vector<8x32xf32> to vector<8x8xf32>
    %25 = vector.extract_strided_slice %16 {offsets = [0, 0], sizes = [8, 8], strides = [1, 1]} : vector<8x32xf32> to vector<8x8xf32>
    %26 = vector.extract_strided_slice %17 {offsets = [0, 0], sizes = [8, 8], strides = [1, 1]} : vector<8x32xf32> to vector<8x8xf32>
    %cst_17 = arith.constant dense<0.000000e+00> : vector<8x8xf32>
    %27 = tpu.matmul %24, %25, %cst_17 {dimension_numbers = #tpu.dot_dimension_numbers<[1], [1], [0], [0], [0, 0, 1, 0], [], []>} : vector<8x8xf32>, vector<8x8xf32>, vector<8x8xf32> -> vector<8x8xf32>
    %cst_18 = arith.constant 0.353553385 : f32
    %28 = vector.broadcast %cst_18 : f32 to vector<8x8xf32>
    %29 = arith.mulf %27, %28 : vector<8x8xf32>
    %cst_19 = arith.constant -1.000000e+30 : f32
    %30 = vector.broadcast %cst_19 : f32 to vector<8x8xf32>
    %31 = arith.select %23, %29, %30 : vector<8x8xi1>, vector<8x8xf32>
    %cst_20 = arith.constant dense<0xFF800000> : vector<8xf32>
    %32 = vector.multi_reduction <maximumf>, %31, %cst_20 [1] : vector<8x8xf32> to vector<8xf32>
    %33 = vector.shape_cast %32 : vector<8xf32> to vector<8x1xf32>
    %34 = vector.broadcast %33 : vector<8x1xf32> to vector<8x8xf32>
    %35 = arith.subf %31, %34 : vector<8x8xf32>
    %36 = math.exp %35 : vector<8x8xf32>
    %cst_21 = arith.constant dense<0.000000e+00> : vector<8xf32>
    %37 = vector.multi_reduction <add>, %36, %cst_21 [1] : vector<8x8xf32> to vector<8xf32>
    %38 = vector.shape_cast %37 : vector<8xf32> to vector<8x1xf32>
    %39 = tpu.reciprocal %38 {approx = true} : vector<8x1xf32> -> vector<8x1xf32>
    %40 = vector.broadcast %39 : vector<8x1xf32> to vector<8x8xf32>
    %41 = arith.mulf %36, %40 : vector<8x8xf32>
    %cst_22 = arith.constant dense<0.000000e+00> : vector<8x8xf32>
    %42 = tpu.matmul %41, %26, %cst_22 {dimension_numbers = #tpu.dot_dimension_numbers<[1], [0], [0], [1], [0, 0, 1, 1], [], []>} : vector<8x8xf32>, vector<8x8xf32>, vector<8x8xf32> -> vector<8x8xf32>
    %c0_23 = arith.constant 0 : index
    %c0_24 = arith.constant 0 : index
    %43 = vector.load %arg13[%c0_23, %c0_24] : memref<8x32xf32, #tpu.memory_space<vmem>>, vector<8x8xf32>
    tpu.vector_store %arg13[%c0_23, %c0_24], %42 {strides = array<i32>} : memref<8x32xf32, #tpu.memory_space<vmem>>, vector<8x8xf32>,
    %44 = vector.extract_strided_slice %8 {offsets = [0, 8], sizes = [8, 8], strides = [1, 1]} : vector<8x32xf32> to vector<8x8xf32>
    %45 = vector.extract_strided_slice %16 {offsets = [0, 8], sizes = [8, 8], strides = [1, 1]} : vector<8x32xf32> to vector<8x8xf32>
    %46 = vector.extract_strided_slice %17 {offsets = [0, 8], sizes = [8, 8], strides = [1, 1]} : vector<8x32xf32> to vector<8x8xf32>
    %cst_25 = arith.constant dense<0.000000e+00> : vector<8x8xf32>
    %47 = tpu.matmul %44, %45, %cst_25 {dimension_numbers = #tpu.dot_dimension_numbers<[1], [1], [0], [0], [0, 0, 1, 0], [], []>} : vector<8x8xf32>, vector<8x8xf32>, vector<8x8xf32> -> vector<8x8xf32>
    %cst_26 = arith.constant 0.353553385 : f32
    %48 = vector.broadcast %cst_26 : f32 to vector<8x8xf32>
    %49 = arith.mulf %47, %48 : vector<8x8xf32>
    %cst_27 = arith.constant -1.000000e+30 : f32
    %50 = vector.broadcast %cst_27 : f32 to vector<8x8xf32>
    %51 = arith.select %23, %49, %50 : vector<8x8xi1>, vector<8x8xf32>
    %cst_28 = arith.constant dense<0xFF800000> : vector<8xf32>
    %52 = vector.multi_reduction <maximumf>, %51, %cst_28 [1] : vector<8x8xf32> to vector<8xf32>
    %53 = vector.shape_cast %52 : vector<8xf32> to vector<8x1xf32>
    %54 = vector.broadcast %53 : vector<8x1xf32> to vector<8x8xf32>
    %55 = arith.subf %51, %54 : vector<8x8xf32>
    %56 = math.exp %55 : vector<8x8xf32>
    %cst_29 = arith.constant dense<0.000000e+00> : vector<8xf32>
    %57 = vector.multi_reduction <add>, %56, %cst_29 [1] : vector<8x8xf32> to vector<8xf32>
    %58 = vector.shape_cast %57 : vector<8xf32> to vector<8x1xf32>
    %59 = tpu.reciprocal %58 {approx = true} : vector<8x1xf32> -> vector<8x1xf32>
    %60 = vector.broadcast %59 : vector<8x1xf32> to vector<8x8xf32>
    %61 = arith.mulf %56, %60 : vector<8x8xf32>
    %cst_30 = arith.constant dense<0.000000e+00> : vector<8x8xf32>
    %62 = tpu.matmul %61, %46, %cst_30 {dimension_numbers = #tpu.dot_dimension_numbers<[1], [0], [0], [1], [0, 0, 1, 1], [], []>} : vector<8x8xf32>, vector<8x8xf32>, vector<8x8xf32> -> vector<8x8xf32>
    %c0_31 = arith.constant 0 : index
    %c8 = arith.constant 8 : index
    %63 = vector.load %arg13[%c0_31, %c8] : memref<8x32xf32, #tpu.memory_space<vmem>>, vector<8x8xf32>
    tpu.vector_store %arg13[%c0_31, %c8], %62 {strides = array<i32>} : memref<8x32xf32, #tpu.memory_space<vmem>>, vector<8x8xf32>,
    %64 = vector.extract_strided_slice %8 {offsets = [0, 16], sizes = [8, 8], strides = [1, 1]} : vector<8x32xf32> to vector<8x8xf32>
    %65 = vector.extract_strided_slice %16 {offsets = [0, 16], sizes = [8, 8], strides = [1, 1]} : vector<8x32xf32> to vector<8x8xf32>
    %66 = vector.extract_strided_slice %17 {offsets = [0, 16], sizes = [8, 8], strides = [1, 1]} : vector<8x32xf32> to vector<8x8xf32>
    %cst_32 = arith.constant dense<0.000000e+00> : vector<8x8xf32>
    %67 = tpu.matmul %64, %65, %cst_32 {dimension_numbers = #tpu.dot_dimension_numbers<[1], [1], [0], [0], [0, 0, 1, 0], [], []>} : vector<8x8xf32>, vector<8x8xf32>, vector<8x8xf32> -> vector<8x8xf32>
    %cst_33 = arith.constant 0.353553385 : f32
    %68 = vector.broadcast %cst_33 : f32 to vector<8x8xf32>
    %69 = arith.mulf %67, %68 : vector<8x8xf32>
    %cst_34 = arith.constant -1.000000e+30 : f32
    %70 = vector.broadcast %cst_34 : f32 to vector<8x8xf32>
    %71 = arith.select %23, %69, %70 : vector<8x8xi1>, vector<8x8xf32>
    %cst_35 = arith.constant dense<0xFF800000> : vector<8xf32>
    %72 = vector.multi_reduction <maximumf>, %71, %cst_35 [1] : vector<8x8xf32> to vector<8xf32>
    %73 = vector.shape_cast %72 : vector<8xf32> to vector<8x1xf32>
    %74 = vector.broadcast %73 : vector<8x1xf32> to vector<8x8xf32>
    %75 = arith.subf %71, %74 : vector<8x8xf32>
    %76 = math.exp %75 : vector<8x8xf32>
    %cst_36 = arith.constant dense<0.000000e+00> : vector<8xf32>
    %77 = vector.multi_reduction <add>, %76, %cst_36 [1] : vector<8x8xf32> to vector<8xf32>
    %78 = vector.shape_cast %77 : vector<8xf32> to vector<8x1xf32>
    %79 = tpu.reciprocal %78 {approx = true} : vector<8x1xf32> -> vector<8x1xf32>
    %80 = vector.broadcast %79 : vector<8x1xf32> to vector<8x8xf32>
    %81 = arith.mulf %76, %80 : vector<8x8xf32>
    %cst_37 = arith.constant dense<0.000000e+00> : vector<8x8xf32>
    %82 = tpu.matmul %81, %66, %cst_37 {dimension_numbers = #tpu.dot_dimension_numbers<[1], [0], [0], [1], [0, 0, 1, 1], [], []>} : vector<8x8xf32>, vector<8x8xf32>, vector<8x8xf32> -> vector<8x8xf32>
    %c0_38 = arith.constant 0 : index
    %c16 = arith.constant 16 : index
    %83 = vector.load %arg13[%c0_38, %c16] : memref<8x32xf32, #tpu.memory_space<vmem>>, vector<8x8xf32>
    tpu.vector_store %arg13[%c0_38, %c16], %82 {strides = array<i32>} : memref<8x32xf32, #tpu.memory_space<vmem>>, vector<8x8xf32>,
    %84 = vector.extract_strided_slice %8 {offsets = [0, 24], sizes = [8, 8], strides = [1, 1]} : vector<8x32xf32> to vector<8x8xf32>
    %85 = vector.extract_strided_slice %16 {offsets = [0, 24], sizes = [8, 8], strides = [1, 1]} : vector<8x32xf32> to vector<8x8xf32>
    %86 = vector.extract_strided_slice %17 {offsets = [0, 24], sizes = [8, 8], strides = [1, 1]} : vector<8x32xf32> to vector<8x8xf32>
    %cst_39 = arith.constant dense<0.000000e+00> : vector<8x8xf32>
    %87 = tpu.matmul %84, %85, %cst_39 {dimension_numbers = #tpu.dot_dimension_numbers<[1], [1], [0], [0], [0, 0, 1, 0], [], []>} : vector<8x8xf32>, vector<8x8xf32>, vector<8x8xf32> -> vector<8x8xf32>
    %cst_40 = arith.constant 0.353553385 : f32
    %88 = vector.broadcast %cst_40 : f32 to vector<8x8xf32>
    %89 = arith.mulf %87, %88 : vector<8x8xf32>
    %cst_41 = arith.constant -1.000000e+30 : f32
    %90 = vector.broadcast %cst_41 : f32 to vector<8x8xf32>
    %91 = arith.select %23, %89, %90 : vector<8x8xi1>, vector<8x8xf32>
    %cst_42 = arith.constant dense<0xFF800000> : vector<8xf32>
    %92 = vector.multi_reduction <maximumf>, %91, %cst_42 [1] : vector<8x8xf32> to vector<8xf32>
    %93 = vector.shape_cast %92 : vector<8xf32> to vector<8x1xf32>
    %94 = vector.broadcast %93 : vector<8x1xf32> to vector<8x8xf32>
    %95 = arith.subf %91, %94 : vector<8x8xf32>
    %96 = math.exp %95 : vector<8x8xf32>
    %cst_43 = arith.constant dense<0.000000e+00> : vector<8xf32>
    %97 = vector.multi_reduction <add>, %96, %cst_43 [1] : vector<8x8xf32> to vector<8xf32>
    %98 = vector.shape_cast %97 : vector<8xf32> to vector<8x1xf32>
    %99 = tpu.reciprocal %98 {approx = true} : vector<8x1xf32> -> vector<8x1xf32>
    %100 = vector.broadcast %99 : vector<8x1xf32> to vector<8x8xf32>
    %101 = arith.mulf %96, %100 : vector<8x8xf32>
    %cst_44 = arith.constant dense<0.000000e+00> : vector<8x8xf32>
    %102 = tpu.matmul %101, %86, %cst_44 {dimension_numbers = #tpu.dot_dimension_numbers<[1], [0], [0], [1], [0, 0, 1, 1], [], []>} : vector<8x8xf32>, vector<8x8xf32>, vector<8x8xf32> -> vector<8x8xf32>
    %c0_45 = arith.constant 0 : index
    %c24 = arith.constant 24 : index
    %103 = vector.load %arg13[%c0_45, %c24] : memref<8x32xf32, #tpu.memory_space<vmem>>, vector<8x8xf32>
    tpu.vector_store %arg13[%c0_45, %c24], %102 {strides = array<i32>} : memref<8x32xf32, #tpu.memory_space<vmem>>, vector<8x8xf32>,
    %c0_46 = arith.constant 0 : index
    %c0_47 = arith.constant 0 : index
    %104 = vector.load %arg13[%c0_46, %c0_47] : memref<8x32xf32, #tpu.memory_space<vmem>>, vector<8x32xf32>
    %c0_48 = arith.constant 0 : index
    %c0_49 = arith.constant 0 : index
    %105 = vector.load %arg8[%c0_48, %c0_49] : memref<32x32xf32, #tpu.memory_space<vmem>>, vector<32x32xf32>
    %cst_50 = arith.constant dense<0.000000e+00> : vector<8x32xf32>
    %106 = tpu.matmul %104, %105, %cst_50 {dimension_numbers = #tpu.dot_dimension_numbers<[1], [0], [0], [1], [0, 0, 1, 1], [], []>} : vector<8x32xf32>, vector<32x32xf32>, vector<8x32xf32> -> vector<8x32xf32>
    %107 = arith.addf %1, %106 : vector<8x32xf32>
    %c0_51 = arith.constant 0 : index
    %c0_52 = arith.constant 0 : index
    %108 = vector.load %arg9[%c0_51, %c0_52] : memref<1x32xf32, #tpu.memory_space<vmem>>, vector<1x32xf32>
    %109 = vector.broadcast %108 : vector<1x32xf32> to vector<8x32xf32>
    %110 = arith.addf %107, %109 : vector<8x32xf32>
    %cst_53 = arith.constant dense<0.000000e+00> : vector<8xf32>
    %111 = vector.multi_reduction <add>, %110, %cst_53 [1] : vector<8x32xf32> to vector<8xf32>
    %112 = vector.shape_cast %111 : vector<8xf32> to vector<8x1xf32>
    %cst_54 = arith.constant 3.200000e+01 : f32
    %113 = vector.broadcast %cst_54 : f32 to vector<8x1xf32>
    %114 = arith.divf %112, %113 : vector<8x1xf32>
    %115 = vector.broadcast %114 : vector<8x1xf32> to vector<8x32xf32>
    %116 = arith.subf %110, %115 : vector<8x32xf32>
    %117 = arith.mulf %116, %116 : vector<8x32xf32>
    %cst_55 = arith.constant dense<0.000000e+00> : vector<8xf32>
    %118 = vector.multi_reduction <add>, %117, %cst_55 [1] : vector<8x32xf32> to vector<8xf32>
    %119 = vector.shape_cast %118 : vector<8xf32> to vector<8x1xf32>
    %cst_56 = arith.constant 3.200000e+01 : f32
    %120 = vector.broadcast %cst_56 : f32 to vector<8x1xf32>
    %121 = arith.divf %119, %120 : vector<8x1xf32>
    %cst_57 = arith.constant 9.99999974E-6 : f32
    %122 = vector.broadcast %cst_57 : f32 to vector<8x1xf32>
    %123 = arith.addf %121, %122 : vector<8x1xf32>
    %124 = math.rsqrt %123 : vector<8x1xf32>
    %125 = vector.broadcast %124 : vector<8x1xf32> to vector<8x32xf32>
    %126 = arith.mulf %116, %125 : vector<8x32xf32>
    %c0_58 = arith.constant 0 : index
    %c0_59 = arith.constant 0 : index
    %127 = vector.load %arg10[%c0_58, %c0_59] : memref<1x32xf32, #tpu.memory_space<vmem>>, vector<1x32xf32>
    %128 = vector.broadcast %127 : vector<1x32xf32> to vector<8x32xf32>
    %129 = arith.mulf %126, %128 : vector<8x32xf32>
    %c0_60 = arith.constant 0 : index
    %c0_61 = arith.constant 0 : index
    %130 = vector.load %arg11[%c0_60, %c0_61] : memref<1x32xf32, #tpu.memory_space<vmem>>, vector<1x32xf32>
    %131 = vector.broadcast %130 : vector<1x32xf32> to vector<8x32xf32>
    %132 = arith.addf %129, %131 : vector<8x32xf32>
    %c0_62 = arith.constant 0 : index
    %c0_63 = arith.constant 0 : index
    %c0_64 = arith.constant 0 : index
    %133 = vector.load %arg12[%c0_62, %c0_63, %c0_64] : memref<1x8x32xf32, #tpu.memory_space<vmem>>, vector<1x8x32xf32>
    %134 = vector.shape_cast %133 : vector<1x8x32xf32> to vector<8x32xf32>
    %135 = vector.shape_cast %132 : vector<8x32xf32> to vector<1x8x32xf32>
    tpu.vector_store %arg12[%c0_62, %c0_63, %c0_64], %135 {strides = array<i32>} : memref<1x8x32xf32, #tpu.memory_space<vmem>>, vector<1x8x32xf32>,
    return
  }
  func.func @transform_0(%arg0: i32, %arg1: i32) -> (i32, i32, i32) {
    %c0_i32 = arith.constant 0 : i32
    %c0_i32_0 = arith.constant 0 : i32
    return %arg0, %arg1, %c0_i32 : i32, i32, i32
  }
  func.func @transform_1(%arg0: i32, %arg1: i32) -> (i32, i32, i32) {
    %c0_i32 = arith.constant 0 : i32
    %c0_i32_0 = arith.constant 0 : i32
    %c0_i32_1 = arith.constant 0 : i32
    return %arg0, %c0_i32, %c0_i32_0 : i32, i32, i32
  }
  func.func @transform_2(%arg0: i32, %arg1: i32) -> (i32, i32) {
    %c0_i32 = arith.constant 0 : i32
    %c0_i32_0 = arith.constant 0 : i32
    %c0_i32_1 = arith.constant 0 : i32
    return %c0_i32, %c0_i32_0 : i32, i32
  }
  func.func @transform_3(%arg0: i32, %arg1: i32) -> (i32, i32) {
    %c0_i32 = arith.constant 0 : i32
    %c0_i32_0 = arith.constant 0 : i32
    %c0_i32_1 = arith.constant 0 : i32
    return %c0_i32, %c0_i32_0 : i32, i32
  }
  func.func @transform_4(%arg0: i32, %arg1: i32) -> (i32, i32) {
    %c0_i32 = arith.constant 0 : i32
    %c0_i32_0 = arith.constant 0 : i32
    %c0_i32_1 = arith.constant 0 : i32
    return %c0_i32, %c0_i32_0 : i32, i32
  }
  func.func @transform_5(%arg0: i32, %arg1: i32) -> (i32, i32) {
    %c0_i32 = arith.constant 0 : i32
    %c0_i32_0 = arith.constant 0 : i32
    %c0_i32_1 = arith.constant 0 : i32
    return %c0_i32, %c0_i32_0 : i32, i32
  }
  func.func @transform_6(%arg0: i32, %arg1: i32) -> (i32, i32) {
    %c0_i32 = arith.constant 0 : i32
    %c0_i32_0 = arith.constant 0 : i32
    %c0_i32_1 = arith.constant 0 : i32
    return %c0_i32, %c0_i32_0 : i32, i32
  }
  func.func @transform_7(%arg0: i32, %arg1: i32) -> (i32, i32) {
    %c0_i32 = arith.constant 0 : i32
    %c0_i32_0 = arith.constant 0 : i32
    %c0_i32_1 = arith.constant 0 : i32
    return %c0_i32, %c0_i32_0 : i32, i32
  }
  func.func @transform_8(%arg0: i32, %arg1: i32) -> (i32, i32) {
    %c0_i32 = arith.constant 0 : i32
    %c0_i32_0 = arith.constant 0 : i32
    %c0_i32_1 = arith.constant 0 : i32
    return %c0_i32, %c0_i32_0 : i32, i32
  }
  func.func @transform_9(%arg0: i32, %arg1: i32) -> (i32, i32) {
    %c0_i32 = arith.constant 0 : i32
    %c0_i32_0 = arith.constant 0 : i32
    %c0_i32_1 = arith.constant 0 : i32
    return %c0_i32, %c0_i32_0 : i32, i32
  }
  func.func @transform_10(%arg0: i32, %arg1: i32) -> (i32, i32, i32) {
    %c0_i32 = arith.constant 0 : i32
    %c0_i32_0 = arith.constant 0 : i32
    return %arg0, %arg1, %c0_i32 : i32, i32, i32
  }
}

module attributes {stable_mosaic.version = 11 : i64} {
  func.func @_attn_layer_kernel(%arg0: i32, %arg1: i32, %arg2: memref<1x8x32xf32, #tpu.memory_space<vmem>>, %arg3: memref<1x8x32xf32, #tpu.memory_space<vmem>>, %arg4: memref<32x32xf32, #tpu.memory_space<vmem>>, %arg5: memref<1x32xf32, #tpu.memory_space<vmem>>, %arg6: memref<32x64xf32, #tpu.memory_space<vmem>>, %arg7: memref<1x64xf32, #tpu.memory_space<vmem>>, %arg8: memref<32x32xf32, #tpu.memory_space<vmem>>, %arg9: memref<1x32xf32, #tpu.memory_space<vmem>>, %arg10: memref<1x32xf32, #tpu.memory_space<vmem>>, %arg11: memref<1x32xf32, #tpu.memory_space<vmem>>, %arg12: memref<1x8x32xf32, #tpu.memory_space<vmem>>, %arg13: memref<8x32xf32, #tpu.memory_space<vmem>>) attributes {dimension_semantics = [#tpu.dimension_semantics<parallel>, #tpu.dimension_semantics<parallel>], iteration_bounds = array<i64: 2, 1>, scalar_prefetch = 0 : i64, scratch_operands = 1 : i64, tpu.core_type = #tpu.core_type<tc>, window_params = [{transform_indices = @transform_0, window_bounds = array<i64: 1, 8, 32>}, {transform_indices = @transform_1, window_bounds = array<i64: 1, 8, 32>}, {pipeline_mode = #tpu.pipeline_mode<synchronous>, transform_indices = @transform_2, window_bounds = array<i64: 32, 32>}, {pipeline_mode = #tpu.pipeline_mode<synchronous>, transform_indices = @transform_3, window_bounds = array<i64: 1, 32>}, {pipeline_mode = #tpu.pipeline_mode<synchronous>, transform_indices = @transform_4, window_bounds = array<i64: 32, 64>}, {pipeline_mode = #tpu.pipeline_mode<synchronous>, transform_indices = @transform_5, window_bounds = array<i64: 1, 64>}, {pipeline_mode = #tpu.pipeline_mode<synchronous>, transform_indices = @transform_6, window_bounds = array<i64: 32, 32>}, {pipeline_mode = #tpu.pipeline_mode<synchronous>, transform_indices = @transform_7, window_bounds = array<i64: 1, 32>}, {pipeline_mode = #tpu.pipeline_mode<synchronous>, transform_indices = @transform_8, window_bounds = array<i64: 1, 32>}, {pipeline_mode = #tpu.pipeline_mode<synchronous>, transform_indices = @transform_9, window_bounds = array<i64: 1, 32>}, {transform_indices = @transform_10, window_bounds = array<i64: 1, 8, 32>}]} {
    %c0 = arith.constant 0 : index
    %c0_0 = arith.constant 0 : index
    %c0_1 = arith.constant 0 : index
    %0 = vector.load %arg2[%c0, %c0_0, %c0_1] : memref<1x8x32xf32, #tpu.memory_space<vmem>>, vector<1x8x32xf32>
    %1 = vector.shape_cast %0 : vector<1x8x32xf32> to vector<8x32xf32>
    %c0_2 = arith.constant 0 : index
    %c0_3 = arith.constant 0 : index
    %c0_4 = arith.constant 0 : index
    %2 = vector.load %arg2[%c0_2, %c0_3, %c0_4] : memref<1x8x32xf32, #tpu.memory_space<vmem>>, vector<1x8x32xf32>
    %3 = vector.shape_cast %2 : vector<1x8x32xf32> to vector<8x32xf32>
    %c0_5 = arith.constant 0 : index
    %c0_6 = arith.constant 0 : index
    %4 = vector.load %arg4[%c0_5, %c0_6] : memref<32x32xf32, #tpu.memory_space<vmem>>, vector<32x32xf32>
    %cst = arith.constant dense<0.000000e+00> : vector<8x32xf32>
    %5 = tpu.matmul %3, %4, %cst {dimension_numbers = #tpu.dot_dimension_numbers<[1], [0], [0], [1], [0, 0, 1, 1], [], []>} : vector<8x32xf32>, vector<32x32xf32>, vector<8x32xf32> -> vector<8x32xf32>
    %c0_7 = arith.constant 0 : index
    %c0_8 = arith.constant 0 : index
    %6 = vector.load %arg5[%c0_7, %c0_8] : memref<1x32xf32, #tpu.memory_space<vmem>>, vector<1x32xf32>
    %7 = vector.broadcast %6 : vector<1x32xf32> to vector<8x32xf32>
    %8 = arith.addf %5, %7 : vector<8x32xf32>
    %c0_9 = arith.constant 0 : index
    %c0_10 = arith.constant 0 : index
    %c0_11 = arith.constant 0 : index
    %9 = vector.load %arg3[%c0_9, %c0_10, %c0_11] : memref<1x8x32xf32, #tpu.memory_space<vmem>>, vector<1x8x32xf32>
    %10 = vector.shape_cast %9 : vector<1x8x32xf32> to vector<8x32xf32>
    %c0_12 = arith.constant 0 : index
    %c0_13 = arith.constant 0 : index
    %11 = vector.load %arg6[%c0_12, %c0_13] : memref<32x64xf32, #tpu.memory_space<vmem>>, vector<32x64xf32>
    %cst_14 = arith.constant dense<0.000000e+00> : vector<8x64xf32>
    %12 = tpu.matmul %10, %11, %cst_14 {dimension_numbers = #tpu.dot_dimension_numbers<[1], [0], [0], [1], [0, 0, 1, 1], [], []>} : vector<8x32xf32>, vector<32x64xf32>, vector<8x64xf32> -> vector<8x64xf32>
    %c0_15 = arith.constant 0 : index
    %c0_16 = arith.constant 0 : index
    %13 = vector.load %arg7[%c0_15, %c0_16] : memref<1x64xf32, #tpu.memory_space<vmem>>, vector<1x64xf32>
    %14 = vector.broadcast %13 : vector<1x64xf32> to vector<8x64xf32>
    %15 = arith.addf %12, %14 : vector<8x64xf32>
    %16 = vector.extract_strided_slice %15 {offsets = [0, 0], sizes = [8, 32], strides = [1, 1]} : vector<8x64xf32> to vector<8x32xf32>
    %17 = vector.extract_strided_slice %15 {offsets = [0, 32], sizes = [8, 32], strides = [1, 1]} : vector<8x64xf32> to vector<8x32xf32>
    %c8_i32 = arith.constant 8 : i32
    %18 = arith.muli %arg1, %c8_i32 : i32
    %19 = tpu.iota {dimensions = array<i32: 0>} : vector<8x8xi32>
    %20 = vector.broadcast %18 : i32 to vector<8x8xi32>
    %21 = arith.addi %19, %20 : vector<8x8xi32>
    %22 = tpu.iota {dimensions = array<i32: 1>} : vector<8x8xi32>
    %23 = arith.cmpi sle, %22, %21 : vector<8x8xi32>
    %24 = vector.extract_strided_slice %8 {offsets = [0, 0], sizes = [8, 8], strides = [1, 1]} : vector<8x32xf32> to vector<8x8xf32>
    %25 = vector.extract_strided_slice %16 {offsets = [0, 0], sizes = [8, 8], strides = [1, 1]} : vector<8x32xf32> to vector<8x8xf32>
    %26 = vector.extract_strided_slice %17 {offsets = [0, 0], sizes = [8, 8], strides = [1, 1]} : vector<8x32xf32> to vector<8x8xf32>
    %cst_17 = arith.constant dense<0.000000e+00> : vector<8x8xf32>
    %27 = tpu.matmul %24, %25, %cst_17 {dimension_numbers = #tpu.dot_dimension_numbers<[1], [1], [0], [0], [0, 0, 1, 0], [], []>} : vector<8x8xf32>, vector<8x8xf32>, vector<8x8xf32> -> vector<8x8xf32>
    %cst_18 = arith.constant 0.353553385 : f32
    %28 = vector.broadcast %cst_18 : f32 to vector<8x8xf32>
    %29 = arith.mulf %27, %28 : vector<8x8xf32>
    %cst_19 = arith.constant -1.000000e+30 : f32
    %30 = vector.broadcast %cst_19 : f32 to vector<8x8xf32>
    %31 = arith.select %23, %29, %30 : vector<8x8xi1>, vector<8x8xf32>
    %cst_20 = arith.constant dense<0xFF800000> : vector<8xf32>
    %32 = vector.multi_reduction <maximumf>, %31, %cst_20 [1] : vector<8x8xf32> to vector<8xf32>
    %33 = vector.shape_cast %32 : vector<8xf32> to vector<8x1xf32>
    %34 = vector.broadcast %33 : vector<8x1xf32> to vector<8x8xf32>
    %35 = arith.subf %31, %34 : vector<8x8xf32>
    %36 = math.exp %35 : vector<8x8xf32>
    %cst_21 = arith.constant dense<0.000000e+00> : vector<8xf32>
    %37 = vector.multi_reduction <add>, %36, %cst_21 [1] : vector<8x8xf32> to vector<8xf32>
    %38 = vector.shape_cast %37 : vector<8xf32> to vector<8x1xf32>
    %39 = tpu.reciprocal %38 {approx = true} : vector<8x1xf32> -> vector<8x1xf32>
    %40 = vector.broadcast %39 : vector<8x1xf32> to vector<8x8xf32>
    %41 = arith.mulf %36, %40 : vector<8x8xf32>
    %cst_22 = arith.constant dense<0.000000e+00> : vector<8x8xf32>
    %42 = tpu.matmul %41, %26, %cst_22 {dimension_numbers = #tpu.dot_dimension_numbers<[1], [0], [0], [1], [0, 0, 1, 1], [], []>} : vector<8x8xf32>, vector<8x8xf32>, vector<8x8xf32> -> vector<8x8xf32>
    %c0_23 = arith.constant 0 : index
    %c0_24 = arith.constant 0 : index
    %43 = vector.load %arg13[%c0_23, %c0_24] : memref<8x32xf32, #tpu.memory_space<vmem>>, vector<8x8xf32>
    tpu.vector_store %arg13[%c0_23, %c0_24], %42 {strides = array<i32>} : memref<8x32xf32, #tpu.memory_space<vmem>>, vector<8x8xf32>,
    %44 = vector.extract_strided_slice %8 {offsets = [0, 8], sizes = [8, 8], strides = [1, 1]} : vector<8x32xf32> to vector<8x8xf32>
    %45 = vector.extract_strided_slice %16 {offsets = [0, 8], sizes = [8, 8], strides = [1, 1]} : vector<8x32xf32> to vector<8x8xf32>
    %46 = vector.extract_strided_slice %17 {offsets = [0, 8], sizes = [8, 8], strides = [1, 1]} : vector<8x32xf32> to vector<8x8xf32>
    %cst_25 = arith.constant dense<0.000000e+00> : vector<8x8xf32>
    %47 = tpu.matmul %44, %45, %cst_25 {dimension_numbers = #tpu.dot_dimension_numbers<[1], [1], [0], [0], [0, 0, 1, 0], [], []>} : vector<8x8xf32>, vector<8x8xf32>, vector<8x8xf32> -> vector<8x8xf32>
    %cst_26 = arith.constant 0.353553385 : f32
    %48 = vector.broadcast %cst_26 : f32 to vector<8x8xf32>
    %49 = arith.mulf %47, %48 : vector<8x8xf32>
    %cst_27 = arith.constant -1.000000e+30 : f32
    %50 = vector.broadcast %cst_27 : f32 to vector<8x8xf32>
    %51 = arith.select %23, %49, %50 : vector<8x8xi1>, vector<8x8xf32>
    %cst_28 = arith.constant dense<0xFF800000> : vector<8xf32>
    %52 = vector.multi_reduction <maximumf>, %51, %cst_28 [1] : vector<8x8xf32> to vector<8xf32>
    %53 = vector.shape_cast %52 : vector<8xf32> to vector<8x1xf32>
    %54 = vector.broadcast %53 : vector<8x1xf32> to vector<8x8xf32>
    %55 = arith.subf %51, %54 : vector<8x8xf32>
    %56 = math.exp %55 : vector<8x8xf32>
    %cst_29 = arith.constant dense<0.000000e+00> : vector<8xf32>
    %57 = vector.multi_reduction <add>, %56, %cst_29 [1] : vector<8x8xf32> to vector<8xf32>
    %58 = vector.shape_cast %57 : vector<8xf32> to vector<8x1xf32>
    %59 = tpu.reciprocal %58 {approx = true} : vector<8x1xf32> -> vector<8x1xf32>
    %60 = vector.broadcast %59 : vector<8x1xf32> to vector<8x8xf32>
    %61 = arith.mulf %56, %60 : vector<8x8xf32>
    %cst_30 = arith.constant dense<0.000000e+00> : vector<8x8xf32>
    %62 = tpu.matmul %61, %46, %cst_30 {dimension_numbers = #tpu.dot_dimension_numbers<[1], [0], [0], [1], [0, 0, 1, 1], [], []>} : vector<8x8xf32>, vector<8x8xf32>, vector<8x8xf32> -> vector<8x8xf32>
    %c0_31 = arith.constant 0 : index
    %c8 = arith.constant 8 : index
    %63 = vector.load %arg13[%c0_31, %c8] : memref<8x32xf32, #tpu.memory_space<vmem>>, vector<8x8xf32>
    tpu.vector_store %arg13[%c0_31, %c8], %62 {strides = array<i32>} : memref<8x32xf32, #tpu.memory_space<vmem>>, vector<8x8xf32>,
    %64 = vector.extract_strided_slice %8 {offsets = [0, 16], sizes = [8, 8], strides = [1, 1]} : vector<8x32xf32> to vector<8x8xf32>
    %65 = vector.extract_strided_slice %16 {offsets = [0, 16], sizes = [8, 8], strides = [1, 1]} : vector<8x32xf32> to vector<8x8xf32>
    %66 = vector.extract_strided_slice %17 {offsets = [0, 16], sizes = [8, 8], strides = [1, 1]} : vector<8x32xf32> to vector<8x8xf32>
    %cst_32 = arith.constant dense<0.000000e+00> : vector<8x8xf32>
    %67 = tpu.matmul %64, %65, %cst_32 {dimension_numbers = #tpu.dot_dimension_numbers<[1], [1], [0], [0], [0, 0, 1, 0], [], []>} : vector<8x8xf32>, vector<8x8xf32>, vector<8x8xf32> -> vector<8x8xf32>
    %cst_33 = arith.constant 0.353553385 : f32
    %68 = vector.broadcast %cst_33 : f32 to vector<8x8xf32>
    %69 = arith.mulf %67, %68 : vector<8x8xf32>
    %cst_34 = arith.constant -1.000000e+30 : f32
    %70 = vector.broadcast %cst_34 : f32 to vector<8x8xf32>
    %71 = arith.select %23, %69, %70 : vector<8x8xi1>, vector<8x8xf32>
    %cst_35 = arith.constant dense<0xFF800000> : vector<8xf32>
    %72 = vector.multi_reduction <maximumf>, %71, %cst_35 [1] : vector<8x8xf32> to vector<8xf32>
    %73 = vector.shape_cast %72 : vector<8xf32> to vector<8x1xf32>
    %74 = vector.broadcast %73 : vector<8x1xf32> to vector<8x8xf32>
    %75 = arith.subf %71, %74 : vector<8x8xf32>
    %76 = math.exp %75 : vector<8x8xf32>
    %cst_36 = arith.constant dense<0.000000e+00> : vector<8xf32>
    %77 = vector.multi_reduction <add>, %76, %cst_36 [1] : vector<8x8xf32> to vector<8xf32>
    %78 = vector.shape_cast %77 : vector<8xf32> to vector<8x1xf32>
    %79 = tpu.reciprocal %78 {approx = true} : vector<8x1xf32> -> vector<8x1xf32>
    %80 = vector.broadcast %79 : vector<8x1xf32> to vector<8x8xf32>
    %81 = arith.mulf %76, %80 : vector<8x8xf32>
    %cst_37 = arith.constant dense<0.000000e+00> : vector<8x8xf32>
    %82 = tpu.matmul %81, %66, %cst_37 {dimension_numbers = #tpu.dot_dimension_numbers<[1], [0], [0], [1], [0, 0, 1, 1], [], []>} : vector<8x8xf32>, vector<8x8xf32>, vector<8x8xf32> -> vector<8x8xf32>
    %c0_38 = arith.constant 0 : index
    %c16 = arith.constant 16 : index
    %83 = vector.load %arg13[%c0_38, %c16] : memref<8x32xf32, #tpu.memory_space<vmem>>, vector<8x8xf32>
    tpu.vector_store %arg13[%c0_38, %c16], %82 {strides = array<i32>} : memref<8x32xf32, #tpu.memory_space<vmem>>, vector<8x8xf32>,
    %84 = vector.extract_strided_slice %8 {offsets = [0, 24], sizes = [8, 8], strides = [1, 1]} : vector<8x32xf32> to vector<8x8xf32>
    %85 = vector.extract_strided_slice %16 {offsets = [0, 24], sizes = [8, 8], strides = [1, 1]} : vector<8x32xf32> to vector<8x8xf32>
    %86 = vector.extract_strided_slice %17 {offsets = [0, 24], sizes = [8, 8], strides = [1, 1]} : vector<8x32xf32> to vector<8x8xf32>
    %cst_39 = arith.constant dense<0.000000e+00> : vector<8x8xf32>
    %87 = tpu.matmul %84, %85, %cst_39 {dimension_numbers = #tpu.dot_dimension_numbers<[1], [1], [0], [0], [0, 0, 1, 0], [], []>} : vector<8x8xf32>, vector<8x8xf32>, vector<8x8xf32> -> vector<8x8xf32>
    %cst_40 = arith.constant 0.353553385 : f32
    %88 = vector.broadcast %cst_40 : f32 to vector<8x8xf32>
    %89 = arith.mulf %87, %88 : vector<8x8xf32>
    %cst_41 = arith.constant -1.000000e+30 : f32
    %90 = vector.broadcast %cst_41 : f32 to vector<8x8xf32>
    %91 = arith.select %23, %89, %90 : vector<8x8xi1>, vector<8x8xf32>
    %cst_42 = arith.constant dense<0xFF800000> : vector<8xf32>
    %92 = vector.multi_reduction <maximumf>, %91, %cst_42 [1] : vector<8x8xf32> to vector<8xf32>
    %93 = vector.shape_cast %92 : vector<8xf32> to vector<8x1xf32>
    %94 = vector.broadcast %93 : vector<8x1xf32> to vector<8x8xf32>
    %95 = arith.subf %91, %94 : vector<8x8xf32>
    %96 = math.exp %95 : vector<8x8xf32>
    %cst_43 = arith.constant dense<0.000000e+00> : vector<8xf32>
    %97 = vector.multi_reduction <add>, %96, %cst_43 [1] : vector<8x8xf32> to vector<8xf32>
    %98 = vector.shape_cast %97 : vector<8xf32> to vector<8x1xf32>
    %99 = tpu.reciprocal %98 {approx = true} : vector<8x1xf32> -> vector<8x1xf32>
    %100 = vector.broadcast %99 : vector<8x1xf32> to vector<8x8xf32>
    %101 = arith.mulf %96, %100 : vector<8x8xf32>
    %cst_44 = arith.constant dense<0.000000e+00> : vector<8x8xf32>
    %102 = tpu.matmul %101, %86, %cst_44 {dimension_numbers = #tpu.dot_dimension_numbers<[1], [0], [0], [1], [0, 0, 1, 1], [], []>} : vector<8x8xf32>, vector<8x8xf32>, vector<8x8xf32> -> vector<8x8xf32>
    %c0_45 = arith.constant 0 : index
    %c24 = arith.constant 24 : index
    %103 = vector.load %arg13[%c0_45, %c24] : memref<8x32xf32, #tpu.memory_space<vmem>>, vector<8x8xf32>
    tpu.vector_store %arg13[%c0_45, %c24], %102 {strides = array<i32>} : memref<8x32xf32, #tpu.memory_space<vmem>>, vector<8x8xf32>,
    %c0_46 = arith.constant 0 : index
    %c0_47 = arith.constant 0 : index
    %104 = vector.load %arg13[%c0_46, %c0_47] : memref<8x32xf32, #tpu.memory_space<vmem>>, vector<8x32xf32>
    %c0_48 = arith.constant 0 : index
    %c0_49 = arith.constant 0 : index
    %105 = vector.load %arg8[%c0_48, %c0_49] : memref<32x32xf32, #tpu.memory_space<vmem>>, vector<32x32xf32>
    %cst_50 = arith.constant dense<0.000000e+00> : vector<8x32xf32>
    %106 = tpu.matmul %104, %105, %cst_50 {dimension_numbers = #tpu.dot_dimension_numbers<[1], [0], [0], [1], [0, 0, 1, 1], [], []>} : vector<8x32xf32>, vector<32x32xf32>, vector<8x32xf32> -> vector<8x32xf32>
    %107 = arith.addf %1, %106 : vector<8x32xf32>
    %c0_51 = arith.constant 0 : index
    %c0_52 = arith.constant 0 : index
    %108 = vector.load %arg9[%c0_51, %c0_52] : memref<1x32xf32, #tpu.memory_space<vmem>>, vector<1x32xf32>
    %109 = vector.broadcast %108 : vector<1x32xf32> to vector<8x32xf32>
    %110 = arith.addf %107, %109 : vector<8x32xf32>
    %cst_53 = arith.constant dense<0.000000e+00> : vector<8xf32>
    %111 = vector.multi_reduction <add>, %110, %cst_53 [1] : vector<8x32xf32> to vector<8xf32>
    %112 = vector.shape_cast %111 : vector<8xf32> to vector<8x1xf32>
    %cst_54 = arith.constant 3.200000e+01 : f32
    %113 = vector.broadcast %cst_54 : f32 to vector<8x1xf32>
    %114 = arith.divf %112, %113 : vector<8x1xf32>
    %115 = vector.broadcast %114 : vector<8x1xf32> to vector<8x32xf32>
    %116 = arith.subf %110, %115 : vector<8x32xf32>
    %117 = arith.mulf %116, %116 : vector<8x32xf32>
    %cst_55 = arith.constant dense<0.000000e+00> : vector<8xf32>
    %118 = vector.multi_reduction <add>, %117, %cst_55 [1] : vector<8x32xf32> to vector<8xf32>
    %119 = vector.shape_cast %118 : vector<8xf32> to vector<8x1xf32>
    %cst_56 = arith.constant 3.200000e+01 : f32
    %120 = vector.broadcast %cst_56 : f32 to vector<8x1xf32>
    %121 = arith.divf %119, %120 : vector<8x1xf32>
    %cst_57 = arith.constant 9.99999974E-6 : f32
    %122 = vector.broadcast %cst_57 : f32 to vector<8x1xf32>
    %123 = arith.addf %121, %122 : vector<8x1xf32>
    %124 = math.rsqrt %123 : vector<8x1xf32>
    %125 = vector.broadcast %124 : vector<8x1xf32> to vector<8x32xf32>
    %126 = arith.mulf %116, %125 : vector<8x32xf32>
    %c0_58 = arith.constant 0 : index
    %c0_59 = arith.constant 0 : index
    %127 = vector.load %arg10[%c0_58, %c0_59] : memref<1x32xf32, #tpu.memory_space<vmem>>, vector<1x32xf32>
    %128 = vector.broadcast %127 : vector<1x32xf32> to vector<8x32xf32>
    %129 = arith.mulf %126, %128 : vector<8x32xf32>
    %c0_60 = arith.constant 0 : index
    %c0_61 = arith.constant 0 : index
    %130 = vector.load %arg11[%c0_60, %c0_61] : memref<1x32xf32, #tpu.memory_space<vmem>>, vector<1x32xf32>
    %131 = vector.broadcast %130 : vector<1x32xf32> to vector<8x32xf32>
    %132 = arith.addf %129, %131 : vector<8x32xf32>
    %c0_62 = arith.constant 0 : index
    %c0_63 = arith.constant 0 : index
    %c0_64 = arith.constant 0 : index
    %133 = vector.load %arg12[%c0_62, %c0_63, %c0_64] : memref<1x8x32xf32, #tpu.memory_space<vmem>>, vector<1x8x32xf32>
    %134 = vector.shape_cast %133 : vector<1x8x32xf32> to vector<8x32xf32>
    %135 = vector.shape_cast %132 : vector<8x32xf32> to vector<1x8x32xf32>
    tpu.vector_store %arg12[%c0_62, %c0_63, %c0_64], %135 {strides = array<i32>} : memref<1x8x32xf32, #tpu.memory_space<vmem>>, vector<1x8x32xf32>,
    return
  }
  func.func @transform_0(%arg0: i32, %arg1: i32) -> (i32, i32, i32) {
    %c0_i32 = arith.constant 0 : i32
    %c0_i32_0 = arith.constant 0 : i32
    return %arg0, %arg1, %c0_i32 : i32, i32, i32
  }
  func.func @transform_1(%arg0: i32, %arg1: i32) -> (i32, i32, i32) {
    %c0_i32 = arith.constant 0 : i32
    %c0_i32_0 = arith.constant 0 : i32
    %c0_i32_1 = arith.constant 0 : i32
    return %arg0, %c0_i32, %c0_i32_0 : i32, i32, i32
  }
  func.func @transform_2(%arg0: i32, %arg1: i32) -> (i32, i32) {
    %c0_i32 = arith.constant 0 : i32
    %c0_i32_0 = arith.constant 0 : i32
    %c0_i32_1 = arith.constant 0 : i32
    return %c0_i32, %c0_i32_0 : i32, i32
  }
  func.func @transform_3(%arg0: i32, %arg1: i32) -> (i32, i32) {
    %c0_i32 = arith.constant 0 : i32
    %c0_i32_0 = arith.constant 0 : i32
    %c0_i32_1 = arith.constant 0 : i32
    return %c0_i32, %c0_i32_0 : i32, i32
  }
  func.func @transform_4(%arg0: i32, %arg1: i32) -> (i32, i32) {
    %c0_i32 = arith.constant 0 : i32
    %c0_i32_0 = arith.constant 0 : i32
    %c0_i32_1 = arith.constant 0 : i32
    return %c0_i32, %c0_i32_0 : i32, i32
  }
  func.func @transform_5(%arg0: i32, %arg1: i32) -> (i32, i32) {
    %c0_i32 = arith.constant 0 : i32
    %c0_i32_0 = arith.constant 0 : i32
    %c0_i32_1 = arith.constant 0 : i32
    return %c0_i32, %c0_i32_0 : i32, i32
  }
  func.func @transform_6(%arg0: i32, %arg1: i32) -> (i32, i32) {
    %c0_i32 = arith.constant 0 : i32
    %c0_i32_0 = arith.constant 0 : i32
    %c0_i32_1 = arith.constant 0 : i32
    return %c0_i32, %c0_i32_0 : i32, i32
  }
  func.func @transform_7(%arg0: i32, %arg1: i32) -> (i32, i32) {
    %c0_i32 = arith.constant 0 : i32
    %c0_i32_0 = arith.constant 0 : i32
    %c0_i32_1 = arith.constant 0 : i32
    return %c0_i32, %c0_i32_0 : i32, i32
  }
  func.func @transform_8(%arg0: i32, %arg1: i32) -> (i32, i32) {
    %c0_i32 = arith.constant 0 : i32
    %c0_i32_0 = arith.constant 0 : i32
    %c0_i32_1 = arith.constant 0 : i32
    return %c0_i32, %c0_i32_0 : i32, i32
  }
  func.func @transform_9(%arg0: i32, %arg1: i32) -> (i32, i32) {
    %c0_i32 = arith.constant 0 : i32
    %c0_i32_0 = arith.constant 0 : i32
    %c0_i32_1 = arith.constant 0 : i32
    return %c0_i32, %c0_i32_0 : i32, i32
  }
  func.func @transform_10(%arg0: i32, %arg1: i32) -> (i32, i32, i32) {
    %c0_i32 = arith.constant 0 : i32
    %c0_i32_0 = arith.constant 0 : i32
    return %arg0, %arg1, %c0_i32 : i32, i32, i32
  }
}

module attributes {stable_mosaic.version = 11 : i64} {
  func.func @_ln_kernel(%arg0: i32, %arg1: memref<16x32xf32, #tpu.memory_space<vmem>>, %arg2: memref<1x32xf32, #tpu.memory_space<vmem>>, %arg3: memref<1x32xf32, #tpu.memory_space<vmem>>, %arg4: memref<16x32xf32, #tpu.memory_space<vmem>>) attributes {dimension_semantics = [#tpu.dimension_semantics<parallel>], iteration_bounds = array<i64: 1>, scalar_prefetch = 0 : i64, scratch_operands = 0 : i64, tpu.core_type = #tpu.core_type<tc>, window_params = [{transform_indices = @transform_0, window_bounds = array<i64: 16, 32>}, {pipeline_mode = #tpu.pipeline_mode<synchronous>, transform_indices = @transform_1, window_bounds = array<i64: 1, 32>}, {pipeline_mode = #tpu.pipeline_mode<synchronous>, transform_indices = @transform_2, window_bounds = array<i64: 1, 32>}, {transform_indices = @transform_3, window_bounds = array<i64: 16, 32>}]} {
    %c0 = arith.constant 0 : index
    %c0_0 = arith.constant 0 : index
    %0 = vector.load %arg1[%c0, %c0_0] : memref<16x32xf32, #tpu.memory_space<vmem>>, vector<16x32xf32>
    %cst = arith.constant dense<0.000000e+00> : vector<16xf32>
    %1 = vector.multi_reduction <add>, %0, %cst [1] : vector<16x32xf32> to vector<16xf32>
    %2 = vector.shape_cast %1 : vector<16xf32> to vector<16x1xf32>
    %cst_1 = arith.constant 3.200000e+01 : f32
    %3 = vector.broadcast %cst_1 : f32 to vector<16x1xf32>
    %4 = arith.divf %2, %3 : vector<16x1xf32>
    %5 = vector.broadcast %4 : vector<16x1xf32> to vector<16x32xf32>
    %6 = arith.subf %0, %5 : vector<16x32xf32>
    %7 = arith.mulf %6, %6 : vector<16x32xf32>
    %cst_2 = arith.constant dense<0.000000e+00> : vector<16xf32>
    %8 = vector.multi_reduction <add>, %7, %cst_2 [1] : vector<16x32xf32> to vector<16xf32>
    %9 = vector.shape_cast %8 : vector<16xf32> to vector<16x1xf32>
    %cst_3 = arith.constant 3.200000e+01 : f32
    %10 = vector.broadcast %cst_3 : f32 to vector<16x1xf32>
    %11 = arith.divf %9, %10 : vector<16x1xf32>
    %cst_4 = arith.constant 9.99999974E-6 : f32
    %12 = vector.broadcast %cst_4 : f32 to vector<16x1xf32>
    %13 = arith.addf %11, %12 : vector<16x1xf32>
    %14 = math.rsqrt %13 : vector<16x1xf32>
    %15 = vector.broadcast %14 : vector<16x1xf32> to vector<16x32xf32>
    %16 = arith.mulf %6, %15 : vector<16x32xf32>
    %c0_5 = arith.constant 0 : index
    %c0_6 = arith.constant 0 : index
    %17 = vector.load %arg2[%c0_5, %c0_6] : memref<1x32xf32, #tpu.memory_space<vmem>>, vector<1x32xf32>
    %18 = vector.broadcast %17 : vector<1x32xf32> to vector<16x32xf32>
    %19 = arith.mulf %16, %18 : vector<16x32xf32>
    %c0_7 = arith.constant 0 : index
    %c0_8 = arith.constant 0 : index
    %20 = vector.load %arg3[%c0_7, %c0_8] : memref<1x32xf32, #tpu.memory_space<vmem>>, vector<1x32xf32>
    %21 = vector.broadcast %20 : vector<1x32xf32> to vector<16x32xf32>
    %22 = arith.addf %19, %21 : vector<16x32xf32>
    %c0_9 = arith.constant 0 : index
    %c0_10 = arith.constant 0 : index
    %23 = vector.load %arg4[%c0_9, %c0_10] : memref<16x32xf32, #tpu.memory_space<vmem>>, vector<16x32xf32>
    tpu.vector_store %arg4[%c0_9, %c0_10], %22 {strides = array<i32>} : memref<16x32xf32, #tpu.memory_space<vmem>>, vector<16x32xf32>,
    return
  }
  func.func @transform_0(%arg0: i32) -> (i32, i32) {
    %c0_i32 = arith.constant 0 : i32
    %c0_i32_0 = arith.constant 0 : i32
    return %arg0, %c0_i32 : i32, i32
  }
  func.func @transform_1(%arg0: i32) -> (i32, i32) {
    %c0_i32 = arith.constant 0 : i32
    %c0_i32_0 = arith.constant 0 : i32
    %c0_i32_1 = arith.constant 0 : i32
    return %c0_i32, %c0_i32_0 : i32, i32
  }
  func.func @transform_2(%arg0: i32) -> (i32, i32) {
    %c0_i32 = arith.constant 0 : i32
    %c0_i32_0 = arith.constant 0 : i32
    %c0_i32_1 = arith.constant 0 : i32
    return %c0_i32, %c0_i32_0 : i32, i32
  }
  func.func @transform_3(%arg0: i32) -> (i32, i32) {
    %c0_i32 = arith.constant 0 : i32
    %c0_i32_0 = arith.constant 0 : i32
    return %arg0, %c0_i32 : i32, i32
  }
}

</mosaic_0001>

<llo_original>
// kernel: decoder_forward.9
$region0: #{decoder_forward.9}
  #allocation0 [shape = 'u32[]', space=smem, size = 0x4, offset = 0x4, fixed_abs, tag = 'smem constant byte address 0x4 - core index']
  #allocation1 [shape = 'u32[144,128]{1,0:T(1,128)}', space=vmem, size = 0x12000, scoped, tag = 'internal scratch']
  %s0 = inlined_call_operand.vmem [shape: f32[16,32], index: 0, kind: input, shape index: {}]
  %s1 = inlined_call_operand.vmem [shape: f32[32,64], index: 1, kind: input, shape index: {}]
  %s2 = inlined_call_operand.vmem [shape: f32[1,64], index: 2, kind: input, shape index: {}]
  %s3 = inlined_call_operand.vmem [shape: f32[64,32], index: 3, kind: input, shape index: {}]
  %s4 = inlined_call_operand.vmem [shape: f32[1,32], index: 4, kind: input, shape index: {}]
  %s5 = inlined_call_operand.vmem [shape: f32[1,32], index: 5, kind: input, shape index: {}]
  %s6 = inlined_call_operand.vmem [shape: f32[1,32], index: 6, kind: input, shape index: {}]
  %s7 = inlined_call_operand.vmem [shape: f32[16,32], index: 7, kind: output, shape index: {}]
  %s8 = sld [smem:[#allocation0]]
  $region38: #{decoder_forward.9} parent=0
    _
  %s10 = ssub.s32 1, %s8
  %s11 = scalar_select 0, %s10, %s8
  // Predicated region
  $region2: #{decoder_forward.9} parent=0 // pred_check
    _
  $region3: #{decoder_forward.9} parent=0 // pred_check_branch
    %13 = sbr.rel (0) target = $region5
  $region4: #{decoder_forward.9} parent=0 // pred_region
    _
  $region5: #{decoder_forward.9} parent=0 // pred_fallthru
    _
  // Predicated region
  $region6: #{decoder_forward.9} parent=0 // pred_check
    _
  $region7: #{decoder_forward.9} parent=0 // pred_check_branch
    %15 = sbr.rel (0) target = $region9
  $region8: #{decoder_forward.9} parent=0 // pred_region
    _
  $region9: #{decoder_forward.9} parent=0 // pred_fallthru
    _
  // Predicated region
  $region10: #{decoder_forward.9} parent=0 // pred_check
    _
  $region11: #{decoder_forward.9} parent=0 // pred_check_branch
    %17 = sbr.rel (0) target = $region13
  $region12: #{decoder_forward.9} parent=0 // pred_region
    _
  $region13: #{decoder_forward.9} parent=0 // pred_fallthru
    _
  // Predicated region
  $region14: #{decoder_forward.9} parent=0 // pred_check
    _
  $region15: #{decoder_forward.9} parent=0 // pred_check_branch
    %19 = sbr.rel (0) target = $region17
  $region16: #{decoder_forward.9} parent=0 // pred_region
    _
  $region17: #{decoder_forward.9} parent=0 // pred_fallthru
    _
  // Predicated region
  $region18: #{decoder_forward.9} parent=0 // pred_check
    _
  $region19: #{decoder_forward.9} parent=0 // pred_check_branch
    %21 = sbr.rel (0) target = $region21
  $region20: #{decoder_forward.9} parent=0 // pred_region
    _
  $region21: #{decoder_forward.9} parent=0 // pred_fallthru
    _
  // Predicated region
  $region22: #{decoder_forward.9} parent=0 // pred_check
    _
  $region23: #{decoder_forward.9} parent=0 // pred_check_branch
    %23 = sbr.rel (0) target = $region25
  $region24: #{decoder_forward.9} parent=0 // pred_region
    _
  $region25: #{decoder_forward.9} parent=0 // pred_fallthru
    _
  // Predicated region
  $region26: #{decoder_forward.9} parent=0 // pred_check
    _
  $region27: #{decoder_forward.9} parent=0 // pred_check_branch
    %25 = sbr.rel (0) target = $region29
  $region28: #{decoder_forward.9} parent=0 // pred_region
    _
  $region29: #{decoder_forward.9} parent=0 // pred_fallthru
    _
  %v26 = vld [vmem:[%s0] sm:$0xff]
  %v27 = vld [vmem:[%s0 + $0x8] sm:$0xff]
  %v28 = vld [vmem:[%s1] sm:$0xff]
  %v29 = vld [vmem:[%s1 + $0x8] sm:$0xff]
  %v30 = vld [vmem:[%s1 + $0x10] sm:$0xff]
  %v31 = vld [vmem:[%s1 + $0x18] sm:$0xff]
  %v32 = vld [vmem:[%s2] sm:$0x1]
  %v34 = vlaneseq
  %v35 = vshrl.u32 %v34, 7
  %v36 = vsub.s32 0, %v35
  %v37 = vrot.slane %v32, %v36
  %vm39 = vcmask 261120
  %v41 = vsel %vm39, %v26, 0
  %v44 = vsel %vm39, %v27, 0
  %46 = vmatprep.subr.mxu0 0.0
  %47 = vmatpush1.msra.mxu0 0.0
  %48 = vmatprep.subr.mxu0 0.0
  %49 = vmatpush1.msra.mxu0 0.0
  %50 = vmatprep.subr.mxu0 0.0
  %51 = vmatpush1.msra.mxu0 0.0
  %52 = vmatprep.subr.mxu0 0.0
  %53 = vmatpush1.msra.mxu0 0.0
  %54 = vmatprep.subr.mxu0 0.0
  %55 = vmatpush1.msra.mxu0 0.0
  %56 = vmatprep.subr.mxu0 0.0
  %57 = vmatpush1.msra.mxu0 0.0
  %58 = vmatprep.subr.mxu0 0.0
  %59 = vmatpush1.msra.mxu0 0.0
  %60 = vmatprep.subr.mxu0 0.0
  %61 = vmatpush1.msra.mxu0 0.0
  %62 = vmatprep.subr.mxu0 0.0
  %63 = vmatpush1.msra.mxu0 0.0
  %64 = vmatprep.subr.mxu0 0.0
  %65 = vmatpush1.msra.mxu0 0.0
  %66 = vmatprep.subr.mxu0 0.0
  %67 = vmatpush1.msra.mxu0 0.0
  %68 = vmatprep.subr.mxu0 0.0
  %69 = vmatpush1.msra.mxu0 0.0
  %70 = vmatprep.subr.mxu0 0.0
  %71 = vmatpush1.msra.mxu0 %v31
  %72 = vmatprep.subr.mxu0 0.0
  %73 = vmatpush1.msra.mxu0 %v30
  %74 = vmatprep.subr.mxu0 0.0
  %75 = vmatpush1.msra.mxu0 %v29
  %76 = vmatprep.subr.mxu0 0.0
  %77 = vmatpush1.msra.mxu0 %v28
  %78 = vmatprep.subr.mxu0 0.0
  %79 = vmatpush2.msra.mxu0 0.0
  %80 = vmatprep.subr.mxu0 0.0
  %81 = vmatpush2.msra.mxu0 0.0
  %82 = vmatprep.subr.mxu0 0.0
  %83 = vmatpush2.msra.mxu0 0.0
  %84 = vmatprep.subr.mxu0 0.0
  %85 = vmatpush2.msra.mxu0 0.0
  %86 = vmatprep.subr.mxu0 0.0
  %87 = vmatpush2.msra.mxu0 0.0
  %88 = vmatprep.subr.mxu0 0.0
  %89 = vmatpush2.msra.mxu0 0.0
  %90 = vmatprep.subr.mxu0 0.0
  %91 = vmatpush2.msra.mxu0 0.0
  %92 = vmatprep.subr.mxu0 0.0
  %93 = vmatpush2.msra.mxu0 0.0
  %94 = vmatprep.subr.mxu0 0.0
  %95 = vmatpush2.msra.mxu0 0.0
  %96 = vmatprep.subr.mxu0 0.0
  %97 = vmatpush2.msra.mxu0 0.0
  %98 = vmatprep.subr.mxu0 0.0
  %99 = vmatpush2.msra.mxu0 0.0
  %100 = vmatprep.subr.mxu0 0.0
  %101 = vmatpush2.msra.mxu0 0.0
  %102 = vmatprep.subr.mxu0 0.0
  %103 = vmatpush2.msra.mxu0 0.0
  %104 = vmatprep.subr.mxu0 0.0
  %105 = vmatpush2.msra.mxu0 0.0
  %106 = vmatprep.subr.mxu0 0.0
  %107 = vmatpush2.msra.mxu0 0.0
  %108 = vmatprep.subr.mxu0 0.0
  %109 = vmatpush2.msra.mxu0 0.0
  %110 = vmatprep.mubr.f32.mxu0 0.0
  %111 = vmatmul.mubr.f32.gmra.mxu0 %v41
  %v112 = vpop.f32.mrf.mxu0
  %v113 = vadd.f32 %v37, %v112
  %v114 = vpop.f32.mrf.mxu0
  %115 = vmatprep.mubr.f32.mxu0 0.0
  %116 = vmatmul.mubr.f32.gmra.mxu0 %v44
  %v117 = vpop.f32.mrf.mxu0
  %v118 = vadd.f32 %v37, %v117
  %v119 = vpop.f32.mrf.mxu0
  %120 = vdwg.mxu0
  %v121 = vmax.f32 %v113, 0.0
  %v122 = vmax.f32 %v118, 0.0
  %v123 = vld [vmem:[%s3] sm:$0xff]
  %v124 = vld [vmem:[%s3 + $0x8] sm:$0xff]
  %v125 = vld [vmem:[%s3 + $0x10] sm:$0xff]
  %v126 = vld [vmem:[%s3 + $0x18] sm:$0xff]
  %v127 = vld [vmem:[%s3 + $0x20] sm:$0xff]
  %v128 = vld [vmem:[%s3 + $0x28] sm:$0xff]
  %v129 = vld [vmem:[%s3 + $0x30] sm:$0xff]
  %v130 = vld [vmem:[%s3 + $0x38] sm:$0xff]
  %vm131 = vcmask 523264
  %v133 = vsel %vm131, %v121, 0
  %v136 = vsel %vm131, %v122, 0
  %138 = vmatprep.subr.mxu0 0.0
  %139 = vmatpush1.msra.mxu0 0.0
  %140 = vmatprep.subr.mxu0 0.0
  %141 = vmatpush1.msra.mxu0 0.0
  %142 = vmatprep.subr.mxu0 0.0
  %143 = vmatpush1.msra.mxu0 0.0
  %144 = vmatprep.subr.mxu0 0.0
  %145 = vmatpush1.msra.mxu0 0.0
  %146 = vmatprep.subr.mxu0 0.0
  %147 = vmatpush1.msra.mxu0 0.0
  %148 = vmatprep.subr.mxu0 0.0
  %149 = vmatpush1.msra.mxu0 0.0
  %150 = vmatprep.subr.mxu0 0.0
  %151 = vmatpush1.msra.mxu0 0.0
  %152 = vmatprep.subr.mxu0 0.0
  %153 = vmatpush1.msra.mxu0 0.0
  %154 = vmatprep.subr.mxu0 0.0
  %155 = vmatpush1.msra.mxu0 %v130
  %156 = vmatprep.subr.mxu0 0.0
  %157 = vmatpush1.msra.mxu0 %v129
  %158 = vmatprep.subr.mxu0 0.0
  %159 = vmatpush1.msra.mxu0 %v128
  %160 = vmatprep.subr.mxu0 0.0
  %161 = vmatpush1.msra.mxu0 %v127
  %162 = vmatprep.subr.mxu0 0.0
  %163 = vmatpush1.msra.mxu0 %v126
  %164 = vmatprep.subr.mxu0 0.0
  %165 = vmatpush1.msra.mxu0 %v125
  %166 = vmatprep.subr.mxu0 0.0
  %167 = vmatpush1.msra.mxu0 %v124
  %168 = vmatprep.subr.mxu0 0.0
  %169 = vmatpush1.msra.mxu0 %v123
  %170 = vmatprep.subr.mxu0 0.0
  %171 = vmatpush2.msra.mxu0 0.0
  %172 = vmatprep.subr.mxu0 0.0
  %173 = vmatpush2.msra.mxu0 0.0
  %174 = vmatprep.subr.mxu0 0.0
  %175 = vmatpush2.msra.mxu0 0.0
  %176 = vmatprep.subr.mxu0 0.0
  %177 = vmatpush2.msra.mxu0 0.0
  %178 = vmatprep.subr.mxu0 0.0
  %179 = vmatpush2.msra.mxu0 0.0
  %180 = vmatprep.subr.mxu0 0.0
  %181 = vmatpush2.msra.mxu0 0.0
  %182 = vmatprep.subr.mxu0 0.0
  %183 = vmatpush2.msra.mxu0 0.0
  %184 = vmatprep.subr.mxu0 0.0
  %185 = vmatpush2.msra.mxu0 0.0
  %186 = vmatprep.subr.mxu0 0.0
  %187 = vmatpush2.msra.mxu0 0.0
  %188 = vmatprep.subr.mxu0 0.0
  %189 = vmatpush2.msra.mxu0 0.0
  %190 = vmatprep.subr.mxu0 0.0
  %191 = vmatpush2.msra.mxu0 0.0
  %192 = vmatprep.subr.mxu0 0.0
  %193 = vmatpush2.msra.mxu0 0.0
  %194 = vmatprep.subr.mxu0 0.0
  %195 = vmatpush2.msra.mxu0 0.0
  %196 = vmatprep.subr.mxu0 0.0
  %197 = vmatpush2.msra.mxu0 0.0
  %198 = vmatprep.subr.mxu0 0.0
  %199 = vmatpush2.msra.mxu0 0.0
  %200 = vmatprep.subr.mxu0 0.0
  %201 = vmatpush2.msra.mxu0 0.0
  %202 = vmatprep.mubr.f32.mxu0 0.0
  %203 = vmatmul.mubr.f32.gmra.mxu0 %v133
  %v204 = vpop.f32.mrf.mxu0
  %v205 = vadd.f32 0.0, %v204
  %v206 = vpop.f32.mrf.mxu0
  %207 = vmatprep.mubr.f32.mxu0 0.0
  %208 = vmatmul.mubr.f32.gmra.mxu0 %v136
  %v209 = vpop.f32.mrf.mxu0
  %v210 = vadd.f32 0.0, %v209
  %v211 = vpop.f32.mrf.mxu0
  %212 = vdwg.mxu0
  %v213 = vadd.f32 %v26, %v205
  %v214 = vadd.f32 %v27, %v210
  %v215 = vld [vmem:[%s4] sm:$0x1]
  %v217 = vlaneseq
  %v218 = vshrl.u32 %v217, 7
  %v219 = vsub.s32 0, %v218
  %v220 = vrot.slane %v215, %v219
  %v222 = vadd.f32 %v213, %v220
  %v223 = vadd.f32 %v214, %v220
  %v224 = vsel %vm39, %v222, 0.0
  %225 = vadd.xlane.f32.xlu0 %v224
  %v226 = vpop.xlane.xlu0 %225
  %v227 = vsel %vm39, %v223, 0.0
  %228 = vadd.xlane.f32.xlu0 %v227
  %v229 = vpop.xlane.xlu0 %228
  %v230 = vrcp.pop 32.0
  %v231 = vmul.f32 %v226, %v230
  %v232 = vmul.f32 %v229, %v230
  %v233 = vsub.f32 %v222, %v231
  %v234 = vsub.f32 %v223, %v232
  %v235 = vmul.f32 %v233, %v233
  %v236 = vmul.f32 %v234, %v234
  %v237 = vsel %vm39, %v235, 0.0
  %238 = vadd.xlane.f32.xlu0 %v237
  %v239 = vpop.xlane.xlu0 %238
  %v240 = vsel %vm39, %v236, 0.0
  %241 = vadd.xlane.f32.xlu0 %v240
  %v242 = vpop.xlane.xlu0 %241
  %v243 = vmul.f32 %v239, %v230
  %v244 = vmul.f32 %v242, %v230
  %v245 = vadd.f32 %v243, 1e-05
  %v246 = vadd.f32 %v244, 1e-05
  %v247 = vrsqrt.pop %v245
  %v248 = vrsqrt.pop %v246
  %v249 = vmul.f32 %v233, %v247
  %v250 = vmul.f32 %v234, %v248
  %v251 = vld [vmem:[%s5] sm:$0x1]
  %v253 = vlaneseq
  %v254 = vshrl.u32 %v253, 7
  %v255 = vsub.s32 0, %v254
  %v256 = vrot.slane %v251, %v255
  %v258 = vmul.f32 %v249, %v256
  %v259 = vmul.f32 %v250, %v256
  %v260 = vld [vmem:[%s6] sm:$0x1]
  %v262 = vlaneseq
  %v263 = vshrl.u32 %v262, 7
  %v264 = vsub.s32 0, %v263
  %v265 = vrot.slane %v260, %v264
  %v267 = vadd.f32 %v258, %v265
  %v268 = vadd.f32 %v259, %v265
  %269 = vst.msk [vmem:[%s7] sm:$0xff] %vm39, %v267
  %270 = vst.msk [vmem:[%s7 + $0x8] sm:$0xff] %vm39, %v268
  // Predicated region
  $region30: #{decoder_forward.9} parent=0 // pred_check
    _
  $region31: #{decoder_forward.9} parent=0 // pred_check_branch
    %272 = sbr.rel (0) target = $region33
  $region32: #{decoder_forward.9} parent=0 // pred_region
    _
  $region33: #{decoder_forward.9} parent=0 // pred_fallthru
    _
  // Predicated region
  $region34: #{decoder_forward.9} parent=0 // pred_check
    _
  $region35: #{decoder_forward.9} parent=0 // pred_check_branch
    %274 = sbr.rel (0) target = $region37
  $region36: #{decoder_forward.9} parent=0 // pred_region
    _
  $region37: #{decoder_forward.9} parent=0 // pred_fallthru
    _

// kernel: decoder_forward.8
$region0: #{decoder_forward.8}
  #allocation0 [shape = 'u32[]', space=smem, size = 0x4, offset = 0x4, fixed_abs, tag = 'smem constant byte address 0x4 - core index']
  #allocation1 [shape = 'u32[144,128]{1,0:T(1,128)}', space=vmem, size = 0x12000, scoped, tag = 'internal scratch']
  #allocation2 [shape = 'f32[8,32]{1,0:T(8,128)}', space=vmem, size = 0x1000, scoped, tag = 'scratch operand']
  %s0 = inlined_call_operand.vmem [shape: f32[2,8,32], index: 0, kind: input, shape index: {}]
  %s1 = inlined_call_operand.vmem [shape: f32[2,16,32], index: 1, kind: input, shape index: {}]
  %s2 = inlined_call_operand.vmem [shape: f32[32,32], index: 2, kind: input, shape index: {}]
  %s3 = inlined_call_operand.vmem [shape: f32[1,32], index: 3, kind: input, shape index: {}]
  %s4 = inlined_call_operand.vmem [shape: f32[32,64], index: 4, kind: input, shape index: {}]
  %s5 = inlined_call_operand.vmem [shape: f32[1,64], index: 5, kind: input, shape index: {}]
  %s6 = inlined_call_operand.vmem [shape: f32[32,32], index: 6, kind: input, shape index: {}]
  %s7 = inlined_call_operand.vmem [shape: f32[1,32], index: 7, kind: input, shape index: {}]
  %s8 = inlined_call_operand.vmem [shape: f32[1,32], index: 8, kind: input, shape index: {}]
  %s9 = inlined_call_operand.vmem [shape: f32[1,32], index: 9, kind: input, shape index: {}]
  %s10 = inlined_call_operand.vmem [shape: f32[2,8,32], index: 10, kind: output, shape index: {}]
  %s11 = sld [smem:[#allocation0]]
  $region73: #{decoder_forward.8} parent=0
    _
  %s13 = ssub.s32 1, %s11
  %s14 = scalar_select 0, %s13, %s11
  loop: start=0, step=1, limit=4
  $region2: #{decoder_forward.8} parent=0 // loop_pre_header
    _
  $region3: #{decoder_forward.8} parent=0 // loop_header
    %s16 = sphi 0, %s20
    %p17 = scmp.ge.s32.totalorder %s16, 4
    %s23 = sphi 0, %s35
    %s24 = sphi 0, %s31
    %s25 = sphi 0, %s23
    %s26 = sphi 0, %s24
    %s27 = sphi 0, %s25
    %s28 = sphi 0, %s26
    %s40 = sphi 0, %s42
    %s43 = sphi 0, %s40
    %s44 = sphi 0, %s43
    %s60 = sphi 0, %s44
    %s66 = sphi 0, %s68
    %s69 = sphi 0, %s66
    %s70 = sphi 0, %s69
    %s86 = sphi 0, %s70
    %s90 = sphi 0, %s90
    %s92 = sphi 0, %s90
    %s93 = sphi 0, %s92
    %s107 = sphi 0, %s93
    %s111 = sphi 0, %s111
    %s113 = sphi 0, %s111
    %s114 = sphi 0, %s113
    %s128 = sphi 0, %s114
    %s132 = sphi 0, %s132
    %s134 = sphi 0, %s132
    %s135 = sphi 0, %s134
    %s149 = sphi 0, %s135
    %s153 = sphi 0, %s153
    %s155 = sphi 0, %s153
    %s156 = sphi 0, %s155
    %s170 = sphi 0, %s156
    %s174 = sphi 0, %s174
    %s176 = sphi 0, %s174
    %s177 = sphi 0, %s176
    %s191 = sphi 0, %s177
    %s195 = sphi 0, %s195
    %s197 = sphi 0, %s195
    %s198 = sphi 0, %s197
    %s212 = sphi 0, %s198
    %s216 = sphi 0, %s216
    %s218 = sphi 0, %s216
    %s219 = sphi 0, %s218
    %s233 = sphi 0, %s219
    %s237 = sphi 0, %s237
    %s239 = sphi 0, %s237
    %s240 = sphi 0, %s239
    %s254 = sphi 0, %s240
    %s262 = sphi 0, %s264
    %s265 = sphi 0, %s262
    %s266 = sphi 0, %s265
    %s282 = sphi 0, %s266
  $region4: #{decoder_forward.8} parent=0 // loop_header_branch
    %19 = sbr.rel (%p17) target = $region8
  $region5: #{decoder_forward.8} parent=0 // loop_body
    %s21 = ssub.s32 %s16, 1
    %s22 = ssub.s32 %s16, 2
    %s29 = sadd.s32 1, %s24
    %p30 = scmp.ge.s32.totalorder %s29, 1
    %s31 = scalar_select %p30, 0, %s29
    %s32 = sadd.s32 1, %s23
    %s33 = scalar_select %p30, %s32, %s23
    %p34 = scmp.ge.s32.totalorder %s33, 2
    %s35 = scalar_select %p34, 0, %s33
    %s36 = ssub.s32 %s23, %s35
    %s37 = ssub.s32 %s24, %s31
    %s38 = sor.u32 %s36, %s37
    %p39 = scmp.eq.s32.totalorder %s38, 0
    %s41 = sadd.s32 %s40, 1
    %s42 = scalar_select %p39, %s40, %s41
    %p45 = pneg %p39
    %p46 = scmp.eq.s32.totalorder %s16, 1
    %p47 = por %p45, %p46
    %p48 = scmp.ne.s32.totalorder %s40, %s43
    %p49 = scmp.eq.s32.totalorder %s16, 0
    %p50 = por %p48, %p49
    %p51 = scmp.ne.s32.totalorder %s40, %s43
    %p52 = scmp.eq.s32.totalorder %s21, 1
    %p53 = por %p51, %p52
    %p54 = scmp.ne.s32.totalorder %s43, %s44
    %p55 = scmp.eq.s32.totalorder %s21, 0
    %p56 = por %p54, %p55
    %p57 = scmp.ne.s32.totalorder %s43, %s44
    %p58 = scmp.eq.s32.totalorder %s22, 1
    %p59 = por %p57, %p58
    %p61 = scmp.ne.s32.totalorder %s44, %s60
    %p62 = scmp.eq.s32.totalorder %s22, 0
    %p63 = por %p61, %p62
    %s64 = ssub.s32 %s23, %s35
    %p65 = scmp.eq.s32.totalorder %s64, 0
    %s67 = sadd.s32 %s66, 1
    %s68 = scalar_select %p65, %s66, %s67
    %p71 = pneg %p65
    %p72 = scmp.eq.s32.totalorder %s16, 1
    %p73 = por %p71, %p72
    %p74 = scmp.ne.s32.totalorder %s66, %s69
    %p75 = scmp.eq.s32.totalorder %s16, 0
    %p76 = por %p74, %p75
    %p77 = scmp.ne.s32.totalorder %s66, %s69
    %p78 = scmp.eq.s32.totalorder %s21, 1
    %p79 = por %p77, %p78
    %p80 = scmp.ne.s32.totalorder %s69, %s70
    %p81 = scmp.eq.s32.totalorder %s21, 0
    %p82 = por %p80, %p81
    %p83 = scmp.ne.s32.totalorder %s69, %s70
    %p84 = scmp.eq.s32.totalorder %s22, 1
    %p85 = por %p83, %p84
    %p87 = scmp.ne.s32.totalorder %s70, %s86
    %p88 = scmp.eq.s32.totalorder %s22, 0
    %p89 = por %p87, %p88
    %s91 = sadd.s32 %s90, 1
    %p94 = scmp.eq.s32.totalorder %s16, 1
    %p95 = scmp.ne.s32.totalorder %s90, %s92
    %p96 = scmp.eq.s32.totalorder %s16, 0
    %p97 = por %p95, %p96
    %p98 = scmp.ne.s32.totalorder %s90, %s92
    %p99 = scmp.eq.s32.totalorder %s21, 1
    %p100 = por %p98, %p99
    %p101 = scmp.ne.s32.totalorder %s92, %s93
    %p102 = scmp.eq.s32.totalorder %s21, 0
    %p103 = por %p101, %p102
    %p104 = scmp.ne.s32.totalorder %s92, %s93
    %p105 = scmp.eq.s32.totalorder %s22, 1
    %p106 = por %p104, %p105
    %p108 = scmp.ne.s32.totalorder %s93, %s107
    %p109 = scmp.eq.s32.totalorder %s22, 0
    %p110 = por %p108, %p109
    %s112 = sadd.s32 %s111, 1
    %p115 = scmp.eq.s32.totalorder %s16, 1
    %p116 = scmp.ne.s32.totalorder %s111, %s113
    %p117 = scmp.eq.s32.totalorder %s16, 0
    %p118 = por %p116, %p117
    %p119 = scmp.ne.s32.totalorder %s111, %s113
    %p120 = scmp.eq.s32.totalorder %s21, 1
    %p121 = por %p119, %p120
    %p122 = scmp.ne.s32.totalorder %s113, %s114
    %p123 = scmp.eq.s32.totalorder %s21, 0
    %p124 = por %p122, %p123
    %p125 = scmp.ne.s32.totalorder %s113, %s114
    %p126 = scmp.eq.s32.totalorder %s22, 1
    %p127 = por %p125, %p126
    %p129 = scmp.ne.s32.totalorder %s114, %s128
    %p130 = scmp.eq.s32.totalorder %s22, 0
    %p131 = por %p129, %p130
    %s133 = sadd.s32 %s132, 1
    %p136 = scmp.eq.s32.totalorder %s16, 1
    %p137 = scmp.ne.s32.totalorder %s132, %s134
    %p138 = scmp.eq.s32.totalorder %s16, 0
    %p139 = por %p137, %p138
    %p140 = scmp.ne.s32.totalorder %s132, %s134
    %p141 = scmp.eq.s32.totalorder %s21, 1
    %p142 = por %p140, %p141
    %p143 = scmp.ne.s32.totalorder %s134, %s135
    %p144 = scmp.eq.s32.totalorder %s21, 0
    %p145 = por %p143, %p144
    %p146 = scmp.ne.s32.totalorder %s134, %s135
    %p147 = scmp.eq.s32.totalorder %s22, 1
    %p148 = por %p146, %p147
    %p150 = scmp.ne.s32.totalorder %s135, %s149
    %p151 = scmp.eq.s32.totalorder %s22, 0
    %p152 = por %p150, %p151
    %s154 = sadd.s32 %s153, 1
    %p157 = scmp.eq.s32.totalorder %s16, 1
    %p158 = scmp.ne.s32.totalorder %s153, %s155
    %p159 = scmp.eq.s32.totalorder %s16, 0
    %p160 = por %p158, %p159
    %p161 = scmp.ne.s32.totalorder %s153, %s155
    %p162 = scmp.eq.s32.totalorder %s21, 1
    %p163 = por %p161, %p162
    %p164 = scmp.ne.s32.totalorder %s155, %s156
    %p165 = scmp.eq.s32.totalorder %s21, 0
    %p166 = por %p164, %p165
    %p167 = scmp.ne.s32.totalorder %s155, %s156
    %p168 = scmp.eq.s32.totalorder %s22, 1
    %p169 = por %p167, %p168
    %p171 = scmp.ne.s32.totalorder %s156, %s170
    %p172 = scmp.eq.s32.totalorder %s22, 0
    %p173 = por %p171, %p172
    %s175 = sadd.s32 %s174, 1
    %p178 = scmp.eq.s32.totalorder %s16, 1
    %p179 = scmp.ne.s32.totalorder %s174, %s176
    %p180 = scmp.eq.s32.totalorder %s16, 0
    %p181 = por %p179, %p180
    %p182 = scmp.ne.s32.totalorder %s174, %s176
    %p183 = scmp.eq.s32.totalorder %s21, 1
    %p184 = por %p182, %p183
    %p185 = scmp.ne.s32.totalorder %s176, %s177
    %p186 = scmp.eq.s32.totalorder %s21, 0
    %p187 = por %p185, %p186
    %p188 = scmp.ne.s32.totalorder %s176, %s177
    %p189 = scmp.eq.s32.totalorder %s22, 1
    %p190 = por %p188, %p189
    %p192 = scmp.ne.s32.totalorder %s177, %s191
    %p193 = scmp.eq.s32.totalorder %s22, 0
    %p194 = por %p192, %p193
    %s196 = sadd.s32 %s195, 1
    %p199 = scmp.eq.s32.totalorder %s16, 1
    %p200 = scmp.ne.s32.totalorder %s195, %s197
    %p201 = scmp.eq.s32.totalorder %s16, 0
    %p202 = por %p200, %p201
    %p203 = scmp.ne.s32.totalorder %s195, %s197
    %p204 = scmp.eq.s32.totalorder %s21, 1
    %p205 = por %p203, %p204
    %p206 = scmp.ne.s32.totalorder %s197, %s198
    %p207 = scmp.eq.s32.totalorder %s21, 0
    %p208 = por %p206, %p207
    %p209 = scmp.ne.s32.totalorder %s197, %s198
    %p210 = scmp.eq.s32.totalorder %s22, 1
    %p211 = por %p209, %p210
    %p213 = scmp.ne.s32.totalorder %s198, %s212
    %p214 = scmp.eq.s32.totalorder %s22, 0
    %p215 = por %p213, %p214
    %s217 = sadd.s32 %s216, 1
    %p220 = scmp.eq.s32.totalorder %s16, 1
    %p221 = scmp.ne.s32.totalorder %s216, %s218
    %p222 = scmp.eq.s32.totalorder %s16, 0
    %p223 = por %p221, %p222
    %p224 = scmp.ne.s32.totalorder %s216, %s218
    %p225 = scmp.eq.s32.totalorder %s21, 1
    %p226 = por %p224, %p225
    %p227 = scmp.ne.s32.totalorder %s218, %s219
    %p228 = scmp.eq.s32.totalorder %s21, 0
    %p229 = por %p227, %p228
    %p230 = scmp.ne.s32.totalorder %s218, %s219
    %p231 = scmp.eq.s32.totalorder %s22, 1
    %p232 = por %p230, %p231
    %p234 = scmp.ne.s32.totalorder %s219, %s233
    %p235 = scmp.eq.s32.totalorder %s22, 0
    %p236 = por %p234, %p235
    %s238 = sadd.s32 %s237, 1
    %p241 = scmp.eq.s32.totalorder %s16, 1
    %p242 = scmp.ne.s32.totalorder %s237, %s239
    %p243 = scmp.eq.s32.totalorder %s16, 0
    %p244 = por %p242, %p243
    %p245 = scmp.ne.s32.totalorder %s237, %s239
    %p246 = scmp.eq.s32.totalorder %s21, 1
    %p247 = por %p245, %p246
    %p248 = scmp.ne.s32.totalorder %s239, %s240
    %p249 = scmp.eq.s32.totalorder %s21, 0
    %p250 = por %p248, %p249
    %p251 = scmp.ne.s32.totalorder %s239, %s240
    %p252 = scmp.eq.s32.totalorder %s22, 1
    %p253 = por %p251, %p252
    %p255 = scmp.ne.s32.totalorder %s240, %s254
    %p256 = scmp.eq.s32.totalorder %s22, 0
    %p257 = por %p255, %p256
    %s258 = ssub.s32 %s23, %s35
    %s259 = ssub.s32 %s24, %s31
    %s260 = sor.u32 %s258, %s259
    %p261 = scmp.eq.s32.totalorder %s260, 0
    %s263 = sadd.s32 %s262, 1
    %s264 = scalar_select %p261, %s262, %s263
    %p267 = pneg %p261
    %p268 = scmp.eq.s32.totalorder %s16, 1
    %p269 = por %p267, %p268
    %p270 = scmp.ne.s32.totalorder %s262, %s265
    %p271 = scmp.eq.s32.totalorder %s16, 0
    %p272 = por %p270, %p271
    %p273 = scmp.ne.s32.totalorder %s262, %s265
    %p274 = scmp.eq.s32.totalorder %s21, 1
    %p275 = por %p273, %p274
    %p276 = scmp.ne.s32.totalorder %s265, %s266
    %p277 = scmp.eq.s32.totalorder %s21, 0
    %p278 = por %p276, %p277
    %p279 = scmp.ne.s32.totalorder %s265, %s266
    %p280 = scmp.eq.s32.totalorder %s22, 1
    %p281 = por %p279, %p280
    %p283 = scmp.ne.s32.totalorder %s266, %s282
    %p284 = scmp.eq.s32.totalorder %s22, 0
    %p285 = por %p283, %p284
    %p286 = scmp.le.s32.totalorder 1, %s16
    %p287 = scmp.lt.s32.totalorder %s16, 3
    %p288 = pnand %p286, %p287
    %p289 = pneg %p288
    // Predicated region
    $region9: #{decoder_forward.8} parent=5 // pred_check
      _
    $region10: #{decoder_forward.8} parent=5 // pred_check_branch
      %291 = sbr.rel (%p288) target = $region12
    $region11: #{decoder_forward.8} parent=5 // pred_region
      %s292 = ssub.s32 %s16, 1
      // Predicated region
      $region13: #{decoder_forward.8} parent=11 // pred_check
        %p293 = pneg %p103
      $region14: #{decoder_forward.8} parent=11 // pred_check_branch
        %295 = sbr.rel (%p293) target = $region16
      $region15: #{decoder_forward.8} parent=11 // pred_region
        _
      $region16: #{decoder_forward.8} parent=11 // pred_fallthru
        _
      // Predicated region
      $region17: #{decoder_forward.8} parent=11 // pred_check
        %p296 = pneg %p124
      $region18: #{decoder_forward.8} parent=11 // pred_check_branch
        %298 = sbr.rel (%p296) target = $region20
      $region19: #{decoder_forward.8} parent=11 // pred_region
        _
      $region20: #{decoder_forward.8} parent=11 // pred_fallthru
        _
      // Predicated region
      $region21: #{decoder_forward.8} parent=11 // pred_check
        %p299 = pneg %p145
      $region22: #{decoder_forward.8} parent=11 // pred_check_branch
        %301 = sbr.rel (%p299) target = $region24
      $region23: #{decoder_forward.8} parent=11 // pred_region
        _
      $region24: #{decoder_forward.8} parent=11 // pred_fallthru
        _
      // Predicated region
      $region25: #{decoder_forward.8} parent=11 // pred_check
        %p302 = pneg %p166
      $region26: #{decoder_forward.8} parent=11 // pred_check_branch
        %304 = sbr.rel (%p302) target = $region28
      $region27: #{decoder_forward.8} parent=11 // pred_region
        _
      $region28: #{decoder_forward.8} parent=11 // pred_fallthru
        _
      // Predicated region
      $region29: #{decoder_forward.8} parent=11 // pred_check
        %p305 = pneg %p187
      $region30: #{decoder_forward.8} parent=11 // pred_check_branch
        %307 = sbr.rel (%p305) target = $region32
      $region31: #{decoder_forward.8} parent=11 // pred_region
        _
      $region32: #{decoder_forward.8} parent=11 // pred_fallthru
        _
      // Predicated region
      $region33: #{decoder_forward.8} parent=11 // pred_check
        %p308 = pneg %p208
      $region34: #{decoder_forward.8} parent=11 // pred_check_branch
        %310 = sbr.rel (%p308) target = $region36
      $region35: #{decoder_forward.8} parent=11 // pred_region
        _
      $region36: #{decoder_forward.8} parent=11 // pred_fallthru
        _
      // Predicated region
      $region37: #{decoder_forward.8} parent=11 // pred_check
        %p311 = pneg %p229
      $region38: #{decoder_forward.8} parent=11 // pred_check_branch
        %313 = sbr.rel (%p311) target = $region40
      $region39: #{decoder_forward.8} parent=11 // pred_region
        _
      $region40: #{decoder_forward.8} parent=11 // pred_fallthru
        _
      // Predicated region
      $region41: #{decoder_forward.8} parent=11 // pred_check
        %p314 = pneg %p250
      $region42: #{decoder_forward.8} parent=11 // pred_check_branch
        %316 = sbr.rel (%p314) target = $region44
      $region43: #{decoder_forward.8} parent=11 // pred_region
        _
      $region44: #{decoder_forward.8} parent=11 // pred_fallthru
        _
    $region12: #{decoder_forward.8} parent=5 // pred_fallthru
      _
    %p317 = scmp.lt.s32.totalorder %s16, 2
    // Predicated region
    $region45: #{decoder_forward.8} parent=5 // pred_check
      %p318 = pneg %p317
    $region46: #{decoder_forward.8} parent=5 // pred_check_branch
      %320 = sbr.rel (%p318) target = $region48
    $region47: #{decoder_forward.8} parent=5 // pred_region
      // Predicated region
      $region49: #{decoder_forward.8} parent=47 // pred_check
        %p321 = pneg %p50
      $region50: #{decoder_forward.8} parent=47 // pred_check_branch
        %323 = sbr.rel (%p321) target = $region52
      $region51: #{decoder_forward.8} parent=47 // pred_region
        %p324 = scmp.lt.s32.totalorder %s23, 1
        %s325 = scalar_select %p324, %s23, 1
        %p326 = scmp.lt.s32.totalorder %s24, 0
        %s327 = scalar_select %p326, %s24, 0
        %s328 = sadd.s32 %s327, %s325
        %s329 = smul.addr %s328, 8
        %s330 = scalar_lea.vmem %s0, %s329
      $region52: #{decoder_forward.8} parent=47 // pred_fallthru
        _
      // Predicated region
      $region53: #{decoder_forward.8} parent=47 // pred_check
        %p331 = pneg %p76
      $region54: #{decoder_forward.8} parent=47 // pred_check_branch
        %333 = sbr.rel (%p331) target = $region56
      $region55: #{decoder_forward.8} parent=47 // pred_region
        %p334 = scmp.lt.s32.totalorder %s23, 1
        %s335 = scalar_select %p334, %s23, 1
        %s336 = smul.addr %s335, 2
        %s337 = smul.addr %s336, 8
        %s338 = scalar_lea.vmem %s1, %s337
      $region56: #{decoder_forward.8} parent=47 // pred_fallthru
        _
    $region48: #{decoder_forward.8} parent=5 // pred_fallthru
      _
    %p339 = scmp.le.s32.totalorder 1, %s16
    %p340 = scmp.lt.s32.totalorder %s16, 3
    %p341 = pnand %p339, %p340
    %p342 = pneg %p341
    // Predicated region
    $region57: #{decoder_forward.8} parent=5 // pred_check
      _
    $region58: #{decoder_forward.8} parent=5 // pred_check_branch
      %344 = sbr.rel (%p341) target = $region60
    $region59: #{decoder_forward.8} parent=5 // pred_region
      %s345 = ssub.s32 %s16, 1
      %p346 = scmp.lt.s32.totalorder %s25, 1
      %s347 = scalar_select %p346, %s25, 1
      %p348 = scmp.lt.s32.totalorder %s26, 0
      %s349 = scalar_select %p348, %s26, 0
      %s350 = sadd.s32 %s349, %s347
      %s351 = smul.addr %s350, 8
      %s352 = scalar_lea.vmem %s0, %s351
      %p353 = pneg %p56
      %p354 = pneg %p53
      %p355 = scmp.lt.s32.totalorder %s25, 1
      %s356 = scalar_select %p355, %s25, 1
      %s357 = smul.addr %s356, 2
      %s358 = smul.addr %s357, 8
      %s359 = scalar_lea.vmem %s1, %s358
      %p360 = pneg %p82
      %p361 = pneg %p79
      %p362 = pneg %p103
      %p363 = pneg %p100
      %p364 = pneg %p124
      %p365 = pneg %p121
      %p366 = pneg %p145
      %p367 = pneg %p142
      %p368 = pneg %p166
      %p369 = pneg %p163
      %p370 = pneg %p187
      %p371 = pneg %p184
      %p372 = pneg %p208
      %p373 = pneg %p205
      %p374 = pneg %p229
      %p375 = pneg %p226
      %p376 = pneg %p250
      %p377 = pneg %p247
      %p378 = pneg %p278
      %p379 = pneg %p275
      %p380 = scmp.lt.s32.totalorder %s25, 1
      %s381 = scalar_select %p380, %s25, 1
      %p382 = scmp.lt.s32.totalorder %s26, 0
      %s383 = scalar_select %p382, %s26, 0
      %s384 = sadd.s32 %s383, %s381
      %s385 = smul.addr %s384, 8
      %s386 = scalar_lea.vmem %s10, %s385
      %p387 = scmp.lt.s32.totalorder %s25, 1
      %s388 = scalar_select %p387, %s25, 1
      %p389 = scmp.lt.s32.totalorder %s26, 0
      %s390 = scalar_select %p389, %s26, 0
      %s391 = sadd.s32 %s390, %s388
      %s392 = smul.addr %s391, 8
      %s393 = scalar_lea.vmem %s0, %s392
      %p394 = scmp.lt.s32.totalorder %s25, 1
      %s395 = scalar_select %p394, %s25, 1
      %s396 = smul.addr %s395, 2
      %s397 = smul.addr %s396, 8
      %s398 = scalar_lea.vmem %s1, %s397
      %p399 = scmp.lt.s32.totalorder %s25, 1
      %s400 = scalar_select %p399, %s25, 1
      %p401 = scmp.lt.s32.totalorder %s26, 0
      %s402 = scalar_select %p401, %s26, 0
      %s403 = sadd.s32 %s402, %s400
      %s404 = smul.addr %s403, 8
      %s405 = scalar_lea.vmem %s10, %s404
      %v406 = vld [vmem:[%s393] sm:$0xff]
      %v407 = vld [vmem:[%s2] sm:$0xff]
      %v408 = vld [vmem:[%s2 + $0x8] sm:$0xff]
      %v409 = vld [vmem:[%s2 + $0x10] sm:$0xff]
      %v410 = vld [vmem:[%s2 + $0x18] sm:$0xff]
      %v411 = vld [vmem:[%s3] sm:$0x1]
      %v413 = vlaneseq
      %v414 = vshrl.u32 %v413, 7
      %v415 = vsub.s32 0, %v414
      %v416 = vrot.slane %v411, %v415
      %vm418 = vcmask 261120
      %v420 = vsel %vm418, %v406, 0
      %422 = vmatprep.subr.mxu0 0.0
      %423 = vmatpush1.msra.mxu0 0.0
      %424 = vmatprep.subr.mxu0 0.0
      %425 = vmatpush1.msra.mxu0 0.0
      %426 = vmatprep.subr.mxu0 0.0
      %427 = vmatpush1.msra.mxu0 0.0
      %428 = vmatprep.subr.mxu0 0.0
      %429 = vmatpush1.msra.mxu0 0.0
      %430 = vmatprep.subr.mxu0 0.0
      %431 = vmatpush1.msra.mxu0 0.0
      %432 = vmatprep.subr.mxu0 0.0
      %433 = vmatpush1.msra.mxu0 0.0
      %434 = vmatprep.subr.mxu0 0.0
      %435 = vmatpush1.msra.mxu0 0.0
      %436 = vmatprep.subr.mxu0 0.0
      %437 = vmatpush1.msra.mxu0 0.0
      %438 = vmatprep.subr.mxu0 0.0
      %439 = vmatpush1.msra.mxu0 0.0
      %440 = vmatprep.subr.mxu0 0.0
      %441 = vmatpush1.msra.mxu0 0.0
      %442 = vmatprep.subr.mxu0 0.0
      %443 = vmatpush1.msra.mxu0 0.0
      %444 = vmatprep.subr.mxu0 0.0
      %445 = vmatpush1.msra.mxu0 0.0
      %446 = vmatprep.subr.mxu0 0.0
      %447 = vmatpush1.msra.mxu0 %v410
      %448 = vmatprep.subr.mxu0 0.0
      %449 = vmatpush1.msra.mxu0 %v409
      %450 = vmatprep.subr.mxu0 0.0
      %451 = vmatpush1.msra.mxu0 %v408
      %452 = vmatprep.subr.mxu0 0.0
      %453 = vmatpush1.msra.mxu0 %v407
      %454 = vmatprep.subr.mxu0 0.0
      %455 = vmatpush2.msra.mxu0 0.0
      %456 = vmatprep.subr.mxu0 0.0
      %457 = vmatpush2.msra.mxu0 0.0
      %458 = vmatprep.subr.mxu0 0.0
      %459 = vmatpush2.msra.mxu0 0.0
      %460 = vmatprep.subr.mxu0 0.0
      %461 = vmatpush2.msra.mxu0 0.0
      %462 = vmatprep.subr.mxu0 0.0
      %463 = vmatpush2.msra.mxu0 0.0
      %464 = vmatprep.subr.mxu0 0.0
      %465 = vmatpush2.msra.mxu0 0.0
      %466 = vmatprep.subr.mxu0 0.0
      %467 = vmatpush2.msra.mxu0 0.0
      %468 = vmatprep.subr.mxu0 0.0
      %469 = vmatpush2.msra.mxu0 0.0
      %470 = vmatprep.subr.mxu0 0.0
      %471 = vmatpush2.msra.mxu0 0.0
      %472 = vmatprep.subr.mxu0 0.0
      %473 = vmatpush2.msra.mxu0 0.0
      %474 = vmatprep.subr.mxu0 0.0
      %475 = vmatpush2.msra.mxu0 0.0
      %476 = vmatprep.subr.mxu0 0.0
      %477 = vmatpush2.msra.mxu0 0.0
      %478 = vmatprep.subr.mxu0 0.0
      %479 = vmatpush2.msra.mxu0 0.0
      %480 = vmatprep.subr.mxu0 0.0
      %481 = vmatpush2.msra.mxu0 0.0
      %482 = vmatprep.subr.mxu0 0.0
      %483 = vmatpush2.msra.mxu0 0.0
      %484 = vmatprep.subr.mxu0 0.0
      %485 = vmatpush2.msra.mxu0 0.0
      %486 = vmatprep.mubr.f32.mxu0 0.0
      %487 = vmatmul.mubr.f32.gmra.mxu0 %v420
      %v488 = vpop.f32.mrf.mxu0
      %v489 = vadd.f32 %v416, %v488
      %v490 = vpop.f32.mrf.mxu0
      %491 = vdwg.mxu0
      %v492 = vld [vmem:[%s398] sm:$0xff]
      %v493 = vld [vmem:[%s398 + $0x8] sm:$0xff]
      %v494 = vld [vmem:[%s4] sm:$0xff]
      %v495 = vld [vmem:[%s4 + $0x8] sm:$0xff]
      %v496 = vld [vmem:[%s4 + $0x10] sm:$0xff]
      %v497 = vld [vmem:[%s4 + $0x18] sm:$0xff]
      %v498 = vld [vmem:[%s5] sm:$0x1]
      %v500 = vlaneseq
      %v501 = vshrl.u32 %v500, 7
      %v502 = vsub.s32 0, %v501
      %v503 = vrot.slane %v498, %v502
      %v506 = vsel %vm418, %v492, 0
      %v509 = vsel %vm418, %v493, 0
      %511 = vmatprep.subr.mxu0 0.0
      %512 = vmatpush1.msra.mxu0 0.0
      %513 = vmatprep.subr.mxu0 0.0
      %514 = vmatpush1.msra.mxu0 0.0
      %515 = vmatprep.subr.mxu0 0.0
      %516 = vmatpush1.msra.mxu0 0.0
      %517 = vmatprep.subr.mxu0 0.0
      %518 = vmatpush1.msra.mxu0 0.0
      %519 = vmatprep.subr.mxu0 0.0
      %520 = vmatpush1.msra.mxu0 0.0
      %521 = vmatprep.subr.mxu0 0.0
      %522 = vmatpush1.msra.mxu0 0.0
      %523 = vmatprep.subr.mxu0 0.0
      %524 = vmatpush1.msra.mxu0 0.0
      %525 = vmatprep.subr.mxu0 0.0
      %526 = vmatpush1.msra.mxu0 0.0
      %527 = vmatprep.subr.mxu0 0.0
      %528 = vmatpush1.msra.mxu0 0.0
      %529 = vmatprep.subr.mxu0 0.0
      %530 = vmatpush1.msra.mxu0 0.0
      %531 = vmatprep.subr.mxu0 0.0
      %532 = vmatpush1.msra.mxu0 0.0
      %533 = vmatprep.subr.mxu0 0.0
      %534 = vmatpush1.msra.mxu0 0.0
      %535 = vmatprep.subr.mxu0 0.0
      %536 = vmatpush1.msra.mxu0 %v497
      %537 = vmatprep.subr.mxu0 0.0
      %538 = vmatpush1.msra.mxu0 %v496
      %539 = vmatprep.subr.mxu0 0.0
      %540 = vmatpush1.msra.mxu0 %v495
      %541 = vmatprep.subr.mxu0 0.0
      %542 = vmatpush1.msra.mxu0 %v494
      %543 = vmatprep.subr.mxu0 0.0
      %544 = vmatpush2.msra.mxu0 0.0
      %545 = vmatprep.subr.mxu0 0.0
      %546 = vmatpush2.msra.mxu0 0.0
      %547 = vmatprep.subr.mxu0 0.0
      %548 = vmatpush2.msra.mxu0 0.0
      %549 = vmatprep.subr.mxu0 0.0
      %550 = vmatpush2.msra.mxu0 0.0
      %551 = vmatprep.subr.mxu0 0.0
      %552 = vmatpush2.msra.mxu0 0.0
      %553 = vmatprep.subr.mxu0 0.0
      %554 = vmatpush2.msra.mxu0 0.0
      %555 = vmatprep.subr.mxu0 0.0
      %556 = vmatpush2.msra.mxu0 0.0
      %557 = vmatprep.subr.mxu0 0.0
      %558 = vmatpush2.msra.mxu0 0.0
      %559 = vmatprep.subr.mxu0 0.0
      %560 = vmatpush2.msra.mxu0 0.0
      %561 = vmatprep.subr.mxu0 0.0
      %562 = vmatpush2.msra.mxu0 0.0
      %563 = vmatprep.subr.mxu0 0.0
      %564 = vmatpush2.msra.mxu0 0.0
      %565 = vmatprep.subr.mxu0 0.0
      %566 = vmatpush2.msra.mxu0 0.0
      %567 = vmatprep.subr.mxu0 0.0
      %568 = vmatpush2.msra.mxu0 0.0
      %569 = vmatprep.subr.mxu0 0.0
      %570 = vmatpush2.msra.mxu0 0.0
      %571 = vmatprep.subr.mxu0 0.0
      %572 = vmatpush2.msra.mxu0 0.0
      %573 = vmatprep.subr.mxu0 0.0
      %574 = vmatpush2.msra.mxu0 0.0
      %575 = vmatprep.mubr.f32.mxu0 0.0
      %576 = vmatmul.mubr.f32.gmra.mxu0 %v506
      %v577 = vpop.f32.mrf.mxu0
      %v578 = vadd.f32 %v503, %v577
      %v579 = vpop.f32.mrf.mxu0
      %580 = vmatprep.mubr.f32.mxu0 0.0
      %581 = vmatmul.mubr.f32.gmra.mxu0 %v509
      %v582 = vpop.f32.mrf.mxu0
      %v583 = vadd.f32 %v503, %v582
      %v584 = vpop.f32.mrf.mxu0
      %585 = vdwg.mxu0
      %vm586 = vcmask 64512
      %v588 = vsel %vm586, %v489, 0
      %v591 = vsel %vm586, %v578, 0
      %v594 = vsel %vm586, %v583, 0
      %596 = vmatprep.subr.mxu0 0.0
      %597 = vmatpush1.xpose.msra.mxu0 0.0
      %598 = vmatprep.subr.mxu0 0.0
      %599 = vmatpush1.xpose.msra.mxu0 0.0
      %600 = vmatprep.subr.mxu0 0.0
      %601 = vmatpush1.xpose.msra.mxu0 0.0
      %602 = vmatprep.subr.mxu0 0.0
      %603 = vmatpush1.xpose.msra.mxu0 0.0
      %604 = vmatprep.subr.mxu0 0.0
      %605 = vmatpush1.xpose.msra.mxu0 0.0
      %606 = vmatprep.subr.mxu0 0.0
      %607 = vmatpush1.xpose.msra.mxu0 0.0
      %608 = vmatprep.subr.mxu0 0.0
      %609 = vmatpush1.xpose.msra.mxu0 0.0
      %610 = vmatprep.subr.mxu0 0.0
      %611 = vmatpush1.xpose.msra.mxu0 0.0
      %612 = vmatprep.subr.mxu0 0.0
      %613 = vmatpush1.xpose.msra.mxu0 0.0
      %614 = vmatprep.subr.mxu0 0.0
      %615 = vmatpush1.xpose.msra.mxu0 0.0
      %616 = vmatprep.subr.mxu0 0.0
      %617 = vmatpush1.xpose.msra.mxu0 0.0
      %618 = vmatprep.subr.mxu0 0.0
      %619 = vmatpush1.xpose.msra.mxu0 0.0
      %620 = vmatprep.subr.mxu0 0.0
      %621 = vmatpush1.xpose.msra.mxu0 0.0
      %622 = vmatprep.subr.mxu0 0.0
      %623 = vmatpush1.xpose.msra.mxu0 0.0
      %624 = vmatprep.subr.mxu0 0.0
      %625 = vmatpush1.xpose.msra.mxu0 %v594
      %626 = vmatprep.subr.mxu0 0.0
      %627 = vmatpush1.xpose.msra.mxu0 %v591
      %628 = vmatprep.subr.mxu0 0.0
      %629 = vmatpush2.xpose.msra.mxu0 0.0
      %630 = vmatprep.subr.mxu0 0.0
      %631 = vmatpush2.xpose.msra.mxu0 0.0
      %632 = vmatprep.subr.mxu0 0.0
      %633 = vmatpush2.xpose.msra.mxu0 0.0
      %634 = vmatprep.subr.mxu0 0.0
      %635 = vmatpush2.xpose.msra.mxu0 0.0
      %636 = vmatprep.subr.mxu0 0.0
      %637 = vmatpush2.xpose.msra.mxu0 0.0
      %638 = vmatprep.subr.mxu0 0.0
      %639 = vmatpush2.xpose.msra.mxu0 0.0
      %640 = vmatprep.subr.mxu0 0.0
      %641 = vmatpush2.xpose.msra.mxu0 0.0
      %642 = vmatprep.subr.mxu0 0.0
      %643 = vmatpush2.xpose.msra.mxu0 0.0
      %644 = vmatprep.subr.mxu0 0.0
      %645 = vmatpush2.xpose.msra.mxu0 0.0
      %646 = vmatprep.subr.mxu0 0.0
      %647 = vmatpush2.xpose.msra.mxu0 0.0
      %648 = vmatprep.subr.mxu0 0.0
      %649 = vmatpush2.xpose.msra.mxu0 0.0
      %650 = vmatprep.subr.mxu0 0.0
      %651 = vmatpush2.xpose.msra.mxu0 0.0
      %652 = vmatprep.subr.mxu0 0.0
      %653 = vmatpush2.xpose.msra.mxu0 0.0
      %654 = vmatprep.subr.mxu0 0.0
      %655 = vmatpush2.xpose.msra.mxu0 0.0
      %656 = vmatprep.subr.mxu0 0.0
      %657 = vmatpush2.xpose.msra.mxu0 0.0
      %658 = vmatprep.subr.mxu0 0.0
      %659 = vmatpush2.xpose.msra.mxu0 0.0
      %660 = vmatprep.mubr.f32.mxu0 0.0
      %661 = vmatmul.mubr.f32.gmra.mxu0 %v588
      %v662 = vpop.f32.mrf.mxu0
      %v663 = vadd.f32 0.0, %v662
      %v664 = vpop.f32.mrf.mxu0
      %665 = vdwg.mxu0
      %v666 = vmul.f32 %v663, 0.35355338
      %vm667 = vcmask 130048
      %v668 = vsel %vm667, %v666, -inf
      %669 = vmax.xlane.f32.xlu0 %v668
      %v670 = vpop.xlane.xlu0 %669
      %v671 = vsub.f32 %v666, %v670
      %v672 = vmul.f32 %v671, 1.442695
      %v673 = vpow.pop %v672
      %v674 = vsel %vm667, %v673, 0.0
      %675 = vadd.xlane.f32.xlu0 %v674
      %v676 = vpop.xlane.xlu0 %675
      %v677 = vrcp.pop %v676
      %v678 = vmul.f32 %v673, %v677
      %679 = vrot.lane.b32.xlu0 %v578, 96
      %v680 = vpop.permute.xlu0 %679
      %681 = vrot.lane.b32.xlu0 %v583, 96
      %v682 = vpop.permute.xlu0 %681
      %v686 = vsel %vm667, %v678, 0
      %688 = vmatprep.subr.mxu0 0.0
      %689 = vmatpush1.msra.mxu0 0.0
      %690 = vmatprep.subr.mxu0 0.0
      %691 = vmatpush1.msra.mxu0 0.0
      %692 = vmatprep.subr.mxu0 0.0
      %693 = vmatpush1.msra.mxu0 0.0
      %694 = vmatprep.subr.mxu0 0.0
      %695 = vmatpush1.msra.mxu0 0.0
      %696 = vmatprep.subr.mxu0 0.0
      %697 = vmatpush1.msra.mxu0 0.0
      %698 = vmatprep.subr.mxu0 0.0
      %699 = vmatpush1.msra.mxu0 0.0
      %700 = vmatprep.subr.mxu0 0.0
      %701 = vmatpush1.msra.mxu0 0.0
      %702 = vmatprep.subr.mxu0 0.0
      %703 = vmatpush1.msra.mxu0 0.0
      %704 = vmatprep.subr.mxu0 0.0
      %705 = vmatpush1.msra.mxu0 0.0
      %706 = vmatprep.subr.mxu0 0.0
      %707 = vmatpush1.msra.mxu0 0.0
      %708 = vmatprep.subr.mxu0 0.0
      %709 = vmatpush1.msra.mxu0 0.0
      %710 = vmatprep.subr.mxu0 0.0
      %711 = vmatpush1.msra.mxu0 0.0
      %712 = vmatprep.subr.mxu0 0.0
      %713 = vmatpush1.msra.mxu0 0.0
      %714 = vmatprep.subr.mxu0 0.0
      %715 = vmatpush1.msra.mxu0 0.0
      %716 = vmatprep.subr.mxu0 0.0
      %717 = vmatpush1.msra.mxu0 %v682
      %718 = vmatprep.subr.mxu0 0.0
      %719 = vmatpush1.msra.mxu0 %v680
      %720 = vmatprep.subr.mxu0 0.0
      %721 = vmatpush2.msra.mxu0 0.0
      %722 = vmatprep.subr.mxu0 0.0
      %723 = vmatpush2.msra.mxu0 0.0
      %724 = vmatprep.subr.mxu0 0.0
      %725 = vmatpush2.msra.mxu0 0.0
      %726 = vmatprep.subr.mxu0 0.0
      %727 = vmatpush2.msra.mxu0 0.0
      %728 = vmatprep.subr.mxu0 0.0
      %729 = vmatpush2.msra.mxu0 0.0
      %730 = vmatprep.subr.mxu0 0.0
      %731 = vmatpush2.msra.mxu0 0.0
      %732 = vmatprep.subr.mxu0 0.0
      %733 = vmatpush2.msra.mxu0 0.0
      %734 = vmatprep.subr.mxu0 0.0
      %735 = vmatpush2.msra.mxu0 0.0
      %736 = vmatprep.subr.mxu0 0.0
      %737 = vmatpush2.msra.mxu0 0.0
      %738 = vmatprep.subr.mxu0 0.0
      %739 = vmatpush2.msra.mxu0 0.0
      %740 = vmatprep.subr.mxu0 0.0
      %741 = vmatpush2.msra.mxu0 0.0
      %742 = vmatprep.subr.mxu0 0.0
      %743 = vmatpush2.msra.mxu0 0.0
      %744 = vmatprep.subr.mxu0 0.0
      %745 = vmatpush2.msra.mxu0 0.0
      %746 = vmatprep.subr.mxu0 0.0
      %747 = vmatpush2.msra.mxu0 0.0
      %748 = vmatprep.subr.mxu0 0.0
      %749 = vmatpush2.msra.mxu0 0.0
      %750 = vmatprep.subr.mxu0 0.0
      %751 = vmatpush2.msra.mxu0 0.0
      %752 = vmatprep.mubr.f32.mxu0 0.0
      %753 = vmatmul.mubr.f32.gmra.mxu0 %v686
      %v754 = vpop.f32.mrf.mxu0
      %v755 = vadd.f32 0.0, %v754
      %v756 = vpop.f32.mrf.mxu0
      %757 = vdwg.mxu0
      %758 = vst.msk [vmem:[#allocation2] sm:$0xff] %vm586, %v755
      %759 = vrot.lane.b32.xlu0 %v489, 120
      %v760 = vpop.permute.xlu0 %759
      %761 = vrot.lane.b32.xlu0 %v578, 120
      %v762 = vpop.permute.xlu0 %761
      %763 = vrot.lane.b32.xlu0 %v583, 120
      %v764 = vpop.permute.xlu0 %763
      %v765 = vsel %vm586, %v760, 0
      %v767 = vsel %vm586, %v762, 0
      %v769 = vsel %vm586, %v764, 0
      %771 = vmatprep.subr.mxu0 0.0
      %772 = vmatpush1.xpose.msra.mxu0 0.0
      %773 = vmatprep.subr.mxu0 0.0
      %774 = vmatpush1.xpose.msra.mxu0 0.0
      %775 = vmatprep.subr.mxu0 0.0
      %776 = vmatpush1.xpose.msra.mxu0 0.0
      %777 = vmatprep.subr.mxu0 0.0
      %778 = vmatpush1.xpose.msra.mxu0 0.0
      %779 = vmatprep.subr.mxu0 0.0
      %780 = vmatpush1.xpose.msra.mxu0 0.0
      %781 = vmatprep.subr.mxu0 0.0
      %782 = vmatpush1.xpose.msra.mxu0 0.0
      %783 = vmatprep.subr.mxu0 0.0
      %784 = vmatpush1.xpose.msra.mxu0 0.0
      %785 = vmatprep.subr.mxu0 0.0
      %786 = vmatpush1.xpose.msra.mxu0 0.0
      %787 = vmatprep.subr.mxu0 0.0
      %788 = vmatpush1.xpose.msra.mxu0 0.0
      %789 = vmatprep.subr.mxu0 0.0
      %790 = vmatpush1.xpose.msra.mxu0 0.0
      %791 = vmatprep.subr.mxu0 0.0
      %792 = vmatpush1.xpose.msra.mxu0 0.0
      %793 = vmatprep.subr.mxu0 0.0
      %794 = vmatpush1.xpose.msra.mxu0 0.0
      %795 = vmatprep.subr.mxu0 0.0
      %796 = vmatpush1.xpose.msra.mxu0 0.0
      %797 = vmatprep.subr.mxu0 0.0
      %798 = vmatpush1.xpose.msra.mxu0 0.0
      %799 = vmatprep.subr.mxu0 0.0
      %800 = vmatpush1.xpose.msra.mxu0 %v769
      %801 = vmatprep.subr.mxu0 0.0
      %802 = vmatpush1.xpose.msra.mxu0 %v767
      %803 = vmatprep.subr.mxu0 0.0
      %804 = vmatpush2.xpose.msra.mxu0 0.0
      %805 = vmatprep.subr.mxu0 0.0
      %806 = vmatpush2.xpose.msra.mxu0 0.0
      %807 = vmatprep.subr.mxu0 0.0
      %808 = vmatpush2.xpose.msra.mxu0 0.0
      %809 = vmatprep.subr.mxu0 0.0
      %810 = vmatpush2.xpose.msra.mxu0 0.0
      %811 = vmatprep.subr.mxu0 0.0
      %812 = vmatpush2.xpose.msra.mxu0 0.0
      %813 = vmatprep.subr.mxu0 0.0
      %814 = vmatpush2.xpose.msra.mxu0 0.0
      %815 = vmatprep.subr.mxu0 0.0
      %816 = vmatpush2.xpose.msra.mxu0 0.0
      %817 = vmatprep.subr.mxu0 0.0
      %818 = vmatpush2.xpose.msra.mxu0 0.0
      %819 = vmatprep.subr.mxu0 0.0
      %820 = vmatpush2.xpose.msra.mxu0 0.0
      %821 = vmatprep.subr.mxu0 0.0
      %822 = vmatpush2.xpose.msra.mxu0 0.0
      %823 = vmatprep.subr.mxu0 0.0
      %824 = vmatpush2.xpose.msra.mxu0 0.0
      %825 = vmatprep.subr.mxu0 0.0
      %826 = vmatpush2.xpose.msra.mxu0 0.0
      %827 = vmatprep.subr.mxu0 0.0
      %828 = vmatpush2.xpose.msra.mxu0 0.0
      %829 = vmatprep.subr.mxu0 0.0
      %830 = vmatpush2.xpose.msra.mxu0 0.0
      %831 = vmatprep.subr.mxu0 0.0
      %832 = vmatpush2.xpose.msra.mxu0 0.0
      %833 = vmatprep.subr.mxu0 0.0
      %834 = vmatpush2.xpose.msra.mxu0 0.0
      %835 = vmatprep.mubr.f32.mxu0 0.0
      %836 = vmatmul.mubr.f32.gmra.mxu0 %v765
      %v837 = vpop.f32.mrf.mxu0
      %v838 = vadd.f32 0.0, %v837
      %v839 = vpop.f32.mrf.mxu0
      %840 = vdwg.mxu0
      %v841 = vmul.f32 %v838, 0.35355338
      %v842 = vsel %vm667, %v841, -inf
      %843 = vmax.xlane.f32.xlu0 %v842
      %v844 = vpop.xlane.xlu0 %843
      %v845 = vsub.f32 %v841, %v844
      %v846 = vmul.f32 %v845, 1.442695
      %v847 = vpow.pop %v846
      %v848 = vsel %vm667, %v847, 0.0
      %849 = vadd.xlane.f32.xlu0 %v848
      %v850 = vpop.xlane.xlu0 %849
      %v851 = vrcp.pop %v850
      %v852 = vmul.f32 %v847, %v851
      %853 = vrot.lane.b32.xlu0 %v578, 88
      %v854 = vpop.permute.xlu0 %853
      %855 = vrot.lane.b32.xlu0 %v583, 88
      %v856 = vpop.permute.xlu0 %855
      %v860 = vsel %vm667, %v852, 0
      %862 = vmatprep.subr.mxu0 0.0
      %863 = vmatpush1.msra.mxu0 0.0
      %864 = vmatprep.subr.mxu0 0.0
      %865 = vmatpush1.msra.mxu0 0.0
      %866 = vmatprep.subr.mxu0 0.0
      %867 = vmatpush1.msra.mxu0 0.0
      %868 = vmatprep.subr.mxu0 0.0
      %869 = vmatpush1.msra.mxu0 0.0
      %870 = vmatprep.subr.mxu0 0.0
      %871 = vmatpush1.msra.mxu0 0.0
      %872 = vmatprep.subr.mxu0 0.0
      %873 = vmatpush1.msra.mxu0 0.0
      %874 = vmatprep.subr.mxu0 0.0
      %875 = vmatpush1.msra.mxu0 0.0
      %876 = vmatprep.subr.mxu0 0.0
      %877 = vmatpush1.msra.mxu0 0.0
      %878 = vmatprep.subr.mxu0 0.0
      %879 = vmatpush1.msra.mxu0 0.0
      %880 = vmatprep.subr.mxu0 0.0
      %881 = vmatpush1.msra.mxu0 0.0
      %882 = vmatprep.subr.mxu0 0.0
      %883 = vmatpush1.msra.mxu0 0.0
      %884 = vmatprep.subr.mxu0 0.0
      %885 = vmatpush1.msra.mxu0 0.0
      %886 = vmatprep.subr.mxu0 0.0
      %887 = vmatpush1.msra.mxu0 0.0
      %888 = vmatprep.subr.mxu0 0.0
      %889 = vmatpush1.msra.mxu0 0.0
      %890 = vmatprep.subr.mxu0 0.0
      %891 = vmatpush1.msra.mxu0 %v856
      %892 = vmatprep.subr.mxu0 0.0
      %893 = vmatpush1.msra.mxu0 %v854
      %894 = vmatprep.subr.mxu0 0.0
      %895 = vmatpush2.msra.mxu0 0.0
      %896 = vmatprep.subr.mxu0 0.0
      %897 = vmatpush2.msra.mxu0 0.0
      %898 = vmatprep.subr.mxu0 0.0
      %899 = vmatpush2.msra.mxu0 0.0
      %900 = vmatprep.subr.mxu0 0.0
      %901 = vmatpush2.msra.mxu0 0.0
      %902 = vmatprep.subr.mxu0 0.0
      %903 = vmatpush2.msra.mxu0 0.0
      %904 = vmatprep.subr.mxu0 0.0
      %905 = vmatpush2.msra.mxu0 0.0
      %906 = vmatprep.subr.mxu0 0.0
      %907 = vmatpush2.msra.mxu0 0.0
      %908 = vmatprep.subr.mxu0 0.0
      %909 = vmatpush2.msra.mxu0 0.0
      %910 = vmatprep.subr.mxu0 0.0
      %911 = vmatpush2.msra.mxu0 0.0
      %912 = vmatprep.subr.mxu0 0.0
      %913 = vmatpush2.msra.mxu0 0.0
      %914 = vmatprep.subr.mxu0 0.0
      %915 = vmatpush2.msra.mxu0 0.0
      %916 = vmatprep.subr.mxu0 0.0
      %917 = vmatpush2.msra.mxu0 0.0
      %918 = vmatprep.subr.mxu0 0.0
      %919 = vmatpush2.msra.mxu0 0.0
      %920 = vmatprep.subr.mxu0 0.0
      %921 = vmatpush2.msra.mxu0 0.0
      %922 = vmatprep.subr.mxu0 0.0
      %923 = vmatpush2.msra.mxu0 0.0
      %924 = vmatprep.subr.mxu0 0.0
      %925 = vmatpush2.msra.mxu0 0.0
      %926 = vmatprep.mubr.f32.mxu0 0.0
      %927 = vmatmul.mubr.f32.gmra.mxu0 %v860
      %v928 = vpop.f32.mrf.mxu0
      %v929 = vadd.f32 0.0, %v928
      %v930 = vpop.f32.mrf.mxu0
      %931 = vdwg.mxu0
      %933 = vrot.lane.b32.xlu0 %v929, 8
      %v934 = vpop.permute.xlu0 %933
      %vm936 = vcmask 130112
      %937 = vst.msk [vmem:[#allocation2] sm:$0xff] %vm936, %v934
      %938 = vrot.lane.b32.xlu0 %v489, 112
      %v939 = vpop.permute.xlu0 %938
      %940 = vrot.lane.b32.xlu0 %v578, 112
      %v941 = vpop.permute.xlu0 %940
      %942 = vrot.lane.b32.xlu0 %v583, 112
      %v943 = vpop.permute.xlu0 %942
      %v944 = vsel %vm586, %v939, 0
      %v946 = vsel %vm586, %v941, 0
      %v948 = vsel %vm586, %v943, 0
      %950 = vmatprep.subr.mxu0 0.0
      %951 = vmatpush1.xpose.msra.mxu0 0.0
      %952 = vmatprep.subr.mxu0 0.0
      %953 = vmatpush1.xpose.msra.mxu0 0.0
      %954 = vmatprep.subr.mxu0 0.0
      %955 = vmatpush1.xpose.msra.mxu0 0.0
      %956 = vmatprep.subr.mxu0 0.0
      %957 = vmatpush1.xpose.msra.mxu0 0.0
      %958 = vmatprep.subr.mxu0 0.0
      %959 = vmatpush1.xpose.msra.mxu0 0.0
      %960 = vmatprep.subr.mxu0 0.0
      %961 = vmatpush1.xpose.msra.mxu0 0.0
      %962 = vmatprep.subr.mxu0 0.0
      %963 = vmatpush1.xpose.msra.mxu0 0.0
      %964 = vmatprep.subr.mxu0 0.0
      %965 = vmatpush1.xpose.msra.mxu0 0.0
      %966 = vmatprep.subr.mxu0 0.0
      %967 = vmatpush1.xpose.msra.mxu0 0.0
      %968 = vmatprep.subr.mxu0 0.0
      %969 = vmatpush1.xpose.msra.mxu0 0.0
      %970 = vmatprep.subr.mxu0 0.0
      %971 = vmatpush1.xpose.msra.mxu0 0.0
      %972 = vmatprep.subr.mxu0 0.0
      %973 = vmatpush1.xpose.msra.mxu0 0.0
      %974 = vmatprep.subr.mxu0 0.0
      %975 = vmatpush1.xpose.msra.mxu0 0.0
      %976 = vmatprep.subr.mxu0 0.0
      %977 = vmatpush1.xpose.msra.mxu0 0.0
      %978 = vmatprep.subr.mxu0 0.0
      %979 = vmatpush1.xpose.msra.mxu0 %v948
      %980 = vmatprep.subr.mxu0 0.0
      %981 = vmatpush1.xpose.msra.mxu0 %v946
      %982 = vmatprep.subr.mxu0 0.0
      %983 = vmatpush2.xpose.msra.mxu0 0.0
      %984 = vmatprep.subr.mxu0 0.0
      %985 = vmatpush2.xpose.msra.mxu0 0.0
      %986 = vmatprep.subr.mxu0 0.0
      %987 = vmatpush2.xpose.msra.mxu0 0.0
      %988 = vmatprep.subr.mxu0 0.0
      %989 = vmatpush2.xpose.msra.mxu0 0.0
      %990 = vmatprep.subr.mxu0 0.0
      %991 = vmatpush2.xpose.msra.mxu0 0.0
      %992 = vmatprep.subr.mxu0 0.0
      %993 = vmatpush2.xpose.msra.mxu0 0.0
      %994 = vmatprep.subr.mxu0 0.0
      %995 = vmatpush2.xpose.msra.mxu0 0.0
      %996 = vmatprep.subr.mxu0 0.0
      %997 = vmatpush2.xpose.msra.mxu0 0.0
      %998 = vmatprep.subr.mxu0 0.0
      %999 = vmatpush2.xpose.msra.mxu0 0.0
      %1000 = vmatprep.subr.mxu0 0.0
      %1001 = vmatpush2.xpose.msra.mxu0 0.0
      %1002 = vmatprep.subr.mxu0 0.0
      %1003 = vmatpush2.xpose.msra.mxu0 0.0
      %1004 = vmatprep.subr.mxu0 0.0
      %1005 = vmatpush2.xpose.msra.mxu0 0.0
      %1006 = vmatprep.subr.mxu0 0.0
      %1007 = vmatpush2.xpose.msra.mxu0 0.0
      %1008 = vmatprep.subr.mxu0 0.0
      %1009 = vmatpush2.xpose.msra.mxu0 0.0
      %1010 = vmatprep.subr.mxu0 0.0
      %1011 = vmatpush2.xpose.msra.mxu0 0.0
      %1012 = vmatprep.subr.mxu0 0.0
      %1013 = vmatpush2.xpose.msra.mxu0 0.0
      %1014 = vmatprep.mubr.f32.mxu0 0.0
      %1015 = vmatmul.mubr.f32.gmra.mxu0 %v944
      %v1016 = vpop.f32.mrf.mxu0
      %v1017 = vadd.f32 0.0, %v1016
      %v1018 = vpop.f32.mrf.mxu0
      %1019 = vdwg.mxu0
      %v1020 = vmul.f32 %v1017, 0.35355338
      %v1021 = vsel %vm667, %v1020, -inf
      %1022 = vmax.xlane.f32.xlu0 %v1021
      %v1023 = vpop.xlane.xlu0 %1022
      %v1024 = vsub.f32 %v1020, %v1023
      %v1025 = vmul.f32 %v1024, 1.442695
      %v1026 = vpow.pop %v1025
      %v1027 = vsel %vm667, %v1026, 0.0
      %1028 = vadd.xlane.f32.xlu0 %v1027
      %v1029 = vpop.xlane.xlu0 %1028
      %v1030 = vrcp.pop %v1029
      %v1031 = vmul.f32 %v1026, %v1030
      %1032 = vrot.lane.b32.xlu0 %v578, 80
      %v1033 = vpop.permute.xlu0 %1032
      %1034 = vrot.lane.b32.xlu0 %v583, 80
      %v1035 = vpop.permute.xlu0 %1034
      %v1039 = vsel %vm667, %v1031, 0
      %1041 = vmatprep.subr.mxu0 0.0
      %1042 = vmatpush1.msra.mxu0 0.0
      %1043 = vmatprep.subr.mxu0 0.0
      %1044 = vmatpush1.msra.mxu0 0.0
      %1045 = vmatprep.subr.mxu0 0.0
      %1046 = vmatpush1.msra.mxu0 0.0
      %1047 = vmatprep.subr.mxu0 0.0
      %1048 = vmatpush1.msra.mxu0 0.0
      %1049 = vmatprep.subr.mxu0 0.0
      %1050 = vmatpush1.msra.mxu0 0.0
      %1051 = vmatprep.subr.mxu0 0.0
      %1052 = vmatpush1.msra.mxu0 0.0
      %1053 = vmatprep.subr.mxu0 0.0
      %1054 = vmatpush1.msra.mxu0 0.0
      %1055 = vmatprep.subr.mxu0 0.0
      %1056 = vmatpush1.msra.mxu0 0.0
      %1057 = vmatprep.subr.mxu0 0.0
      %1058 = vmatpush1.msra.mxu0 0.0
      %1059 = vmatprep.subr.mxu0 0.0
      %1060 = vmatpush1.msra.mxu0 0.0
      %1061 = vmatprep.subr.mxu0 0.0
      %1062 = vmatpush1.msra.mxu0 0.0
      %1063 = vmatprep.subr.mxu0 0.0
      %1064 = vmatpush1.msra.mxu0 0.0
      %1065 = vmatprep.subr.mxu0 0.0
      %1066 = vmatpush1.msra.mxu0 0.0
      %1067 = vmatprep.subr.mxu0 0.0
      %1068 = vmatpush1.msra.mxu0 0.0
      %1069 = vmatprep.subr.mxu0 0.0
      %1070 = vmatpush1.msra.mxu0 %v1035
      %1071 = vmatprep.subr.mxu0 0.0
      %1072 = vmatpush1.msra.mxu0 %v1033
      %1073 = vmatprep.subr.mxu0 0.0
      %1074 = vmatpush2.msra.mxu0 0.0
      %1075 = vmatprep.subr.mxu0 0.0
      %1076 = vmatpush2.msra.mxu0 0.0
      %1077 = vmatprep.subr.mxu0 0.0
      %1078 = vmatpush2.msra.mxu0 0.0
      %1079 = vmatprep.subr.mxu0 0.0
      %1080 = vmatpush2.msra.mxu0 0.0
      %1081 = vmatprep.subr.mxu0 0.0
      %1082 = vmatpush2.msra.mxu0 0.0
      %1083 = vmatprep.subr.mxu0 0.0
      %1084 = vmatpush2.msra.mxu0 0.0
      %1085 = vmatprep.subr.mxu0 0.0
      %1086 = vmatpush2.msra.mxu0 0.0
      %1087 = vmatprep.subr.mxu0 0.0
      %1088 = vmatpush2.msra.mxu0 0.0
      %1089 = vmatprep.subr.mxu0 0.0
      %1090 = vmatpush2.msra.mxu0 0.0
      %1091 = vmatprep.subr.mxu0 0.0
      %1092 = vmatpush2.msra.mxu0 0.0
      %1093 = vmatprep.subr.mxu0 0.0
      %1094 = vmatpush2.msra.mxu0 0.0
      %1095 = vmatprep.subr.mxu0 0.0
      %1096 = vmatpush2.msra.mxu0 0.0
      %1097 = vmatprep.subr.mxu0 0.0
      %1098 = vmatpush2.msra.mxu0 0.0
      %1099 = vmatprep.subr.mxu0 0.0
      %1100 = vmatpush2.msra.mxu0 0.0
      %1101 = vmatprep.subr.mxu0 0.0
      %1102 = vmatpush2.msra.mxu0 0.0
      %1103 = vmatprep.subr.mxu0 0.0
      %1104 = vmatpush2.msra.mxu0 0.0
      %1105 = vmatprep.mubr.f32.mxu0 0.0
      %1106 = vmatmul.mubr.f32.gmra.mxu0 %v1039
      %v1107 = vpop.f32.mrf.mxu0
      %v1108 = vadd.f32 0.0, %v1107
      %v1109 = vpop.f32.mrf.mxu0
      %1110 = vdwg.mxu0
      %1112 = vrot.lane.b32.xlu0 %v1108, 16
      %v1113 = vpop.permute.xlu0 %1112
      %vm1115 = vcmask 195712
      %1116 = vst.msk [vmem:[#allocation2] sm:$0xff] %vm1115, %v1113
      %1117 = vrot.lane.b32.xlu0 %v489, 104
      %v1118 = vpop.permute.xlu0 %1117
      %1119 = vrot.lane.b32.xlu0 %v578, 104
      %v1120 = vpop.permute.xlu0 %1119
      %1121 = vrot.lane.b32.xlu0 %v583, 104
      %v1122 = vpop.permute.xlu0 %1121
      %v1123 = vsel %vm586, %v1118, 0
      %v1125 = vsel %vm586, %v1120, 0
      %v1127 = vsel %vm586, %v1122, 0
      %1129 = vmatprep.subr.mxu0 0.0
      %1130 = vmatpush1.xpose.msra.mxu0 0.0
      %1131 = vmatprep.subr.mxu0 0.0
      %1132 = vmatpush1.xpose.msra.mxu0 0.0
      %1133 = vmatprep.subr.mxu0 0.0
      %1134 = vmatpush1.xpose.msra.mxu0 0.0
      %1135 = vmatprep.subr.mxu0 0.0
      %1136 = vmatpush1.xpose.msra.mxu0 0.0
      %1137 = vmatprep.subr.mxu0 0.0
      %1138 = vmatpush1.xpose.msra.mxu0 0.0
      %1139 = vmatprep.subr.mxu0 0.0
      %1140 = vmatpush1.xpose.msra.mxu0 0.0
      %1141 = vmatprep.subr.mxu0 0.0
      %1142 = vmatpush1.xpose.msra.mxu0 0.0
      %1143 = vmatprep.subr.mxu0 0.0
      %1144 = vmatpush1.xpose.msra.mxu0 0.0
      %1145 = vmatprep.subr.mxu0 0.0
      %1146 = vmatpush1.xpose.msra.mxu0 0.0
      %1147 = vmatprep.subr.mxu0 0.0
      %1148 = vmatpush1.xpose.msra.mxu0 0.0
      %1149 = vmatprep.subr.mxu0 0.0
      %1150 = vmatpush1.xpose.msra.mxu0 0.0
      %1151 = vmatprep.subr.mxu0 0.0
      %1152 = vmatpush1.xpose.msra.mxu0 0.0
      %1153 = vmatprep.subr.mxu0 0.0
      %1154 = vmatpush1.xpose.msra.mxu0 0.0
      %1155 = vmatprep.subr.mxu0 0.0
      %1156 = vmatpush1.xpose.msra.mxu0 0.0
      %1157 = vmatprep.subr.mxu0 0.0
      %1158 = vmatpush1.xpose.msra.mxu0 %v1127
      %1159 = vmatprep.subr.mxu0 0.0
      %1160 = vmatpush1.xpose.msra.mxu0 %v1125
      %1161 = vmatprep.subr.mxu0 0.0
      %1162 = vmatpush2.xpose.msra.mxu0 0.0
      %1163 = vmatprep.subr.mxu0 0.0
      %1164 = vmatpush2.xpose.msra.mxu0 0.0
      %1165 = vmatprep.subr.mxu0 0.0
      %1166 = vmatpush2.xpose.msra.mxu0 0.0
      %1167 = vmatprep.subr.mxu0 0.0
      %1168 = vmatpush2.xpose.msra.mxu0 0.0
      %1169 = vmatprep.subr.mxu0 0.0
      %1170 = vmatpush2.xpose.msra.mxu0 0.0
      %1171 = vmatprep.subr.mxu0 0.0
      %1172 = vmatpush2.xpose.msra.mxu0 0.0
      %1173 = vmatprep.subr.mxu0 0.0
      %1174 = vmatpush2.xpose.msra.mxu0 0.0
      %1175 = vmatprep.subr.mxu0 0.0
      %1176 = vmatpush2.xpose.msra.mxu0 0.0
      %1177 = vmatprep.subr.mxu0 0.0
      %1178 = vmatpush2.xpose.msra.mxu0 0.0
      %1179 = vmatprep.subr.mxu0 0.0
      %1180 = vmatpush2.xpose.msra.mxu0 0.0
      %1181 = vmatprep.subr.mxu0 0.0
      %1182 = vmatpush2.xpose.msra.mxu0 0.0
      %1183 = vmatprep.subr.mxu0 0.0
      %1184 = vmatpush2.xpose.msra.mxu0 0.0
      %1185 = vmatprep.subr.mxu0 0.0
      %1186 = vmatpush2.xpose.msra.mxu0 0.0
      %1187 = vmatprep.subr.mxu0 0.0
      %1188 = vmatpush2.xpose.msra.mxu0 0.0
      %1189 = vmatprep.subr.mxu0 0.0
      %1190 = vmatpush2.xpose.msra.mxu0 0.0
      %1191 = vmatprep.subr.mxu0 0.0
      %1192 = vmatpush2.xpose.msra.mxu0 0.0
      %1193 = vmatprep.mubr.f32.mxu0 0.0
      %1194 = vmatmul.mubr.f32.gmra.mxu0 %v1123
      %v1195 = vpop.f32.mrf.mxu0
      %v1196 = vadd.f32 0.0, %v1195
      %v1197 = vpop.f32.mrf.mxu0
      %1198 = vdwg.mxu0
      %v1199 = vmul.f32 %v1196, 0.35355338
      %v1200 = vsel %vm667, %v1199, -inf
      %1201 = vmax.xlane.f32.xlu0 %v1200
      %v1202 = vpop.xlane.xlu0 %1201
      %v1203 = vsub.f32 %v1199, %v1202
      %v1204 = vmul.f32 %v1203, 1.442695
      %v1205 = vpow.pop %v1204
      %v1206 = vsel %vm667, %v1205, 0.0
      %1207 = vadd.xlane.f32.xlu0 %v1206
      %v1208 = vpop.xlane.xlu0 %1207
      %v1209 = vrcp.pop %v1208
      %v1210 = vmul.f32 %v1205, %v1209
      %1211 = vrot.lane.b32.xlu0 %v578, 72
      %v1212 = vpop.permute.xlu0 %1211
      %1213 = vrot.lane.b32.xlu0 %v583, 72
      %v1214 = vpop.permute.xlu0 %1213
      %v1218 = vsel %vm667, %v1210, 0
      %1220 = vmatprep.subr.mxu0 0.0
      %1221 = vmatpush1.msra.mxu0 0.0
      %1222 = vmatprep.subr.mxu0 0.0
      %1223 = vmatpush1.msra.mxu0 0.0
      %1224 = vmatprep.subr.mxu0 0.0
      %1225 = vmatpush1.msra.mxu0 0.0
      %1226 = vmatprep.subr.mxu0 0.0
      %1227 = vmatpush1.msra.mxu0 0.0
      %1228 = vmatprep.subr.mxu0 0.0
      %1229 = vmatpush1.msra.mxu0 0.0
      %1230 = vmatprep.subr.mxu0 0.0
      %1231 = vmatpush1.msra.mxu0 0.0
      %1232 = vmatprep.subr.mxu0 0.0
      %1233 = vmatpush1.msra.mxu0 0.0
      %1234 = vmatprep.subr.mxu0 0.0
      %1235 = vmatpush1.msra.mxu0 0.0
      %1236 = vmatprep.subr.mxu0 0.0
      %1237 = vmatpush1.msra.mxu0 0.0
      %1238 = vmatprep.subr.mxu0 0.0
      %1239 = vmatpush1.msra.mxu0 0.0
      %1240 = vmatprep.subr.mxu0 0.0
      %1241 = vmatpush1.msra.mxu0 0.0
      %1242 = vmatprep.subr.mxu0 0.0
      %1243 = vmatpush1.msra.mxu0 0.0
      %1244 = vmatprep.subr.mxu0 0.0
      %1245 = vmatpush1.msra.mxu0 0.0
      %1246 = vmatprep.subr.mxu0 0.0
      %1247 = vmatpush1.msra.mxu0 0.0
      %1248 = vmatprep.subr.mxu0 0.0
      %1249 = vmatpush1.msra.mxu0 %v1214
      %1250 = vmatprep.subr.mxu0 0.0
      %1251 = vmatpush1.msra.mxu0 %v1212
      %1252 = vmatprep.subr.mxu0 0.0
      %1253 = vmatpush2.msra.mxu0 0.0
      %1254 = vmatprep.subr.mxu0 0.0
      %1255 = vmatpush2.msra.mxu0 0.0
      %1256 = vmatprep.subr.mxu0 0.0
      %1257 = vmatpush2.msra.mxu0 0.0
      %1258 = vmatprep.subr.mxu0 0.0
      %1259 = vmatpush2.msra.mxu0 0.0
      %1260 = vmatprep.subr.mxu0 0.0
      %1261 = vmatpush2.msra.mxu0 0.0
      %1262 = vmatprep.subr.mxu0 0.0
      %1263 = vmatpush2.msra.mxu0 0.0
      %1264 = vmatprep.subr.mxu0 0.0
      %1265 = vmatpush2.msra.mxu0 0.0
      %1266 = vmatprep.subr.mxu0 0.0
      %1267 = vmatpush2.msra.mxu0 0.0
      %1268 = vmatprep.subr.mxu0 0.0
      %1269 = vmatpush2.msra.mxu0 0.0
      %1270 = vmatprep.subr.mxu0 0.0
      %1271 = vmatpush2.msra.mxu0 0.0
      %1272 = vmatprep.subr.mxu0 0.0
      %1273 = vmatpush2.msra.mxu0 0.0
      %1274 = vmatprep.subr.mxu0 0.0
      %1275 = vmatpush2.msra.mxu0 0.0
      %1276 = vmatprep.subr.mxu0 0.0
      %1277 = vmatpush2.msra.mxu0 0.0
      %1278 = vmatprep.subr.mxu0 0.0
      %1279 = vmatpush2.msra.mxu0 0.0
      %1280 = vmatprep.subr.mxu0 0.0
      %1281 = vmatpush2.msra.mxu0 0.0
      %1282 = vmatprep.subr.mxu0 0.0
      %1283 = vmatpush2.msra.mxu0 0.0
      %1284 = vmatprep.mubr.f32.mxu0 0.0
      %1285 = vmatmul.mubr.f32.gmra.mxu0 %v1218
      %v1286 = vpop.f32.mrf.mxu0
      %v1287 = vadd.f32 0.0, %v1286
      %v1288 = vpop.f32.mrf.mxu0
      %1289 = vdwg.mxu0
      %1291 = vrot.lane.b32.xlu0 %v1287, 24
      %v1292 = vpop.permute.xlu0 %1291
      %vm1294 = vcmask 261312
      %1295 = vst.msk [vmem:[#allocation2] sm:$0xff] %vm1294, %v1292
      %v1296 = vld [vmem:[#allocation2] sm:$0xff]
      %v1297 = vld [vmem:[%s6] sm:$0xff]
      %v1298 = vld [vmem:[%s6 + $0x8] sm:$0xff]
      %v1299 = vld [vmem:[%s6 + $0x10] sm:$0xff]
      %v1300 = vld [vmem:[%s6 + $0x18] sm:$0xff]
      %v1302 = vsel %vm418, %v1296, 0
      %1304 = vmatprep.subr.mxu0 0.0
      %1305 = vmatpush1.msra.mxu0 0.0
      %1306 = vmatprep.subr.mxu0 0.0
      %1307 = vmatpush1.msra.mxu0 0.0
      %1308 = vmatprep.subr.mxu0 0.0
      %1309 = vmatpush1.msra.mxu0 0.0
      %1310 = vmatprep.subr.mxu0 0.0
      %1311 = vmatpush1.msra.mxu0 0.0
      %1312 = vmatprep.subr.mxu0 0.0
      %1313 = vmatpush1.msra.mxu0 0.0
      %1314 = vmatprep.subr.mxu0 0.0
      %1315 = vmatpush1.msra.mxu0 0.0
      %1316 = vmatprep.subr.mxu0 0.0
      %1317 = vmatpush1.msra.mxu0 0.0
      %1318 = vmatprep.subr.mxu0 0.0
      %1319 = vmatpush1.msra.mxu0 0.0
      %1320 = vmatprep.subr.mxu0 0.0
      %1321 = vmatpush1.msra.mxu0 0.0
      %1322 = vmatprep.subr.mxu0 0.0
      %1323 = vmatpush1.msra.mxu0 0.0
      %1324 = vmatprep.subr.mxu0 0.0
      %1325 = vmatpush1.msra.mxu0 0.0
      %1326 = vmatprep.subr.mxu0 0.0
      %1327 = vmatpush1.msra.mxu0 0.0
      %1328 = vmatprep.subr.mxu0 0.0
      %1329 = vmatpush1.msra.mxu0 %v1300
      %1330 = vmatprep.subr.mxu0 0.0
      %1331 = vmatpush1.msra.mxu0 %v1299
      %1332 = vmatprep.subr.mxu0 0.0
      %1333 = vmatpush1.msra.mxu0 %v1298
      %1334 = vmatprep.subr.mxu0 0.0
      %1335 = vmatpush1.msra.mxu0 %v1297
      %1336 = vmatprep.subr.mxu0 0.0
      %1337 = vmatpush2.msra.mxu0 0.0
      %1338 = vmatprep.subr.mxu0 0.0
      %1339 = vmatpush2.msra.mxu0 0.0
      %1340 = vmatprep.subr.mxu0 0.0
      %1341 = vmatpush2.msra.mxu0 0.0
      %1342 = vmatprep.subr.mxu0 0.0
      %1343 = vmatpush2.msra.mxu0 0.0
      %1344 = vmatprep.subr.mxu0 0.0
      %1345 = vmatpush2.msra.mxu0 0.0
      %1346 = vmatprep.subr.mxu0 0.0
      %1347 = vmatpush2.msra.mxu0 0.0
      %1348 = vmatprep.subr.mxu0 0.0
      %1349 = vmatpush2.msra.mxu0 0.0
      %1350 = vmatprep.subr.mxu0 0.0
      %1351 = vmatpush2.msra.mxu0 0.0
      %1352 = vmatprep.subr.mxu0 0.0
      %1353 = vmatpush2.msra.mxu0 0.0
      %1354 = vmatprep.subr.mxu0 0.0
      %1355 = vmatpush2.msra.mxu0 0.0
      %1356 = vmatprep.subr.mxu0 0.0
      %1357 = vmatpush2.msra.mxu0 0.0
      %1358 = vmatprep.subr.mxu0 0.0
      %1359 = vmatpush2.msra.mxu0 0.0
      %1360 = vmatprep.subr.mxu0 0.0
      %1361 = vmatpush2.msra.mxu0 0.0
      %1362 = vmatprep.subr.mxu0 0.0
      %1363 = vmatpush2.msra.mxu0 0.0
      %1364 = vmatprep.subr.mxu0 0.0
      %1365 = vmatpush2.msra.mxu0 0.0
      %1366 = vmatprep.subr.mxu0 0.0
      %1367 = vmatpush2.msra.mxu0 0.0
      %1368 = vmatprep.mubr.f32.mxu0 0.0
      %1369 = vmatmul.mubr.f32.gmra.mxu0 %v1302
      %v1370 = vpop.f32.mrf.mxu0
      %v1371 = vadd.f32 0.0, %v1370
      %v1372 = vpop.f32.mrf.mxu0
      %1373 = vdwg.mxu0
      %v1374 = vadd.f32 %v406, %v1371
      %v1375 = vld [vmem:[%s7] sm:$0x1]
      %v1377 = vlaneseq
      %v1378 = vshrl.u32 %v1377, 7
      %v1379 = vsub.s32 0, %v1378
      %v1380 = vrot.slane %v1375, %v1379
      %v1382 = vadd.f32 %v1374, %v1380
      %v1383 = vsel %vm418, %v1382, 0.0
      %1384 = vadd.xlane.f32.xlu0 %v1383
      %v1385 = vpop.xlane.xlu0 %1384
      %v1386 = vrcp.pop 32.0
      %v1387 = vmul.f32 %v1385, %v1386
      %v1388 = vsub.f32 %v1382, %v1387
      %v1389 = vmul.f32 %v1388, %v1388
      %v1390 = vsel %vm418, %v1389, 0.0
      %1391 = vadd.xlane.f32.xlu0 %v1390
      %v1392 = vpop.xlane.xlu0 %1391
      %v1393 = vmul.f32 %v1392, %v1386
      %v1394 = vadd.f32 %v1393, 1e-05
      %v1395 = vrsqrt.pop %v1394
      %v1396 = vmul.f32 %v1388, %v1395
      %v1397 = vld [vmem:[%s8] sm:$0x1]
      %v1399 = vlaneseq
      %v1400 = vshrl.u32 %v1399, 7
      %v1401 = vsub.s32 0, %v1400
      %v1402 = vrot.slane %v1397, %v1401
      %v1404 = vmul.f32 %v1396, %v1402
      %v1405 = vld [vmem:[%s9] sm:$0x1]
      %v1407 = vlaneseq
      %v1408 = vshrl.u32 %v1407, 7
      %v1409 = vsub.s32 0, %v1408
      %v1410 = vrot.slane %v1405, %v1409
      %v1412 = vadd.f32 %v1404, %v1410
      %1413 = vst.msk [vmem:[%s405] sm:$0xff] %vm418, %v1412
      %p1414 = scmp.lt.s32.totalorder %s25, 1
      %s1415 = scalar_select %p1414, %s25, 1
      %p1416 = scmp.lt.s32.totalorder %s26, 0
      %s1417 = scalar_select %p1416, %s26, 0
      %s1418 = sadd.s32 %s1417, %s1415
      %s1419 = smul.addr %s1418, 8
      %s1420 = scalar_lea.vmem %s10, %s1419
      // Predicated region
      $region61: #{decoder_forward.8} parent=59 // pred_check
        %p1421 = pneg %p275
      $region62: #{decoder_forward.8} parent=59 // pred_check_branch
        %1423 = sbr.rel (%p1421) target = $region64
      $region63: #{decoder_forward.8} parent=59 // pred_region
        _
      $region64: #{decoder_forward.8} parent=59 // pred_fallthru
        _
    $region60: #{decoder_forward.8} parent=5 // pred_fallthru
      _
    %p1424 = scmp.le.s32.totalorder 2, %s16
    // Predicated region
    $region65: #{decoder_forward.8} parent=5 // pred_check
      %p1425 = pneg %p1424
    $region66: #{decoder_forward.8} parent=5 // pred_check_branch
      %1427 = sbr.rel (%p1425) target = $region68
    $region67: #{decoder_forward.8} parent=5 // pred_region
      %s1428 = ssub.s32 %s16, 2
      // Predicated region
      $region69: #{decoder_forward.8} parent=67 // pred_check
        %p1429 = pneg %p281
      $region70: #{decoder_forward.8} parent=67 // pred_check_branch
        %1431 = sbr.rel (%p1429) target = $region72
      $region71: #{decoder_forward.8} parent=67 // pred_region
        %p1432 = scmp.lt.s32.totalorder %s27, 1
        %s1433 = scalar_select %p1432, %s27, 1
        %p1434 = scmp.lt.s32.totalorder %s28, 0
        %s1435 = scalar_select %p1434, %s28, 0
        %s1436 = sadd.s32 %s1435, %s1433
        %s1437 = smul.addr %s1436, 8
        %s1438 = scalar_lea.vmem %s10, %s1437
      $region72: #{decoder_forward.8} parent=67 // pred_fallthru
        _
    $region68: #{decoder_forward.8} parent=5 // pred_fallthru
      _
  $region6: #{decoder_forward.8} parent=0 // loop_footer
    %s20 = sadd.s32 1, %s16
  $region7: #{decoder_forward.8} parent=0 // loop_footer_branch
    %15 = sbr.rel target = $region3
  $region8: #{decoder_forward.8} parent=0 // loop_exit
    _

// kernel: decoder_forward.7
$region0: #{decoder_forward.7}
  #allocation0 [shape = 'u32[]', space=smem, size = 0x4, offset = 0x4, fixed_abs, tag = 'smem constant byte address 0x4 - core index']
  #allocation1 [shape = 'u32[144,128]{1,0:T(1,128)}', space=vmem, size = 0x12000, scoped, tag = 'internal scratch']
  #allocation2 [shape = 'f32[8,32]{1,0:T(8,128)}', space=vmem, size = 0x1000, scoped, tag = 'scratch operand']
  %s0 = inlined_call_operand.vmem [shape: f32[2,8,32], index: 0, kind: input, shape index: {}, may-alias: {0,1}]
  %s1 = inlined_call_operand.vmem [shape: f32[2,8,32], index: 1, kind: input, shape index: {}, may-alias: {0,1}]
  %s2 = inlined_call_operand.vmem [shape: f32[32,32], index: 2, kind: input, shape index: {}]
  %s3 = inlined_call_operand.vmem [shape: f32[1,32], index: 3, kind: input, shape index: {}]
  %s4 = inlined_call_operand.vmem [shape: f32[32,64], index: 4, kind: input, shape index: {}]
  %s5 = inlined_call_operand.vmem [shape: f32[1,64], index: 5, kind: input, shape index: {}]
  %s6 = inlined_call_operand.hbm [shape: f32[32,32], index: 6, kind: input, shape index: {}]
  %s7 = inlined_call_operand.vmem [shape: f32[1,32], index: 7, kind: input, shape index: {}]
  %s8 = inlined_call_operand.hbm [shape: f32[1,32], index: 8, kind: input, shape index: {}]
  %s9 = inlined_call_operand.hbm [shape: f32[1,32], index: 9, kind: input, shape index: {}]
  %s10 = inlined_call_operand.vmem [shape: f32[2,8,32], index: 10, kind: output, shape index: {}]
  %s11 = sld [smem:[#allocation0]]
  $region85: #{decoder_forward.7} parent=0
    _
  %s13 = ssub.s32 1, %s11
  %s14 = scalar_select 0, %s13, %s11
  $region1: #{decoder_forward.7} parent=0
    #allocation3 [shape = 'u8[16384]{0}', space=vmem, size = 0x4000, scoped, tag = 'input window, operand 6, single buffered']
    #allocation4 [shape = 's32[2]{0}', space=sflag, size = 0x8, scoped, tag = 'scoped memory for decoder_forward.7']
    #allocation5 [shape = 'u8[512]{0}', space=vmem, size = 0x400, scoped, tag = 'input window, operand 8, single buffered']
    #allocation6 [shape = 's32[1]{0}', space=sflag, size = 0x4, scoped, tag = 'scoped memory for decoder_forward.7']
    #allocation7 [shape = 'u8[512]{0}', space=vmem, size = 0x400, scoped, tag = 'input window, operand 9, single buffered']
    %15 = vsyncpa [#allocation4], 0
    %16 = vsyncpa [#allocation6], 0
    loop: start=0, step=1, limit=4
    $region2: #{decoder_forward.7} parent=1 // loop_pre_header
      _
    $region3: #{decoder_forward.7} parent=1 // loop_header
      %s18 = sphi 0, %s22
      %p19 = scmp.ge.s32.totalorder %s18, 4
      %s25 = sphi 0, %s37
      %s26 = sphi 0, %s33
      %s27 = sphi 0, %s25
      %s28 = sphi 0, %s26
      %s29 = sphi 0, %s27
      %s30 = sphi 0, %s28
      %s42 = sphi 0, %s44
      %s45 = sphi 0, %s42
      %s46 = sphi 0, %s45
      %s62 = sphi 0, %s46
      %s68 = sphi 0, %s70
      %s71 = sphi 0, %s68
      %s72 = sphi 0, %s71
      %s88 = sphi 0, %s72
      %s92 = sphi 0, %s92
      %s94 = sphi 0, %s92
      %s95 = sphi 0, %s94
      %s109 = sphi 0, %s95
      %s113 = sphi 0, %s113
      %s115 = sphi 0, %s113
      %s116 = sphi 0, %s115
      %s130 = sphi 0, %s116
      %s134 = sphi 0, %s134
      %s136 = sphi 0, %s134
      %s137 = sphi 0, %s136
      %s151 = sphi 0, %s137
      %s155 = sphi 0, %s155
      %s157 = sphi 0, %s155
      %s158 = sphi 0, %s157
      %s172 = sphi 0, %s158
      %s176 = sphi 0, %s176
      %s178 = sphi 0, %s176
      %s179 = sphi 0, %s178
      %s193 = sphi 0, %s179
      %s197 = sphi 0, %s197
      %s199 = sphi 0, %s197
      %s200 = sphi 0, %s199
      %s214 = sphi 0, %s200
      %s218 = sphi 0, %s218
      %s220 = sphi 0, %s218
      %s221 = sphi 0, %s220
      %s235 = sphi 0, %s221
      %s239 = sphi 0, %s239
      %s241 = sphi 0, %s239
      %s242 = sphi 0, %s241
      %s256 = sphi 0, %s242
      %s264 = sphi 0, %s266
      %s267 = sphi 0, %s264
      %s268 = sphi 0, %s267
      %s284 = sphi 0, %s268
    $region4: #{decoder_forward.7} parent=1 // loop_header_branch
      %21 = sbr.rel (%p19) target = $region8
    $region5: #{decoder_forward.7} parent=1 // loop_body
      %s23 = ssub.s32 %s18, 1
      %s24 = ssub.s32 %s18, 2
      %s31 = sadd.s32 1, %s26
      %p32 = scmp.ge.s32.totalorder %s31, 1
      %s33 = scalar_select %p32, 0, %s31
      %s34 = sadd.s32 1, %s25
      %s35 = scalar_select %p32, %s34, %s25
      %p36 = scmp.ge.s32.totalorder %s35, 2
      %s37 = scalar_select %p36, 0, %s35
      %s38 = ssub.s32 %s25, %s37
      %s39 = ssub.s32 %s26, %s33
      %s40 = sor.u32 %s38, %s39
      %p41 = scmp.eq.s32.totalorder %s40, 0
      %s43 = sadd.s32 %s42, 1
      %s44 = scalar_select %p41, %s42, %s43
      %p47 = pneg %p41
      %p48 = scmp.eq.s32.totalorder %s18, 1
      %p49 = por %p47, %p48
      %p50 = scmp.ne.s32.totalorder %s42, %s45
      %p51 = scmp.eq.s32.totalorder %s18, 0
      %p52 = por %p50, %p51
      %p53 = scmp.ne.s32.totalorder %s42, %s45
      %p54 = scmp.eq.s32.totalorder %s23, 1
      %p55 = por %p53, %p54
      %p56 = scmp.ne.s32.totalorder %s45, %s46
      %p57 = scmp.eq.s32.totalorder %s23, 0
      %p58 = por %p56, %p57
      %p59 = scmp.ne.s32.totalorder %s45, %s46
      %p60 = scmp.eq.s32.totalorder %s24, 1
      %p61 = por %p59, %p60
      %p63 = scmp.ne.s32.totalorder %s46, %s62
      %p64 = scmp.eq.s32.totalorder %s24, 0
      %p65 = por %p63, %p64
      %s66 = ssub.s32 %s25, %s37
      %p67 = scmp.eq.s32.totalorder %s66, 0
      %s69 = sadd.s32 %s68, 1
      %s70 = scalar_select %p67, %s68, %s69
      %p73 = pneg %p67
      %p74 = scmp.eq.s32.totalorder %s18, 1
      %p75 = por %p73, %p74
      %p76 = scmp.ne.s32.totalorder %s68, %s71
      %p77 = scmp.eq.s32.totalorder %s18, 0
      %p78 = por %p76, %p77
      %p79 = scmp.ne.s32.totalorder %s68, %s71
      %p80 = scmp.eq.s32.totalorder %s23, 1
      %p81 = por %p79, %p80
      %p82 = scmp.ne.s32.totalorder %s71, %s72
      %p83 = scmp.eq.s32.totalorder %s23, 0
      %p84 = por %p82, %p83
      %p85 = scmp.ne.s32.totalorder %s71, %s72
      %p86 = scmp.eq.s32.totalorder %s24, 1
      %p87 = por %p85, %p86
      %p89 = scmp.ne.s32.totalorder %s72, %s88
      %p90 = scmp.eq.s32.totalorder %s24, 0
      %p91 = por %p89, %p90
      %s93 = sadd.s32 %s92, 1
      %p96 = scmp.eq.s32.totalorder %s18, 1
      %p97 = scmp.ne.s32.totalorder %s92, %s94
      %p98 = scmp.eq.s32.totalorder %s18, 0
      %p99 = por %p97, %p98
      %p100 = scmp.ne.s32.totalorder %s92, %s94
      %p101 = scmp.eq.s32.totalorder %s23, 1
      %p102 = por %p100, %p101
      %p103 = scmp.ne.s32.totalorder %s94, %s95
      %p104 = scmp.eq.s32.totalorder %s23, 0
      %p105 = por %p103, %p104
      %p106 = scmp.ne.s32.totalorder %s94, %s95
      %p107 = scmp.eq.s32.totalorder %s24, 1
      %p108 = por %p106, %p107
      %p110 = scmp.ne.s32.totalorder %s95, %s109
      %p111 = scmp.eq.s32.totalorder %s24, 0
      %p112 = por %p110, %p111
      %s114 = sadd.s32 %s113, 1
      %p117 = scmp.eq.s32.totalorder %s18, 1
      %p118 = scmp.ne.s32.totalorder %s113, %s115
      %p119 = scmp.eq.s32.totalorder %s18, 0
      %p120 = por %p118, %p119
      %p121 = scmp.ne.s32.totalorder %s113, %s115
      %p122 = scmp.eq.s32.totalorder %s23, 1
      %p123 = por %p121, %p122
      %p124 = scmp.ne.s32.totalorder %s115, %s116
      %p125 = scmp.eq.s32.totalorder %s23, 0
      %p126 = por %p124, %p125
      %p127 = scmp.ne.s32.totalorder %s115, %s116
      %p128 = scmp.eq.s32.totalorder %s24, 1
      %p129 = por %p127, %p128
      %p131 = scmp.ne.s32.totalorder %s116, %s130
      %p132 = scmp.eq.s32.totalorder %s24, 0
      %p133 = por %p131, %p132
      %s135 = sadd.s32 %s134, 1
      %p138 = scmp.eq.s32.totalorder %s18, 1
      %p139 = scmp.ne.s32.totalorder %s134, %s136
      %p140 = scmp.eq.s32.totalorder %s18, 0
      %p141 = por %p139, %p140
      %p142 = scmp.ne.s32.totalorder %s134, %s136
      %p143 = scmp.eq.s32.totalorder %s23, 1
      %p144 = por %p142, %p143
      %p145 = scmp.ne.s32.totalorder %s136, %s137
      %p146 = scmp.eq.s32.totalorder %s23, 0
      %p147 = por %p145, %p146
      %p148 = scmp.ne.s32.totalorder %s136, %s137
      %p149 = scmp.eq.s32.totalorder %s24, 1
      %p150 = por %p148, %p149
      %p152 = scmp.ne.s32.totalorder %s137, %s151
      %p153 = scmp.eq.s32.totalorder %s24, 0
      %p154 = por %p152, %p153
      %s156 = sadd.s32 %s155, 1
      %p159 = scmp.eq.s32.totalorder %s18, 1
      %p160 = scmp.ne.s32.totalorder %s155, %s157
      %p161 = scmp.eq.s32.totalorder %s18, 0
      %p162 = por %p160, %p161
      %p163 = scmp.ne.s32.totalorder %s155, %s157
      %p164 = scmp.eq.s32.totalorder %s23, 1
      %p165 = por %p163, %p164
      %p166 = scmp.ne.s32.totalorder %s157, %s158
      %p167 = scmp.eq.s32.totalorder %s23, 0
      %p168 = por %p166, %p167
      %p169 = scmp.ne.s32.totalorder %s157, %s158
      %p170 = scmp.eq.s32.totalorder %s24, 1
      %p171 = por %p169, %p170
      %p173 = scmp.ne.s32.totalorder %s158, %s172
      %p174 = scmp.eq.s32.totalorder %s24, 0
      %p175 = por %p173, %p174
      %s177 = sadd.s32 %s176, 1
      %p180 = scmp.eq.s32.totalorder %s18, 1
      %p181 = scmp.ne.s32.totalorder %s176, %s178
      %p182 = scmp.eq.s32.totalorder %s18, 0
      %p183 = por %p181, %p182
      %p184 = scmp.ne.s32.totalorder %s176, %s178
      %p185 = scmp.eq.s32.totalorder %s23, 1
      %p186 = por %p184, %p185
      %p187 = scmp.ne.s32.totalorder %s178, %s179
      %p188 = scmp.eq.s32.totalorder %s23, 0
      %p189 = por %p187, %p188
      %p190 = scmp.ne.s32.totalorder %s178, %s179
      %p191 = scmp.eq.s32.totalorder %s24, 1
      %p192 = por %p190, %p191
      %p194 = scmp.ne.s32.totalorder %s179, %s193
      %p195 = scmp.eq.s32.totalorder %s24, 0
      %p196 = por %p194, %p195
      %s198 = sadd.s32 %s197, 1
      %p201 = scmp.eq.s32.totalorder %s18, 1
      %p202 = scmp.ne.s32.totalorder %s197, %s199
      %p203 = scmp.eq.s32.totalorder %s18, 0
      %p204 = por %p202, %p203
      %p205 = scmp.ne.s32.totalorder %s197, %s199
      %p206 = scmp.eq.s32.totalorder %s23, 1
      %p207 = por %p205, %p206
      %p208 = scmp.ne.s32.totalorder %s199, %s200
      %p209 = scmp.eq.s32.totalorder %s23, 0
      %p210 = por %p208, %p209
      %p211 = scmp.ne.s32.totalorder %s199, %s200
      %p212 = scmp.eq.s32.totalorder %s24, 1
      %p213 = por %p211, %p212
      %p215 = scmp.ne.s32.totalorder %s200, %s214
      %p216 = scmp.eq.s32.totalorder %s24, 0
      %p217 = por %p215, %p216
      %s219 = sadd.s32 %s218, 1
      %p222 = scmp.eq.s32.totalorder %s18, 1
      %p223 = scmp.ne.s32.totalorder %s218, %s220
      %p224 = scmp.eq.s32.totalorder %s18, 0
      %p225 = por %p223, %p224
      %p226 = scmp.ne.s32.totalorder %s218, %s220
      %p227 = scmp.eq.s32.totalorder %s23, 1
      %p228 = por %p226, %p227
      %p229 = scmp.ne.s32.totalorder %s220, %s221
      %p230 = scmp.eq.s32.totalorder %s23, 0
      %p231 = por %p229, %p230
      %p232 = scmp.ne.s32.totalorder %s220, %s221
      %p233 = scmp.eq.s32.totalorder %s24, 1
      %p234 = por %p232, %p233
      %p236 = scmp.ne.s32.totalorder %s221, %s235
      %p237 = scmp.eq.s32.totalorder %s24, 0
      %p238 = por %p236, %p237
      %s240 = sadd.s32 %s239, 1
      %p243 = scmp.eq.s32.totalorder %s18, 1
      %p244 = scmp.ne.s32.totalorder %s239, %s241
      %p245 = scmp.eq.s32.totalorder %s18, 0
      %p246 = por %p244, %p245
      %p247 = scmp.ne.s32.totalorder %s239, %s241
      %p248 = scmp.eq.s32.totalorder %s23, 1
      %p249 = por %p247, %p248
      %p250 = scmp.ne.s32.totalorder %s241, %s242
      %p251 = scmp.eq.s32.totalorder %s23, 0
      %p252 = por %p250, %p251
      %p253 = scmp.ne.s32.totalorder %s241, %s242
      %p254 = scmp.eq.s32.totalorder %s24, 1
      %p255 = por %p253, %p254
      %p257 = scmp.ne.s32.totalorder %s242, %s256
      %p258 = scmp.eq.s32.totalorder %s24, 0
      %p259 = por %p257, %p258
      %s260 = ssub.s32 %s25, %s37
      %s261 = ssub.s32 %s26, %s33
      %s262 = sor.u32 %s260, %s261
      %p263 = scmp.eq.s32.totalorder %s262, 0
      %s265 = sadd.s32 %s264, 1
      %s266 = scalar_select %p263, %s264, %s265
      %p269 = pneg %p263
      %p270 = scmp.eq.s32.totalorder %s18, 1
      %p271 = por %p269, %p270
      %p272 = scmp.ne.s32.totalorder %s264, %s267
      %p273 = scmp.eq.s32.totalorder %s18, 0
      %p274 = por %p272, %p273
      %p275 = scmp.ne.s32.totalorder %s264, %s267
      %p276 = scmp.eq.s32.totalorder %s23, 1
      %p277 = por %p275, %p276
      %p278 = scmp.ne.s32.totalorder %s267, %s268
      %p279 = scmp.eq.s32.totalorder %s23, 0
      %p280 = por %p278, %p279
      %p281 = scmp.ne.s32.totalorder %s267, %s268
      %p282 = scmp.eq.s32.totalorder %s24, 1
      %p283 = por %p281, %p282
      %p285 = scmp.ne.s32.totalorder %s268, %s284
      %p286 = scmp.eq.s32.totalorder %s24, 0
      %p287 = por %p285, %p286
      %p288 = scmp.le.s32.totalorder 1, %s18
      %p289 = scmp.lt.s32.totalorder %s18, 3
      %p290 = pnand %p288, %p289
      %p291 = pneg %p290
      // Predicated region
      $region9: #{decoder_forward.7} parent=5 // pred_check
        _
      $region10: #{decoder_forward.7} parent=5 // pred_check_branch
        %293 = sbr.rel (%p290) target = $region12
      $region11: #{decoder_forward.7} parent=5 // pred_region
        %s294 = ssub.s32 %s18, 1
        // Predicated region
        $region13: #{decoder_forward.7} parent=11 // pred_check
          %p295 = pneg %p105
        $region14: #{decoder_forward.7} parent=11 // pred_check_branch
          %297 = sbr.rel (%p295) target = $region16
        $region15: #{decoder_forward.7} parent=11 // pred_region
          _
        $region16: #{decoder_forward.7} parent=11 // pred_fallthru
          _
        // Predicated region
        $region17: #{decoder_forward.7} parent=11 // pred_check
          %p298 = pneg %p126
        $region18: #{decoder_forward.7} parent=11 // pred_check_branch
          %300 = sbr.rel (%p298) target = $region20
        $region19: #{decoder_forward.7} parent=11 // pred_region
          _
        $region20: #{decoder_forward.7} parent=11 // pred_fallthru
          _
        // Predicated region
        $region21: #{decoder_forward.7} parent=11 // pred_check
          %p301 = pneg %p147
        $region22: #{decoder_forward.7} parent=11 // pred_check_branch
          %303 = sbr.rel (%p301) target = $region24
        $region23: #{decoder_forward.7} parent=11 // pred_region
          _
        $region24: #{decoder_forward.7} parent=11 // pred_fallthru
          _
        // Predicated region
        $region25: #{decoder_forward.7} parent=11 // pred_check
          %p304 = pneg %p168
        $region26: #{decoder_forward.7} parent=11 // pred_check_branch
          %306 = sbr.rel (%p304) target = $region28
        $region27: #{decoder_forward.7} parent=11 // pred_region
          _
        $region28: #{decoder_forward.7} parent=11 // pred_fallthru
          _
        // Predicated region
        $region29: #{decoder_forward.7} parent=11 // pred_check
          %p307 = pneg %p189
        $region30: #{decoder_forward.7} parent=11 // pred_check_branch
          %309 = sbr.rel (%p307) target = $region32
        $region31: #{decoder_forward.7} parent=11 // pred_region
          %s311 = ssub.s32 512, 512
          %312 = vsyncadd [#allocation4], %s311
          %s313 = sshll.u32 [#allocation3], 4
          %s314 = int_to_ptr.vmem [resolvable:$true] %s313
          %319 = dma.hbm_to_vmem [thread:$0]  %s6, 512, %s314, [#allocation4], 128, 128, 8
        $region32: #{decoder_forward.7} parent=11 // pred_fallthru
          _
        // Predicated region
        $region33: #{decoder_forward.7} parent=11 // pred_check
          %p320 = pneg %p210
        $region34: #{decoder_forward.7} parent=11 // pred_check_branch
          %322 = sbr.rel (%p320) target = $region36
        $region35: #{decoder_forward.7} parent=11 // pred_region
          _
        $region36: #{decoder_forward.7} parent=11 // pred_fallthru
          _
        // Predicated region
        $region37: #{decoder_forward.7} parent=11 // pred_check
          %p323 = pneg %p231
        $region38: #{decoder_forward.7} parent=11 // pred_check_branch
          %325 = sbr.rel (%p323) target = $region40
        $region39: #{decoder_forward.7} parent=11 // pred_region
          %s327 = ssub.s32 16, 16
          %328 = vsyncadd [#allocation6], %s327
          %s330 = sshll.u32 [#allocation5], 4
          %s331 = int_to_ptr.vmem [resolvable:$true] %s330
          %333 = dma.hbm_to_vmem [thread:$0]  %s8, 16, %s331, [#allocation6]
        $region40: #{decoder_forward.7} parent=11 // pred_fallthru
          _
        // Predicated region
        $region41: #{decoder_forward.7} parent=11 // pred_check
          %p334 = pneg %p252
        $region42: #{decoder_forward.7} parent=11 // pred_check_branch
          %336 = sbr.rel (%p334) target = $region44
        $region43: #{decoder_forward.7} parent=11 // pred_region
          %s338 = ssub.s32 16, 16
          %339 = vsyncadd [#allocation6], %s338
          %s341 = sshll.u32 [#allocation7], 4
          %s342 = int_to_ptr.vmem [resolvable:$true] %s341
          %344 = dma.hbm_to_vmem [thread:$0]  %s9, 16, %s342, [#allocation6]
        $region44: #{decoder_forward.7} parent=11 // pred_fallthru
          _
      $region12: #{decoder_forward.7} parent=5 // pred_fallthru
        _
      %p345 = scmp.lt.s32.totalorder %s18, 2
      // Predicated region
      $region45: #{decoder_forward.7} parent=5 // pred_check
        %p346 = pneg %p345
      $region46: #{decoder_forward.7} parent=5 // pred_check_branch
        %348 = sbr.rel (%p346) target = $region48
      $region47: #{decoder_forward.7} parent=5 // pred_region
        // Predicated region
        $region49: #{decoder_forward.7} parent=47 // pred_check
          %p349 = pneg %p52
        $region50: #{decoder_forward.7} parent=47 // pred_check_branch
          %351 = sbr.rel (%p349) target = $region52
        $region51: #{decoder_forward.7} parent=47 // pred_region
          %p352 = scmp.lt.s32.totalorder %s25, 1
          %s353 = scalar_select %p352, %s25, 1
          %p354 = scmp.lt.s32.totalorder %s26, 0
          %s355 = scalar_select %p354, %s26, 0
          %s356 = sadd.s32 %s355, %s353
          %s357 = smul.addr %s356, 8
          %s358 = scalar_lea.vmem %s0, %s357
        $region52: #{decoder_forward.7} parent=47 // pred_fallthru
          _
        // Predicated region
        $region53: #{decoder_forward.7} parent=47 // pred_check
          %p359 = pneg %p78
        $region54: #{decoder_forward.7} parent=47 // pred_check_branch
          %361 = sbr.rel (%p359) target = $region56
        $region55: #{decoder_forward.7} parent=47 // pred_region
          %p362 = scmp.lt.s32.totalorder %s25, 1
          %s363 = scalar_select %p362, %s25, 1
          %s364 = smul.addr %s363, 8
          %s365 = scalar_lea.vmem %s1, %s364
        $region56: #{decoder_forward.7} parent=47 // pred_fallthru
          _
      $region48: #{decoder_forward.7} parent=5 // pred_fallthru
        _
      %p366 = scmp.le.s32.totalorder 1, %s18
      %p367 = scmp.lt.s32.totalorder %s18, 3
      %p368 = pnand %p366, %p367
      %p369 = pneg %p368
      // Predicated region
      $region57: #{decoder_forward.7} parent=5 // pred_check
        _
      $region58: #{decoder_forward.7} parent=5 // pred_check_branch
        %371 = sbr.rel (%p368) target = $region60
      $region59: #{decoder_forward.7} parent=5 // pred_region
        %s372 = ssub.s32 %s18, 1
        // Predicated region
        $region61: #{decoder_forward.7} parent=59 // pred_check
          %p373 = pneg %p189
        $region62: #{decoder_forward.7} parent=59 // pred_check_branch
          %375 = sbr.rel (%p373) target = $region64
        $region63: #{decoder_forward.7} parent=59 // pred_region
          %376 = dma.done [#allocation4], 512
        $region64: #{decoder_forward.7} parent=59 // pred_fallthru
          _
        // Predicated region
        $region65: #{decoder_forward.7} parent=59 // pred_check
          %p377 = pneg %p231
        $region66: #{decoder_forward.7} parent=59 // pred_check_branch
          %379 = sbr.rel (%p377) target = $region68
        $region67: #{decoder_forward.7} parent=59 // pred_region
          %380 = dma.done [#allocation6], 16
        $region68: #{decoder_forward.7} parent=59 // pred_fallthru
          _
        // Predicated region
        $region69: #{decoder_forward.7} parent=59 // pred_check
          %p381 = pneg %p252
        $region70: #{decoder_forward.7} parent=59 // pred_check_branch
          %383 = sbr.rel (%p381) target = $region72
        $region71: #{decoder_forward.7} parent=59 // pred_region
          %384 = dma.done [#allocation6], 16
        $region72: #{decoder_forward.7} parent=59 // pred_fallthru
          _
        %p385 = scmp.lt.s32.totalorder %s27, 1
        %s386 = scalar_select %p385, %s27, 1
        %p387 = scmp.lt.s32.totalorder %s28, 0
        %s388 = scalar_select %p387, %s28, 0
        %s389 = sadd.s32 %s388, %s386
        %s390 = smul.addr %s389, 8
        %s391 = scalar_lea.vmem %s0, %s390
        %p392 = pneg %p58
        %p393 = pneg %p55
        %p394 = scmp.lt.s32.totalorder %s27, 1
        %s395 = scalar_select %p394, %s27, 1
        %s396 = smul.addr %s395, 8
        %s397 = scalar_lea.vmem %s1, %s396
        %p398 = pneg %p84
        %p399 = pneg %p81
        %p400 = pneg %p105
        %p401 = pneg %p102
        %p402 = pneg %p126
        %p403 = pneg %p123
        %p404 = pneg %p147
        %p405 = pneg %p144
        %p406 = pneg %p168
        %p407 = pneg %p165
        %p408 = pneg %p189
        %p409 = pneg %p186
        %p410 = pneg %p210
        %p411 = pneg %p207
        %p412 = pneg %p231
        %p413 = pneg %p228
        %p414 = pneg %p252
        %p415 = pneg %p249
        %p416 = pneg %p280
        %p417 = pneg %p277
        %p418 = scmp.lt.s32.totalorder %s27, 1
        %s419 = scalar_select %p418, %s27, 1
        %p420 = scmp.lt.s32.totalorder %s28, 0
        %s421 = scalar_select %p420, %s28, 0
        %s422 = sadd.s32 %s421, %s419
        %s423 = smul.addr %s422, 8
        %s424 = scalar_lea.vmem %s10, %s423
        %p425 = scmp.lt.s32.totalorder %s27, 1
        %s426 = scalar_select %p425, %s27, 1
        %p427 = scmp.lt.s32.totalorder %s28, 0
        %s428 = scalar_select %p427, %s28, 0
        %s429 = sadd.s32 %s428, %s426
        %s430 = smul.addr %s429, 8
        %s431 = scalar_lea.vmem %s0, %s430
        %p432 = scmp.lt.s32.totalorder %s27, 1
        %s433 = scalar_select %p432, %s27, 1
        %s434 = smul.addr %s433, 8
        %s435 = scalar_lea.vmem %s1, %s434
        %p436 = scmp.lt.s32.totalorder %s27, 1
        %s437 = scalar_select %p436, %s27, 1
        %p438 = scmp.lt.s32.totalorder %s28, 0
        %s439 = scalar_select %p438, %s28, 0
        %s440 = sadd.s32 %s439, %s437
        %s441 = smul.addr %s440, 8
        %s442 = scalar_lea.vmem %s10, %s441
        %v443 = vld [vmem:[%s431] sm:$0xff]
        %v444 = vld [vmem:[%s2] sm:$0xff]
        %v445 = vld [vmem:[%s2 + $0x8] sm:$0xff]
        %v446 = vld [vmem:[%s2 + $0x10] sm:$0xff]
        %v447 = vld [vmem:[%s2 + $0x18] sm:$0xff]
        %v448 = vld [vmem:[%s3] sm:$0x1]
        %v450 = vlaneseq
        %v451 = vshrl.u32 %v450, 7
        %v452 = vsub.s32 0, %v451
        %v453 = vrot.slane %v448, %v452
        %vm455 = vcmask 261120
        %v457 = vsel %vm455, %v443, 0
        %459 = vmatprep.subr.mxu0 0.0
        %460 = vmatpush1.msra.mxu0 0.0
        %461 = vmatprep.subr.mxu0 0.0
        %462 = vmatpush1.msra.mxu0 0.0
        %463 = vmatprep.subr.mxu0 0.0
        %464 = vmatpush1.msra.mxu0 0.0
        %465 = vmatprep.subr.mxu0 0.0
        %466 = vmatpush1.msra.mxu0 0.0
        %467 = vmatprep.subr.mxu0 0.0
        %468 = vmatpush1.msra.mxu0 0.0
        %469 = vmatprep.subr.mxu0 0.0
        %470 = vmatpush1.msra.mxu0 0.0
        %471 = vmatprep.subr.mxu0 0.0
        %472 = vmatpush1.msra.mxu0 0.0
        %473 = vmatprep.subr.mxu0 0.0
        %474 = vmatpush1.msra.mxu0 0.0
        %475 = vmatprep.subr.mxu0 0.0
        %476 = vmatpush1.msra.mxu0 0.0
        %477 = vmatprep.subr.mxu0 0.0
        %478 = vmatpush1.msra.mxu0 0.0
        %479 = vmatprep.subr.mxu0 0.0
        %480 = vmatpush1.msra.mxu0 0.0
        %481 = vmatprep.subr.mxu0 0.0
        %482 = vmatpush1.msra.mxu0 0.0
        %483 = vmatprep.subr.mxu0 0.0
        %484 = vmatpush1.msra.mxu0 %v447
        %485 = vmatprep.subr.mxu0 0.0
        %486 = vmatpush1.msra.mxu0 %v446
        %487 = vmatprep.subr.mxu0 0.0
        %488 = vmatpush1.msra.mxu0 %v445
        %489 = vmatprep.subr.mxu0 0.0
        %490 = vmatpush1.msra.mxu0 %v444
        %491 = vmatprep.subr.mxu0 0.0
        %492 = vmatpush2.msra.mxu0 0.0
        %493 = vmatprep.subr.mxu0 0.0
        %494 = vmatpush2.msra.mxu0 0.0
        %495 = vmatprep.subr.mxu0 0.0
        %496 = vmatpush2.msra.mxu0 0.0
        %497 = vmatprep.subr.mxu0 0.0
        %498 = vmatpush2.msra.mxu0 0.0
        %499 = vmatprep.subr.mxu0 0.0
        %500 = vmatpush2.msra.mxu0 0.0
        %501 = vmatprep.subr.mxu0 0.0
        %502 = vmatpush2.msra.mxu0 0.0
        %503 = vmatprep.subr.mxu0 0.0
        %504 = vmatpush2.msra.mxu0 0.0
        %505 = vmatprep.subr.mxu0 0.0
        %506 = vmatpush2.msra.mxu0 0.0
        %507 = vmatprep.subr.mxu0 0.0
        %508 = vmatpush2.msra.mxu0 0.0
        %509 = vmatprep.subr.mxu0 0.0
        %510 = vmatpush2.msra.mxu0 0.0
        %511 = vmatprep.subr.mxu0 0.0
        %512 = vmatpush2.msra.mxu0 0.0
        %513 = vmatprep.subr.mxu0 0.0
        %514 = vmatpush2.msra.mxu0 0.0
        %515 = vmatprep.subr.mxu0 0.0
        %516 = vmatpush2.msra.mxu0 0.0
        %517 = vmatprep.subr.mxu0 0.0
        %518 = vmatpush2.msra.mxu0 0.0
        %519 = vmatprep.subr.mxu0 0.0
        %520 = vmatpush2.msra.mxu0 0.0
        %521 = vmatprep.subr.mxu0 0.0
        %522 = vmatpush2.msra.mxu0 0.0
        %523 = vmatprep.mubr.f32.mxu0 0.0
        %524 = vmatmul.mubr.f32.gmra.mxu0 %v457
        %v525 = vpop.f32.mrf.mxu0
        %v526 = vadd.f32 %v453, %v525
        %v527 = vpop.f32.mrf.mxu0
        %528 = vdwg.mxu0
        %v529 = vld [vmem:[%s435] sm:$0xff]
        %v530 = vld [vmem:[%s4] sm:$0xff]
        %v531 = vld [vmem:[%s4 + $0x8] sm:$0xff]
        %v532 = vld [vmem:[%s4 + $0x10] sm:$0xff]
        %v533 = vld [vmem:[%s4 + $0x18] sm:$0xff]
        %v534 = vld [vmem:[%s5] sm:$0x1]
        %v536 = vlaneseq
        %v537 = vshrl.u32 %v536, 7
        %v538 = vsub.s32 0, %v537
        %v539 = vrot.slane %v534, %v538
        %v542 = vsel %vm455, %v529, 0
        %544 = vmatprep.subr.mxu0 0.0
        %545 = vmatpush1.msra.mxu0 0.0
        %546 = vmatprep.subr.mxu0 0.0
        %547 = vmatpush1.msra.mxu0 0.0
        %548 = vmatprep.subr.mxu0 0.0
        %549 = vmatpush1.msra.mxu0 0.0
        %550 = vmatprep.subr.mxu0 0.0
        %551 = vmatpush1.msra.mxu0 0.0
        %552 = vmatprep.subr.mxu0 0.0
        %553 = vmatpush1.msra.mxu0 0.0
        %554 = vmatprep.subr.mxu0 0.0
        %555 = vmatpush1.msra.mxu0 0.0
        %556 = vmatprep.subr.mxu0 0.0
        %557 = vmatpush1.msra.mxu0 0.0
        %558 = vmatprep.subr.mxu0 0.0
        %559 = vmatpush1.msra.mxu0 0.0
        %560 = vmatprep.subr.mxu0 0.0
        %561 = vmatpush1.msra.mxu0 0.0
        %562 = vmatprep.subr.mxu0 0.0
        %563 = vmatpush1.msra.mxu0 0.0
        %564 = vmatprep.subr.mxu0 0.0
        %565 = vmatpush1.msra.mxu0 0.0
        %566 = vmatprep.subr.mxu0 0.0
        %567 = vmatpush1.msra.mxu0 0.0
        %568 = vmatprep.subr.mxu0 0.0
        %569 = vmatpush1.msra.mxu0 %v533
        %570 = vmatprep.subr.mxu0 0.0
        %571 = vmatpush1.msra.mxu0 %v532
        %572 = vmatprep.subr.mxu0 0.0
        %573 = vmatpush1.msra.mxu0 %v531
        %574 = vmatprep.subr.mxu0 0.0
        %575 = vmatpush1.msra.mxu0 %v530
        %576 = vmatprep.subr.mxu0 0.0
        %577 = vmatpush2.msra.mxu0 0.0
        %578 = vmatprep.subr.mxu0 0.0
        %579 = vmatpush2.msra.mxu0 0.0
        %580 = vmatprep.subr.mxu0 0.0
        %581 = vmatpush2.msra.mxu0 0.0
        %582 = vmatprep.subr.mxu0 0.0
        %583 = vmatpush2.msra.mxu0 0.0
        %584 = vmatprep.subr.mxu0 0.0
        %585 = vmatpush2.msra.mxu0 0.0
        %586 = vmatprep.subr.mxu0 0.0
        %587 = vmatpush2.msra.mxu0 0.0
        %588 = vmatprep.subr.mxu0 0.0
        %589 = vmatpush2.msra.mxu0 0.0
        %590 = vmatprep.subr.mxu0 0.0
        %591 = vmatpush2.msra.mxu0 0.0
        %592 = vmatprep.subr.mxu0 0.0
        %593 = vmatpush2.msra.mxu0 0.0
        %594 = vmatprep.subr.mxu0 0.0
        %595 = vmatpush2.msra.mxu0 0.0
        %596 = vmatprep.subr.mxu0 0.0
        %597 = vmatpush2.msra.mxu0 0.0
        %598 = vmatprep.subr.mxu0 0.0
        %599 = vmatpush2.msra.mxu0 0.0
        %600 = vmatprep.subr.mxu0 0.0
        %601 = vmatpush2.msra.mxu0 0.0
        %602 = vmatprep.subr.mxu0 0.0
        %603 = vmatpush2.msra.mxu0 0.0
        %604 = vmatprep.subr.mxu0 0.0
        %605 = vmatpush2.msra.mxu0 0.0
        %606 = vmatprep.subr.mxu0 0.0
        %607 = vmatpush2.msra.mxu0 0.0
        %608 = vmatprep.mubr.f32.mxu0 0.0
        %609 = vmatmul.mubr.f32.gmra.mxu0 %v542
        %v610 = vpop.f32.mrf.mxu0
        %v611 = vadd.f32 %v539, %v610
        %v612 = vpop.f32.mrf.mxu0
        %613 = vdwg.mxu0
        %s614 = smul.u32 %s28, 8
        %v615 = vlaneseq
        %v616 = vshrl.u32 %v615, 7
        %v617 = vstv %s614
        %v618 = vadd.s32 %v616, %v617
        %v619 = vlaneseq
        %v620 = vand.u32 %v619, 127
        %vm621 = vcmp.le.s32.totalorder %v620, %v618
        %vm622 = vcmask 64512
        %v624 = vsel %vm622, %v526, 0
        %v627 = vsel %vm622, %v611, 0
        %629 = vmatprep.subr.mxu0 0.0
        %630 = vmatpush1.xpose.msra.mxu0 0.0
        %631 = vmatprep.subr.mxu0 0.0
        %632 = vmatpush1.xpose.msra.mxu0 0.0
        %633 = vmatprep.subr.mxu0 0.0
        %634 = vmatpush1.xpose.msra.mxu0 0.0
        %635 = vmatprep.subr.mxu0 0.0
        %636 = vmatpush1.xpose.msra.mxu0 0.0
        %637 = vmatprep.subr.mxu0 0.0
        %638 = vmatpush1.xpose.msra.mxu0 0.0
        %639 = vmatprep.subr.mxu0 0.0
        %640 = vmatpush1.xpose.msra.mxu0 0.0
        %641 = vmatprep.subr.mxu0 0.0
        %642 = vmatpush1.xpose.msra.mxu0 0.0
        %643 = vmatprep.subr.mxu0 0.0
        %644 = vmatpush1.xpose.msra.mxu0 0.0
        %645 = vmatprep.subr.mxu0 0.0
        %646 = vmatpush1.xpose.msra.mxu0 0.0
        %647 = vmatprep.subr.mxu0 0.0
        %648 = vmatpush1.xpose.msra.mxu0 0.0
        %649 = vmatprep.subr.mxu0 0.0
        %650 = vmatpush1.xpose.msra.mxu0 0.0
        %651 = vmatprep.subr.mxu0 0.0
        %652 = vmatpush1.xpose.msra.mxu0 0.0
        %653 = vmatprep.subr.mxu0 0.0
        %654 = vmatpush1.xpose.msra.mxu0 0.0
        %655 = vmatprep.subr.mxu0 0.0
        %656 = vmatpush1.xpose.msra.mxu0 0.0
        %657 = vmatprep.subr.mxu0 0.0
        %658 = vmatpush1.xpose.msra.mxu0 0.0
        %659 = vmatprep.subr.mxu0 0.0
        %660 = vmatpush1.xpose.msra.mxu0 %v627
        %661 = vmatprep.subr.mxu0 0.0
        %662 = vmatpush2.xpose.msra.mxu0 0.0
        %663 = vmatprep.subr.mxu0 0.0
        %664 = vmatpush2.xpose.msra.mxu0 0.0
        %665 = vmatprep.subr.mxu0 0.0
        %666 = vmatpush2.xpose.msra.mxu0 0.0
        %667 = vmatprep.subr.mxu0 0.0
        %668 = vmatpush2.xpose.msra.mxu0 0.0
        %669 = vmatprep.subr.mxu0 0.0
        %670 = vmatpush2.xpose.msra.mxu0 0.0
        %671 = vmatprep.subr.mxu0 0.0
        %672 = vmatpush2.xpose.msra.mxu0 0.0
        %673 = vmatprep.subr.mxu0 0.0
        %674 = vmatpush2.xpose.msra.mxu0 0.0
        %675 = vmatprep.subr.mxu0 0.0
        %676 = vmatpush2.xpose.msra.mxu0 0.0
        %677 = vmatprep.subr.mxu0 0.0
        %678 = vmatpush2.xpose.msra.mxu0 0.0
        %679 = vmatprep.subr.mxu0 0.0
        %680 = vmatpush2.xpose.msra.mxu0 0.0
        %681 = vmatprep.subr.mxu0 0.0
        %682 = vmatpush2.xpose.msra.mxu0 0.0
        %683 = vmatprep.subr.mxu0 0.0
        %684 = vmatpush2.xpose.msra.mxu0 0.0
        %685 = vmatprep.subr.mxu0 0.0
        %686 = vmatpush2.xpose.msra.mxu0 0.0
        %687 = vmatprep.subr.mxu0 0.0
        %688 = vmatpush2.xpose.msra.mxu0 0.0
        %689 = vmatprep.subr.mxu0 0.0
        %690 = vmatpush2.xpose.msra.mxu0 0.0
        %691 = vmatprep.subr.mxu0 0.0
        %692 = vmatpush2.xpose.msra.mxu0 0.0
        %693 = vmatprep.mubr.f32.mxu0 0.0
        %694 = vmatmul.mubr.f32.gmra.mxu0 %v624
        %v695 = vpop.f32.mrf.mxu0
        %v696 = vadd.f32 0.0, %v695
        %v697 = vpop.f32.mrf.mxu0
        %698 = vdwg.mxu0
        %v699 = vmul.f32 %v696, 0.35355338
        %v700 = vsel %vm621, %v699, -1e+30
        %v701 = vsel %vm622, %v700, -inf
        %702 = vmax.xlane.f32.xlu0 %v701
        %v703 = vpop.xlane.xlu0 %702
        %v704 = vsub.f32 %v700, %v703
        %v705 = vmul.f32 %v704, 1.442695
        %v706 = vpow.pop %v705
        %v707 = vsel %vm622, %v706, 0.0
        %708 = vadd.xlane.f32.xlu0 %v707
        %v709 = vpop.xlane.xlu0 %708
        %v710 = vrcp.pop %v709
        %v711 = vmul.f32 %v706, %v710
        %712 = vrot.lane.b32.xlu0 %v611, 96
        %v713 = vpop.permute.xlu0 %712
        %v716 = vsel %vm622, %v711, 0
        %718 = vmatprep.subr.mxu0 0.0
        %719 = vmatpush1.msra.mxu0 0.0
        %720 = vmatprep.subr.mxu0 0.0
        %721 = vmatpush1.msra.mxu0 0.0
        %722 = vmatprep.subr.mxu0 0.0
        %723 = vmatpush1.msra.mxu0 0.0
        %724 = vmatprep.subr.mxu0 0.0
        %725 = vmatpush1.msra.mxu0 0.0
        %726 = vmatprep.subr.mxu0 0.0
        %727 = vmatpush1.msra.mxu0 0.0
        %728 = vmatprep.subr.mxu0 0.0
        %729 = vmatpush1.msra.mxu0 0.0
        %730 = vmatprep.subr.mxu0 0.0
        %731 = vmatpush1.msra.mxu0 0.0
        %732 = vmatprep.subr.mxu0 0.0
        %733 = vmatpush1.msra.mxu0 0.0
        %734 = vmatprep.subr.mxu0 0.0
        %735 = vmatpush1.msra.mxu0 0.0
        %736 = vmatprep.subr.mxu0 0.0
        %737 = vmatpush1.msra.mxu0 0.0
        %738 = vmatprep.subr.mxu0 0.0
        %739 = vmatpush1.msra.mxu0 0.0
        %740 = vmatprep.subr.mxu0 0.0
        %741 = vmatpush1.msra.mxu0 0.0
        %742 = vmatprep.subr.mxu0 0.0
        %743 = vmatpush1.msra.mxu0 0.0
        %744 = vmatprep.subr.mxu0 0.0
        %745 = vmatpush1.msra.mxu0 0.0
        %746 = vmatprep.subr.mxu0 0.0
        %747 = vmatpush1.msra.mxu0 0.0
        %748 = vmatprep.subr.mxu0 0.0
        %749 = vmatpush1.msra.mxu0 %v713
        %750 = vmatprep.subr.mxu0 0.0
        %751 = vmatpush2.msra.mxu0 0.0
        %752 = vmatprep.subr.mxu0 0.0
        %753 = vmatpush2.msra.mxu0 0.0
        %754 = vmatprep.subr.mxu0 0.0
        %755 = vmatpush2.msra.mxu0 0.0
        %756 = vmatprep.subr.mxu0 0.0
        %757 = vmatpush2.msra.mxu0 0.0
        %758 = vmatprep.subr.mxu0 0.0
        %759 = vmatpush2.msra.mxu0 0.0
        %760 = vmatprep.subr.mxu0 0.0
        %761 = vmatpush2.msra.mxu0 0.0
        %762 = vmatprep.subr.mxu0 0.0
        %763 = vmatpush2.msra.mxu0 0.0
        %764 = vmatprep.subr.mxu0 0.0
        %765 = vmatpush2.msra.mxu0 0.0
        %766 = vmatprep.subr.mxu0 0.0
        %767 = vmatpush2.msra.mxu0 0.0
        %768 = vmatprep.subr.mxu0 0.0
        %769 = vmatpush2.msra.mxu0 0.0
        %770 = vmatprep.subr.mxu0 0.0
        %771 = vmatpush2.msra.mxu0 0.0
        %772 = vmatprep.subr.mxu0 0.0
        %773 = vmatpush2.msra.mxu0 0.0
        %774 = vmatprep.subr.mxu0 0.0
        %775 = vmatpush2.msra.mxu0 0.0
        %776 = vmatprep.subr.mxu0 0.0
        %777 = vmatpush2.msra.mxu0 0.0
        %778 = vmatprep.subr.mxu0 0.0
        %779 = vmatpush2.msra.mxu0 0.0
        %780 = vmatprep.subr.mxu0 0.0
        %781 = vmatpush2.msra.mxu0 0.0
        %782 = vmatprep.mubr.f32.mxu0 0.0
        %783 = vmatmul.mubr.f32.gmra.mxu0 %v716
        %v784 = vpop.f32.mrf.mxu0
        %v785 = vadd.f32 0.0, %v784
        %v786 = vpop.f32.mrf.mxu0
        %787 = vdwg.mxu0
        %788 = vst.msk [vmem:[#allocation2] sm:$0xff] %vm622, %v785
        %789 = vrot.lane.b32.xlu0 %v526, 120
        %v790 = vpop.permute.xlu0 %789
        %791 = vrot.lane.b32.xlu0 %v611, 120
        %v792 = vpop.permute.xlu0 %791
        %v793 = vsel %vm622, %v790, 0
        %v795 = vsel %vm622, %v792, 0
        %797 = vmatprep.subr.mxu0 0.0
        %798 = vmatpush1.xpose.msra.mxu0 0.0
        %799 = vmatprep.subr.mxu0 0.0
        %800 = vmatpush1.xpose.msra.mxu0 0.0
        %801 = vmatprep.subr.mxu0 0.0
        %802 = vmatpush1.xpose.msra.mxu0 0.0
        %803 = vmatprep.subr.mxu0 0.0
        %804 = vmatpush1.xpose.msra.mxu0 0.0
        %805 = vmatprep.subr.mxu0 0.0
        %806 = vmatpush1.xpose.msra.mxu0 0.0
        %807 = vmatprep.subr.mxu0 0.0
        %808 = vmatpush1.xpose.msra.mxu0 0.0
        %809 = vmatprep.subr.mxu0 0.0
        %810 = vmatpush1.xpose.msra.mxu0 0.0
        %811 = vmatprep.subr.mxu0 0.0
        %812 = vmatpush1.xpose.msra.mxu0 0.0
        %813 = vmatprep.subr.mxu0 0.0
        %814 = vmatpush1.xpose.msra.mxu0 0.0
        %815 = vmatprep.subr.mxu0 0.0
        %816 = vmatpush1.xpose.msra.mxu0 0.0
        %817 = vmatprep.subr.mxu0 0.0
        %818 = vmatpush1.xpose.msra.mxu0 0.0
        %819 = vmatprep.subr.mxu0 0.0
        %820 = vmatpush1.xpose.msra.mxu0 0.0
        %821 = vmatprep.subr.mxu0 0.0
        %822 = vmatpush1.xpose.msra.mxu0 0.0
        %823 = vmatprep.subr.mxu0 0.0
        %824 = vmatpush1.xpose.msra.mxu0 0.0
        %825 = vmatprep.subr.mxu0 0.0
        %826 = vmatpush1.xpose.msra.mxu0 0.0
        %827 = vmatprep.subr.mxu0 0.0
        %828 = vmatpush1.xpose.msra.mxu0 %v795
        %829 = vmatprep.subr.mxu0 0.0
        %830 = vmatpush2.xpose.msra.mxu0 0.0
        %831 = vmatprep.subr.mxu0 0.0
        %832 = vmatpush2.xpose.msra.mxu0 0.0
        %833 = vmatprep.subr.mxu0 0.0
        %834 = vmatpush2.xpose.msra.mxu0 0.0
        %835 = vmatprep.subr.mxu0 0.0
        %836 = vmatpush2.xpose.msra.mxu0 0.0
        %837 = vmatprep.subr.mxu0 0.0
        %838 = vmatpush2.xpose.msra.mxu0 0.0
        %839 = vmatprep.subr.mxu0 0.0
        %840 = vmatpush2.xpose.msra.mxu0 0.0
        %841 = vmatprep.subr.mxu0 0.0
        %842 = vmatpush2.xpose.msra.mxu0 0.0
        %843 = vmatprep.subr.mxu0 0.0
        %844 = vmatpush2.xpose.msra.mxu0 0.0
        %845 = vmatprep.subr.mxu0 0.0
        %846 = vmatpush2.xpose.msra.mxu0 0.0
        %847 = vmatprep.subr.mxu0 0.0
        %848 = vmatpush2.xpose.msra.mxu0 0.0
        %849 = vmatprep.subr.mxu0 0.0
        %850 = vmatpush2.xpose.msra.mxu0 0.0
        %851 = vmatprep.subr.mxu0 0.0
        %852 = vmatpush2.xpose.msra.mxu0 0.0
        %853 = vmatprep.subr.mxu0 0.0
        %854 = vmatpush2.xpose.msra.mxu0 0.0
        %855 = vmatprep.subr.mxu0 0.0
        %856 = vmatpush2.xpose.msra.mxu0 0.0
        %857 = vmatprep.subr.mxu0 0.0
        %858 = vmatpush2.xpose.msra.mxu0 0.0
        %859 = vmatprep.subr.mxu0 0.0
        %860 = vmatpush2.xpose.msra.mxu0 0.0
        %861 = vmatprep.mubr.f32.mxu0 0.0
        %862 = vmatmul.mubr.f32.gmra.mxu0 %v793
        %v863 = vpop.f32.mrf.mxu0
        %v864 = vadd.f32 0.0, %v863
        %v865 = vpop.f32.mrf.mxu0
        %866 = vdwg.mxu0
        %v867 = vmul.f32 %v864, 0.35355338
        %v868 = vsel %vm621, %v867, -1e+30
        %v869 = vsel %vm622, %v868, -inf
        %870 = vmax.xlane.f32.xlu0 %v869
        %v871 = vpop.xlane.xlu0 %870
        %v872 = vsub.f32 %v868, %v871
        %v873 = vmul.f32 %v872, 1.442695
        %v874 = vpow.pop %v873
        %v875 = vsel %vm622, %v874, 0.0
        %876 = vadd.xlane.f32.xlu0 %v875
        %v877 = vpop.xlane.xlu0 %876
        %v878 = vrcp.pop %v877
        %v879 = vmul.f32 %v874, %v878
        %880 = vrot.lane.b32.xlu0 %v611, 88
        %v881 = vpop.permute.xlu0 %880
        %v884 = vsel %vm622, %v879, 0
        %886 = vmatprep.subr.mxu0 0.0
        %887 = vmatpush1.msra.mxu0 0.0
        %888 = vmatprep.subr.mxu0 0.0
        %889 = vmatpush1.msra.mxu0 0.0
        %890 = vmatprep.subr.mxu0 0.0
        %891 = vmatpush1.msra.mxu0 0.0
        %892 = vmatprep.subr.mxu0 0.0
        %893 = vmatpush1.msra.mxu0 0.0
        %894 = vmatprep.subr.mxu0 0.0
        %895 = vmatpush1.msra.mxu0 0.0
        %896 = vmatprep.subr.mxu0 0.0
        %897 = vmatpush1.msra.mxu0 0.0
        %898 = vmatprep.subr.mxu0 0.0
        %899 = vmatpush1.msra.mxu0 0.0
        %900 = vmatprep.subr.mxu0 0.0
        %901 = vmatpush1.msra.mxu0 0.0
        %902 = vmatprep.subr.mxu0 0.0
        %903 = vmatpush1.msra.mxu0 0.0
        %904 = vmatprep.subr.mxu0 0.0
        %905 = vmatpush1.msra.mxu0 0.0
        %906 = vmatprep.subr.mxu0 0.0
        %907 = vmatpush1.msra.mxu0 0.0
        %908 = vmatprep.subr.mxu0 0.0
        %909 = vmatpush1.msra.mxu0 0.0
        %910 = vmatprep.subr.mxu0 0.0
        %911 = vmatpush1.msra.mxu0 0.0
        %912 = vmatprep.subr.mxu0 0.0
        %913 = vmatpush1.msra.mxu0 0.0
        %914 = vmatprep.subr.mxu0 0.0
        %915 = vmatpush1.msra.mxu0 0.0
        %916 = vmatprep.subr.mxu0 0.0
        %917 = vmatpush1.msra.mxu0 %v881
        %918 = vmatprep.subr.mxu0 0.0
        %919 = vmatpush2.msra.mxu0 0.0
        %920 = vmatprep.subr.mxu0 0.0
        %921 = vmatpush2.msra.mxu0 0.0
        %922 = vmatprep.subr.mxu0 0.0
        %923 = vmatpush2.msra.mxu0 0.0
        %924 = vmatprep.subr.mxu0 0.0
        %925 = vmatpush2.msra.mxu0 0.0
        %926 = vmatprep.subr.mxu0 0.0
        %927 = vmatpush2.msra.mxu0 0.0
        %928 = vmatprep.subr.mxu0 0.0
        %929 = vmatpush2.msra.mxu0 0.0
        %930 = vmatprep.subr.mxu0 0.0
        %931 = vmatpush2.msra.mxu0 0.0
        %932 = vmatprep.subr.mxu0 0.0
        %933 = vmatpush2.msra.mxu0 0.0
        %934 = vmatprep.subr.mxu0 0.0
        %935 = vmatpush2.msra.mxu0 0.0
        %936 = vmatprep.subr.mxu0 0.0
        %937 = vmatpush2.msra.mxu0 0.0
        %938 = vmatprep.subr.mxu0 0.0
        %939 = vmatpush2.msra.mxu0 0.0
        %940 = vmatprep.subr.mxu0 0.0
        %941 = vmatpush2.msra.mxu0 0.0
        %942 = vmatprep.subr.mxu0 0.0
        %943 = vmatpush2.msra.mxu0 0.0
        %944 = vmatprep.subr.mxu0 0.0
        %945 = vmatpush2.msra.mxu0 0.0
        %946 = vmatprep.subr.mxu0 0.0
        %947 = vmatpush2.msra.mxu0 0.0
        %948 = vmatprep.subr.mxu0 0.0
        %949 = vmatpush2.msra.mxu0 0.0
        %950 = vmatprep.mubr.f32.mxu0 0.0
        %951 = vmatmul.mubr.f32.gmra.mxu0 %v884
        %v952 = vpop.f32.mrf.mxu0
        %v953 = vadd.f32 0.0, %v952
        %v954 = vpop.f32.mrf.mxu0
        %955 = vdwg.mxu0
        %957 = vrot.lane.b32.xlu0 %v953, 8
        %v958 = vpop.permute.xlu0 %957
        %vm960 = vcmask 130112
        %961 = vst.msk [vmem:[#allocation2] sm:$0xff] %vm960, %v958
        %962 = vrot.lane.b32.xlu0 %v526, 112
        %v963 = vpop.permute.xlu0 %962
        %964 = vrot.lane.b32.xlu0 %v611, 112
        %v965 = vpop.permute.xlu0 %964
        %v966 = vsel %vm622, %v963, 0
        %v968 = vsel %vm622, %v965, 0
        %970 = vmatprep.subr.mxu0 0.0
        %971 = vmatpush1.xpose.msra.mxu0 0.0
        %972 = vmatprep.subr.mxu0 0.0
        %973 = vmatpush1.xpose.msra.mxu0 0.0
        %974 = vmatprep.subr.mxu0 0.0
        %975 = vmatpush1.xpose.msra.mxu0 0.0
        %976 = vmatprep.subr.mxu0 0.0
        %977 = vmatpush1.xpose.msra.mxu0 0.0
        %978 = vmatprep.subr.mxu0 0.0
        %979 = vmatpush1.xpose.msra.mxu0 0.0
        %980 = vmatprep.subr.mxu0 0.0
        %981 = vmatpush1.xpose.msra.mxu0 0.0
        %982 = vmatprep.subr.mxu0 0.0
        %983 = vmatpush1.xpose.msra.mxu0 0.0
        %984 = vmatprep.subr.mxu0 0.0
        %985 = vmatpush1.xpose.msra.mxu0 0.0
        %986 = vmatprep.subr.mxu0 0.0
        %987 = vmatpush1.xpose.msra.mxu0 0.0
        %988 = vmatprep.subr.mxu0 0.0
        %989 = vmatpush1.xpose.msra.mxu0 0.0
        %990 = vmatprep.subr.mxu0 0.0
        %991 = vmatpush1.xpose.msra.mxu0 0.0
        %992 = vmatprep.subr.mxu0 0.0
        %993 = vmatpush1.xpose.msra.mxu0 0.0
        %994 = vmatprep.subr.mxu0 0.0
        %995 = vmatpush1.xpose.msra.mxu0 0.0
        %996 = vmatprep.subr.mxu0 0.0
        %997 = vmatpush1.xpose.msra.mxu0 0.0
        %998 = vmatprep.subr.mxu0 0.0
        %999 = vmatpush1.xpose.msra.mxu0 0.0
        %1000 = vmatprep.subr.mxu0 0.0
        %1001 = vmatpush1.xpose.msra.mxu0 %v968
        %1002 = vmatprep.subr.mxu0 0.0
        %1003 = vmatpush2.xpose.msra.mxu0 0.0
        %1004 = vmatprep.subr.mxu0 0.0
        %1005 = vmatpush2.xpose.msra.mxu0 0.0
        %1006 = vmatprep.subr.mxu0 0.0
        %1007 = vmatpush2.xpose.msra.mxu0 0.0
        %1008 = vmatprep.subr.mxu0 0.0
        %1009 = vmatpush2.xpose.msra.mxu0 0.0
        %1010 = vmatprep.subr.mxu0 0.0
        %1011 = vmatpush2.xpose.msra.mxu0 0.0
        %1012 = vmatprep.subr.mxu0 0.0
        %1013 = vmatpush2.xpose.msra.mxu0 0.0
        %1014 = vmatprep.subr.mxu0 0.0
        %1015 = vmatpush2.xpose.msra.mxu0 0.0
        %1016 = vmatprep.subr.mxu0 0.0
        %1017 = vmatpush2.xpose.msra.mxu0 0.0
        %1018 = vmatprep.subr.mxu0 0.0
        %1019 = vmatpush2.xpose.msra.mxu0 0.0
        %1020 = vmatprep.subr.mxu0 0.0
        %1021 = vmatpush2.xpose.msra.mxu0 0.0
        %1022 = vmatprep.subr.mxu0 0.0
        %1023 = vmatpush2.xpose.msra.mxu0 0.0
        %1024 = vmatprep.subr.mxu0 0.0
        %1025 = vmatpush2.xpose.msra.mxu0 0.0
        %1026 = vmatprep.subr.mxu0 0.0
        %1027 = vmatpush2.xpose.msra.mxu0 0.0
        %1028 = vmatprep.subr.mxu0 0.0
        %1029 = vmatpush2.xpose.msra.mxu0 0.0
        %1030 = vmatprep.subr.mxu0 0.0
        %1031 = vmatpush2.xpose.msra.mxu0 0.0
        %1032 = vmatprep.subr.mxu0 0.0
        %1033 = vmatpush2.xpose.msra.mxu0 0.0
        %1034 = vmatprep.mubr.f32.mxu0 0.0
        %1035 = vmatmul.mubr.f32.gmra.mxu0 %v966
        %v1036 = vpop.f32.mrf.mxu0
        %v1037 = vadd.f32 0.0, %v1036
        %v1038 = vpop.f32.mrf.mxu0
        %1039 = vdwg.mxu0
        %v1040 = vmul.f32 %v1037, 0.35355338
        %v1041 = vsel %vm621, %v1040, -1e+30
        %v1042 = vsel %vm622, %v1041, -inf
        %1043 = vmax.xlane.f32.xlu0 %v1042
        %v1044 = vpop.xlane.xlu0 %1043
        %v1045 = vsub.f32 %v1041, %v1044
        %v1046 = vmul.f32 %v1045, 1.442695
        %v1047 = vpow.pop %v1046
        %v1048 = vsel %vm622, %v1047, 0.0
        %1049 = vadd.xlane.f32.xlu0 %v1048
        %v1050 = vpop.xlane.xlu0 %1049
        %v1051 = vrcp.pop %v1050
        %v1052 = vmul.f32 %v1047, %v1051
        %1053 = vrot.lane.b32.xlu0 %v611, 80
        %v1054 = vpop.permute.xlu0 %1053
        %v1057 = vsel %vm622, %v1052, 0
        %1059 = vmatprep.subr.mxu0 0.0
        %1060 = vmatpush1.msra.mxu0 0.0
        %1061 = vmatprep.subr.mxu0 0.0
        %1062 = vmatpush1.msra.mxu0 0.0
        %1063 = vmatprep.subr.mxu0 0.0
        %1064 = vmatpush1.msra.mxu0 0.0
        %1065 = vmatprep.subr.mxu0 0.0
        %1066 = vmatpush1.msra.mxu0 0.0
        %1067 = vmatprep.subr.mxu0 0.0
        %1068 = vmatpush1.msra.mxu0 0.0
        %1069 = vmatprep.subr.mxu0 0.0
        %1070 = vmatpush1.msra.mxu0 0.0
        %1071 = vmatprep.subr.mxu0 0.0
        %1072 = vmatpush1.msra.mxu0 0.0
        %1073 = vmatprep.subr.mxu0 0.0
        %1074 = vmatpush1.msra.mxu0 0.0
        %1075 = vmatprep.subr.mxu0 0.0
        %1076 = vmatpush1.msra.mxu0 0.0
        %1077 = vmatprep.subr.mxu0 0.0
        %1078 = vmatpush1.msra.mxu0 0.0
        %1079 = vmatprep.subr.mxu0 0.0
        %1080 = vmatpush1.msra.mxu0 0.0
        %1081 = vmatprep.subr.mxu0 0.0
        %1082 = vmatpush1.msra.mxu0 0.0
        %1083 = vmatprep.subr.mxu0 0.0
        %1084 = vmatpush1.msra.mxu0 0.0
        %1085 = vmatprep.subr.mxu0 0.0
        %1086 = vmatpush1.msra.mxu0 0.0
        %1087 = vmatprep.subr.mxu0 0.0
        %1088 = vmatpush1.msra.mxu0 0.0
        %1089 = vmatprep.subr.mxu0 0.0
        %1090 = vmatpush1.msra.mxu0 %v1054
        %1091 = vmatprep.subr.mxu0 0.0
        %1092 = vmatpush2.msra.mxu0 0.0
        %1093 = vmatprep.subr.mxu0 0.0
        %1094 = vmatpush2.msra.mxu0 0.0
        %1095 = vmatprep.subr.mxu0 0.0
        %1096 = vmatpush2.msra.mxu0 0.0
        %1097 = vmatprep.subr.mxu0 0.0
        %1098 = vmatpush2.msra.mxu0 0.0
        %1099 = vmatprep.subr.mxu0 0.0
        %1100 = vmatpush2.msra.mxu0 0.0
        %1101 = vmatprep.subr.mxu0 0.0
        %1102 = vmatpush2.msra.mxu0 0.0
        %1103 = vmatprep.subr.mxu0 0.0
        %1104 = vmatpush2.msra.mxu0 0.0
        %1105 = vmatprep.subr.mxu0 0.0
        %1106 = vmatpush2.msra.mxu0 0.0
        %1107 = vmatprep.subr.mxu0 0.0
        %1108 = vmatpush2.msra.mxu0 0.0
        %1109 = vmatprep.subr.mxu0 0.0
        %1110 = vmatpush2.msra.mxu0 0.0
        %1111 = vmatprep.subr.mxu0 0.0
        %1112 = vmatpush2.msra.mxu0 0.0
        %1113 = vmatprep.subr.mxu0 0.0
        %1114 = vmatpush2.msra.mxu0 0.0
        %1115 = vmatprep.subr.mxu0 0.0
        %1116 = vmatpush2.msra.mxu0 0.0
        %1117 = vmatprep.subr.mxu0 0.0
        %1118 = vmatpush2.msra.mxu0 0.0
        %1119 = vmatprep.subr.mxu0 0.0
        %1120 = vmatpush2.msra.mxu0 0.0
        %1121 = vmatprep.subr.mxu0 0.0
        %1122 = vmatpush2.msra.mxu0 0.0
        %1123 = vmatprep.mubr.f32.mxu0 0.0
        %1124 = vmatmul.mubr.f32.gmra.mxu0 %v1057
        %v1125 = vpop.f32.mrf.mxu0
        %v1126 = vadd.f32 0.0, %v1125
        %v1127 = vpop.f32.mrf.mxu0
        %1128 = vdwg.mxu0
        %1130 = vrot.lane.b32.xlu0 %v1126, 16
        %v1131 = vpop.permute.xlu0 %1130
        %vm1133 = vcmask 195712
        %1134 = vst.msk [vmem:[#allocation2] sm:$0xff] %vm1133, %v1131
        %1135 = vrot.lane.b32.xlu0 %v526, 104
        %v1136 = vpop.permute.xlu0 %1135
        %1137 = vrot.lane.b32.xlu0 %v611, 104
        %v1138 = vpop.permute.xlu0 %1137
        %v1139 = vsel %vm622, %v1136, 0
        %v1141 = vsel %vm622, %v1138, 0
        %1143 = vmatprep.subr.mxu0 0.0
        %1144 = vmatpush1.xpose.msra.mxu0 0.0
        %1145 = vmatprep.subr.mxu0 0.0
        %1146 = vmatpush1.xpose.msra.mxu0 0.0
        %1147 = vmatprep.subr.mxu0 0.0
        %1148 = vmatpush1.xpose.msra.mxu0 0.0
        %1149 = vmatprep.subr.mxu0 0.0
        %1150 = vmatpush1.xpose.msra.mxu0 0.0
        %1151 = vmatprep.subr.mxu0 0.0
        %1152 = vmatpush1.xpose.msra.mxu0 0.0
        %1153 = vmatprep.subr.mxu0 0.0
        %1154 = vmatpush1.xpose.msra.mxu0 0.0
        %1155 = vmatprep.subr.mxu0 0.0
        %1156 = vmatpush1.xpose.msra.mxu0 0.0
        %1157 = vmatprep.subr.mxu0 0.0
        %1158 = vmatpush1.xpose.msra.mxu0 0.0
        %1159 = vmatprep.subr.mxu0 0.0
        %1160 = vmatpush1.xpose.msra.mxu0 0.0
        %1161 = vmatprep.subr.mxu0 0.0
        %1162 = vmatpush1.xpose.msra.mxu0 0.0
        %1163 = vmatprep.subr.mxu0 0.0
        %1164 = vmatpush1.xpose.msra.mxu0 0.0
        %1165 = vmatprep.subr.mxu0 0.0
        %1166 = vmatpush1.xpose.msra.mxu0 0.0
        %1167 = vmatprep.subr.mxu0 0.0
        %1168 = vmatpush1.xpose.msra.mxu0 0.0
        %1169 = vmatprep.subr.mxu0 0.0
        %1170 = vmatpush1.xpose.msra.mxu0 0.0
        %1171 = vmatprep.subr.mxu0 0.0
        %1172 = vmatpush1.xpose.msra.mxu0 0.0
        %1173 = vmatprep.subr.mxu0 0.0
        %1174 = vmatpush1.xpose.msra.mxu0 %v1141
        %1175 = vmatprep.subr.mxu0 0.0
        %1176 = vmatpush2.xpose.msra.mxu0 0.0
        %1177 = vmatprep.subr.mxu0 0.0
        %1178 = vmatpush2.xpose.msra.mxu0 0.0
        %1179 = vmatprep.subr.mxu0 0.0
        %1180 = vmatpush2.xpose.msra.mxu0 0.0
        %1181 = vmatprep.subr.mxu0 0.0
        %1182 = vmatpush2.xpose.msra.mxu0 0.0
        %1183 = vmatprep.subr.mxu0 0.0
        %1184 = vmatpush2.xpose.msra.mxu0 0.0
        %1185 = vmatprep.subr.mxu0 0.0
        %1186 = vmatpush2.xpose.msra.mxu0 0.0
        %1187 = vmatprep.subr.mxu0 0.0
        %1188 = vmatpush2.xpose.msra.mxu0 0.0
        %1189 = vmatprep.subr.mxu0 0.0
        %1190 = vmatpush2.xpose.msra.mxu0 0.0
        %1191 = vmatprep.subr.mxu0 0.0
        %1192 = vmatpush2.xpose.msra.mxu0 0.0
        %1193 = vmatprep.subr.mxu0 0.0
        %1194 = vmatpush2.xpose.msra.mxu0 0.0
        %1195 = vmatprep.subr.mxu0 0.0
        %1196 = vmatpush2.xpose.msra.mxu0 0.0
        %1197 = vmatprep.subr.mxu0 0.0
        %1198 = vmatpush2.xpose.msra.mxu0 0.0
        %1199 = vmatprep.subr.mxu0 0.0
        %1200 = vmatpush2.xpose.msra.mxu0 0.0
        %1201 = vmatprep.subr.mxu0 0.0
        %1202 = vmatpush2.xpose.msra.mxu0 0.0
        %1203 = vmatprep.subr.mxu0 0.0
        %1204 = vmatpush2.xpose.msra.mxu0 0.0
        %1205 = vmatprep.subr.mxu0 0.0
        %1206 = vmatpush2.xpose.msra.mxu0 0.0
        %1207 = vmatprep.mubr.f32.mxu0 0.0
        %1208 = vmatmul.mubr.f32.gmra.mxu0 %v1139
        %v1209 = vpop.f32.mrf.mxu0
        %v1210 = vadd.f32 0.0, %v1209
        %v1211 = vpop.f32.mrf.mxu0
        %1212 = vdwg.mxu0
        %v1213 = vmul.f32 %v1210, 0.35355338
        %v1214 = vsel %vm621, %v1213, -1e+30
        %v1215 = vsel %vm622, %v1214, -inf
        %1216 = vmax.xlane.f32.xlu0 %v1215
        %v1217 = vpop.xlane.xlu0 %1216
        %v1218 = vsub.f32 %v1214, %v1217
        %v1219 = vmul.f32 %v1218, 1.442695
        %v1220 = vpow.pop %v1219
        %v1221 = vsel %vm622, %v1220, 0.0
        %1222 = vadd.xlane.f32.xlu0 %v1221
        %v1223 = vpop.xlane.xlu0 %1222
        %v1224 = vrcp.pop %v1223
        %v1225 = vmul.f32 %v1220, %v1224
        %1226 = vrot.lane.b32.xlu0 %v611, 72
        %v1227 = vpop.permute.xlu0 %1226
        %v1230 = vsel %vm622, %v1225, 0
        %1232 = vmatprep.subr.mxu0 0.0
        %1233 = vmatpush1.msra.mxu0 0.0
        %1234 = vmatprep.subr.mxu0 0.0
        %1235 = vmatpush1.msra.mxu0 0.0
        %1236 = vmatprep.subr.mxu0 0.0
        %1237 = vmatpush1.msra.mxu0 0.0
        %1238 = vmatprep.subr.mxu0 0.0
        %1239 = vmatpush1.msra.mxu0 0.0
        %1240 = vmatprep.subr.mxu0 0.0
        %1241 = vmatpush1.msra.mxu0 0.0
        %1242 = vmatprep.subr.mxu0 0.0
        %1243 = vmatpush1.msra.mxu0 0.0
        %1244 = vmatprep.subr.mxu0 0.0
        %1245 = vmatpush1.msra.mxu0 0.0
        %1246 = vmatprep.subr.mxu0 0.0
        %1247 = vmatpush1.msra.mxu0 0.0
        %1248 = vmatprep.subr.mxu0 0.0
        %1249 = vmatpush1.msra.mxu0 0.0
        %1250 = vmatprep.subr.mxu0 0.0
        %1251 = vmatpush1.msra.mxu0 0.0
        %1252 = vmatprep.subr.mxu0 0.0
        %1253 = vmatpush1.msra.mxu0 0.0
        %1254 = vmatprep.subr.mxu0 0.0
        %1255 = vmatpush1.msra.mxu0 0.0
        %1256 = vmatprep.subr.mxu0 0.0
        %1257 = vmatpush1.msra.mxu0 0.0
        %1258 = vmatprep.subr.mxu0 0.0
        %1259 = vmatpush1.msra.mxu0 0.0
        %1260 = vmatprep.subr.mxu0 0.0
        %1261 = vmatpush1.msra.mxu0 0.0
        %1262 = vmatprep.subr.mxu0 0.0
        %1263 = vmatpush1.msra.mxu0 %v1227
        %1264 = vmatprep.subr.mxu0 0.0
        %1265 = vmatpush2.msra.mxu0 0.0
        %1266 = vmatprep.subr.mxu0 0.0
        %1267 = vmatpush2.msra.mxu0 0.0
        %1268 = vmatprep.subr.mxu0 0.0
        %1269 = vmatpush2.msra.mxu0 0.0
        %1270 = vmatprep.subr.mxu0 0.0
        %1271 = vmatpush2.msra.mxu0 0.0
        %1272 = vmatprep.subr.mxu0 0.0
        %1273 = vmatpush2.msra.mxu0 0.0
        %1274 = vmatprep.subr.mxu0 0.0
        %1275 = vmatpush2.msra.mxu0 0.0
        %1276 = vmatprep.subr.mxu0 0.0
        %1277 = vmatpush2.msra.mxu0 0.0
        %1278 = vmatprep.subr.mxu0 0.0
        %1279 = vmatpush2.msra.mxu0 0.0
        %1280 = vmatprep.subr.mxu0 0.0
        %1281 = vmatpush2.msra.mxu0 0.0
        %1282 = vmatprep.subr.mxu0 0.0
        %1283 = vmatpush2.msra.mxu0 0.0
        %1284 = vmatprep.subr.mxu0 0.0
        %1285 = vmatpush2.msra.mxu0 0.0
        %1286 = vmatprep.subr.mxu0 0.0
        %1287 = vmatpush2.msra.mxu0 0.0
        %1288 = vmatprep.subr.mxu0 0.0
        %1289 = vmatpush2.msra.mxu0 0.0
        %1290 = vmatprep.subr.mxu0 0.0
        %1291 = vmatpush2.msra.mxu0 0.0
        %1292 = vmatprep.subr.mxu0 0.0
        %1293 = vmatpush2.msra.mxu0 0.0
        %1294 = vmatprep.subr.mxu0 0.0
        %1295 = vmatpush2.msra.mxu0 0.0
        %1296 = vmatprep.mubr.f32.mxu0 0.0
        %1297 = vmatmul.mubr.f32.gmra.mxu0 %v1230
        %v1298 = vpop.f32.mrf.mxu0
        %v1299 = vadd.f32 0.0, %v1298
        %v1300 = vpop.f32.mrf.mxu0
        %1301 = vdwg.mxu0
        %1303 = vrot.lane.b32.xlu0 %v1299, 24
        %v1304 = vpop.permute.xlu0 %1303
        %vm1306 = vcmask 261312
        %1307 = vst.msk [vmem:[#allocation2] sm:$0xff] %vm1306, %v1304
        %v1308 = vld [vmem:[#allocation2] sm:$0xff]
        %v1309 = vld [vmem:[#allocation3] sm:$0xff]
        %v1310 = vld [vmem:[#allocation3 + $0x8] sm:$0xff]
        %v1311 = vld [vmem:[#allocation3 + $0x10] sm:$0xff]
        %v1312 = vld [vmem:[#allocation3 + $0x18] sm:$0xff]
        %v1314 = vsel %vm455, %v1308, 0
        %1316 = vmatprep.subr.mxu0 0.0
        %1317 = vmatpush1.msra.mxu0 0.0
        %1318 = vmatprep.subr.mxu0 0.0
        %1319 = vmatpush1.msra.mxu0 0.0
        %1320 = vmatprep.subr.mxu0 0.0
        %1321 = vmatpush1.msra.mxu0 0.0
        %1322 = vmatprep.subr.mxu0 0.0
        %1323 = vmatpush1.msra.mxu0 0.0
        %1324 = vmatprep.subr.mxu0 0.0
        %1325 = vmatpush1.msra.mxu0 0.0
        %1326 = vmatprep.subr.mxu0 0.0
        %1327 = vmatpush1.msra.mxu0 0.0
        %1328 = vmatprep.subr.mxu0 0.0
        %1329 = vmatpush1.msra.mxu0 0.0
        %1330 = vmatprep.subr.mxu0 0.0
        %1331 = vmatpush1.msra.mxu0 0.0
        %1332 = vmatprep.subr.mxu0 0.0
        %1333 = vmatpush1.msra.mxu0 0.0
        %1334 = vmatprep.subr.mxu0 0.0
        %1335 = vmatpush1.msra.mxu0 0.0
        %1336 = vmatprep.subr.mxu0 0.0
        %1337 = vmatpush1.msra.mxu0 0.0
        %1338 = vmatprep.subr.mxu0 0.0
        %1339 = vmatpush1.msra.mxu0 0.0
        %1340 = vmatprep.subr.mxu0 0.0
        %1341 = vmatpush1.msra.mxu0 %v1312
        %1342 = vmatprep.subr.mxu0 0.0
        %1343 = vmatpush1.msra.mxu0 %v1311
        %1344 = vmatprep.subr.mxu0 0.0
        %1345 = vmatpush1.msra.mxu0 %v1310
        %1346 = vmatprep.subr.mxu0 0.0
        %1347 = vmatpush1.msra.mxu0 %v1309
        %1348 = vmatprep.subr.mxu0 0.0
        %1349 = vmatpush2.msra.mxu0 0.0
        %1350 = vmatprep.subr.mxu0 0.0
        %1351 = vmatpush2.msra.mxu0 0.0
        %1352 = vmatprep.subr.mxu0 0.0
        %1353 = vmatpush2.msra.mxu0 0.0
        %1354 = vmatprep.subr.mxu0 0.0
        %1355 = vmatpush2.msra.mxu0 0.0
        %1356 = vmatprep.subr.mxu0 0.0
        %1357 = vmatpush2.msra.mxu0 0.0
        %1358 = vmatprep.subr.mxu0 0.0
        %1359 = vmatpush2.msra.mxu0 0.0
        %1360 = vmatprep.subr.mxu0 0.0
        %1361 = vmatpush2.msra.mxu0 0.0
        %1362 = vmatprep.subr.mxu0 0.0
        %1363 = vmatpush2.msra.mxu0 0.0
        %1364 = vmatprep.subr.mxu0 0.0
        %1365 = vmatpush2.msra.mxu0 0.0
        %1366 = vmatprep.subr.mxu0 0.0
        %1367 = vmatpush2.msra.mxu0 0.0
        %1368 = vmatprep.subr.mxu0 0.0
        %1369 = vmatpush2.msra.mxu0 0.0
        %1370 = vmatprep.subr.mxu0 0.0
        %1371 = vmatpush2.msra.mxu0 0.0
        %1372 = vmatprep.subr.mxu0 0.0
        %1373 = vmatpush2.msra.mxu0 0.0
        %1374 = vmatprep.subr.mxu0 0.0
        %1375 = vmatpush2.msra.mxu0 0.0
        %1376 = vmatprep.subr.mxu0 0.0
        %1377 = vmatpush2.msra.mxu0 0.0
        %1378 = vmatprep.subr.mxu0 0.0
        %1379 = vmatpush2.msra.mxu0 0.0
        %1380 = vmatprep.mubr.f32.mxu0 0.0
        %1381 = vmatmul.mubr.f32.gmra.mxu0 %v1314
        %v1382 = vpop.f32.mrf.mxu0
        %v1383 = vadd.f32 0.0, %v1382
        %v1384 = vpop.f32.mrf.mxu0
        %1385 = vdwg.mxu0
        %v1386 = vadd.f32 %v443, %v1383
        %v1387 = vld [vmem:[%s7] sm:$0x1]
        %v1389 = vlaneseq
        %v1390 = vshrl.u32 %v1389, 7
        %v1391 = vsub.s32 0, %v1390
        %v1392 = vrot.slane %v1387, %v1391
        %v1394 = vadd.f32 %v1386, %v1392
        %v1395 = vsel %vm455, %v1394, 0.0
        %1396 = vadd.xlane.f32.xlu0 %v1395
        %v1397 = vpop.xlane.xlu0 %1396
        %v1398 = vrcp.pop 32.0
        %v1399 = vmul.f32 %v1397, %v1398
        %v1400 = vsub.f32 %v1394, %v1399
        %v1401 = vmul.f32 %v1400, %v1400
        %v1402 = vsel %vm455, %v1401, 0.0
        %1403 = vadd.xlane.f32.xlu0 %v1402
        %v1404 = vpop.xlane.xlu0 %1403
        %v1405 = vmul.f32 %v1404, %v1398
        %v1406 = vadd.f32 %v1405, 1e-05
        %v1407 = vrsqrt.pop %v1406
        %v1408 = vmul.f32 %v1400, %v1407
        %v1409 = vld [vmem:[#allocation5] sm:$0x1]
        %v1411 = vlaneseq
        %v1412 = vshrl.u32 %v1411, 7
        %v1413 = vsub.s32 0, %v1412
        %v1414 = vrot.slane %v1409, %v1413
        %v1416 = vmul.f32 %v1408, %v1414
        %v1417 = vld [vmem:[#allocation7] sm:$0x1]
        %v1419 = vlaneseq
        %v1420 = vshrl.u32 %v1419, 7
        %v1421 = vsub.s32 0, %v1420
        %v1422 = vrot.slane %v1417, %v1421
        %v1424 = vadd.f32 %v1416, %v1422
        %1425 = vst.msk [vmem:[%s442] sm:$0xff] %vm455, %v1424
        %p1426 = scmp.lt.s32.totalorder %s27, 1
        %s1427 = scalar_select %p1426, %s27, 1
        %p1428 = scmp.lt.s32.totalorder %s28, 0
        %s1429 = scalar_select %p1428, %s28, 0
        %s1430 = sadd.s32 %s1429, %s1427
        %s1431 = smul.addr %s1430, 8
        %s1432 = scalar_lea.vmem %s10, %s1431
        // Predicated region
        $region73: #{decoder_forward.7} parent=59 // pred_check
          %p1433 = pneg %p277
        $region74: #{decoder_forward.7} parent=59 // pred_check_branch
          %1435 = sbr.rel (%p1433) target = $region76
        $region75: #{decoder_forward.7} parent=59 // pred_region
          _
        $region76: #{decoder_forward.7} parent=59 // pred_fallthru
          _
      $region60: #{decoder_forward.7} parent=5 // pred_fallthru
        _
      %p1436 = scmp.le.s32.totalorder 2, %s18
      // Predicated region
      $region77: #{decoder_forward.7} parent=5 // pred_check
        %p1437 = pneg %p1436
      $region78: #{decoder_forward.7} parent=5 // pred_check_branch
        %1439 = sbr.rel (%p1437) target = $region80
      $region79: #{decoder_forward.7} parent=5 // pred_region
        %s1440 = ssub.s32 %s18, 2
        // Predicated region
        $region81: #{decoder_forward.7} parent=79 // pred_check
          %p1441 = pneg %p283
        $region82: #{decoder_forward.7} parent=79 // pred_check_branch
          %1443 = sbr.rel (%p1441) target = $region84
        $region83: #{decoder_forward.7} parent=79 // pred_region
          %p1444 = scmp.lt.s32.totalorder %s29, 1
          %s1445 = scalar_select %p1444, %s29, 1
          %p1446 = scmp.lt.s32.totalorder %s30, 0
          %s1447 = scalar_select %p1446, %s30, 0
          %s1448 = sadd.s32 %s1447, %s1445
          %s1449 = smul.addr %s1448, 8
          %s1450 = scalar_lea.vmem %s10, %s1449
        $region84: #{decoder_forward.7} parent=79 // pred_fallthru
          _
      $region80: #{decoder_forward.7} parent=5 // pred_fallthru
        _
    $region6: #{decoder_forward.7} parent=1 // loop_footer
      %s22 = sadd.s32 1, %s18
    $region7: #{decoder_forward.7} parent=1 // loop_footer_branch
      %17 = sbr.rel target = $region3
    $region8: #{decoder_forward.7} parent=1 // loop_exit
      _
    %1451 = vsyncpa [#allocation4], 1
    %s1452 = scalar_lea.sflag [#allocation4], 1
    %1453 = vsyncpa %s1452, 1
    %1454 = vsyncpa [#allocation6], 1

// kernel: decoder_forward.10
$region0: #{decoder_forward.10}
  #allocation0 [shape = 'u32[]', space=smem, size = 0x4, offset = 0x4, fixed_abs, tag = 'smem constant byte address 0x4 - core index']
  #allocation1 [shape = 'u32[144,128]{1,0:T(1,128)}', space=vmem, size = 0x12000, scoped, tag = 'internal scratch']
  #allocation2 [shape = 'f32[8,32]{1,0:T(8,128)}', space=vmem, size = 0x1000, scoped, tag = 'scratch operand']
  %s0 = inlined_call_operand.vmem [shape: f32[2,8,32], index: 0, kind: input, shape index: {}, may-alias: {0,1}]
  %s1 = inlined_call_operand.vmem [shape: f32[2,8,32], index: 1, kind: input, shape index: {}, may-alias: {0,1}]
  %s2 = inlined_call_operand.vmem [shape: f32[32,32], index: 2, kind: input, shape index: {}]
  %s3 = inlined_call_operand.vmem [shape: f32[1,32], index: 3, kind: input, shape index: {}]
  %s4 = inlined_call_operand.vmem [shape: f32[32,64], index: 4, kind: input, shape index: {}]
  %s5 = inlined_call_operand.vmem [shape: f32[1,64], index: 5, kind: input, shape index: {}]
  %s6 = inlined_call_operand.vmem [shape: f32[32,32], index: 6, kind: input, shape index: {}]
  %s7 = inlined_call_operand.vmem [shape: f32[1,32], index: 7, kind: input, shape index: {}]
  %s8 = inlined_call_operand.vmem [shape: f32[1,32], index: 8, kind: input, shape index: {}]
  %s9 = inlined_call_operand.vmem [shape: f32[1,32], index: 9, kind: input, shape index: {}]
  %s10 = inlined_call_operand.vmem [shape: f32[2,8,32], index: 10, kind: output, shape index: {}]
  %s11 = sld [smem:[#allocation0]]
  $region73: #{decoder_forward.10} parent=0
    _
  %s13 = ssub.s32 1, %s11
  %s14 = scalar_select 0, %s13, %s11
  loop: start=0, step=1, limit=4
  $region2: #{decoder_forward.10} parent=0 // loop_pre_header
    _
  $region3: #{decoder_forward.10} parent=0 // loop_header
    %s16 = sphi 0, %s20
    %p17 = scmp.ge.s32.totalorder %s16, 4
    %s23 = sphi 0, %s35
    %s24 = sphi 0, %s31
    %s25 = sphi 0, %s23
    %s26 = sphi 0, %s24
    %s27 = sphi 0, %s25
    %s28 = sphi 0, %s26
    %s40 = sphi 0, %s42
    %s43 = sphi 0, %s40
    %s44 = sphi 0, %s43
    %s60 = sphi 0, %s44
    %s66 = sphi 0, %s68
    %s69 = sphi 0, %s66
    %s70 = sphi 0, %s69
    %s86 = sphi 0, %s70
    %s90 = sphi 0, %s90
    %s92 = sphi 0, %s90
    %s93 = sphi 0, %s92
    %s107 = sphi 0, %s93
    %s111 = sphi 0, %s111
    %s113 = sphi 0, %s111
    %s114 = sphi 0, %s113
    %s128 = sphi 0, %s114
    %s132 = sphi 0, %s132
    %s134 = sphi 0, %s132
    %s135 = sphi 0, %s134
    %s149 = sphi 0, %s135
    %s153 = sphi 0, %s153
    %s155 = sphi 0, %s153
    %s156 = sphi 0, %s155
    %s170 = sphi 0, %s156
    %s174 = sphi 0, %s174
    %s176 = sphi 0, %s174
    %s177 = sphi 0, %s176
    %s191 = sphi 0, %s177
    %s195 = sphi 0, %s195
    %s197 = sphi 0, %s195
    %s198 = sphi 0, %s197
    %s212 = sphi 0, %s198
    %s216 = sphi 0, %s216
    %s218 = sphi 0, %s216
    %s219 = sphi 0, %s218
    %s233 = sphi 0, %s219
    %s237 = sphi 0, %s237
    %s239 = sphi 0, %s237
    %s240 = sphi 0, %s239
    %s254 = sphi 0, %s240
    %s262 = sphi 0, %s264
    %s265 = sphi 0, %s262
    %s266 = sphi 0, %s265
    %s282 = sphi 0, %s266
  $region4: #{decoder_forward.10} parent=0 // loop_header_branch
    %19 = sbr.rel (%p17) target = $region8
  $region5: #{decoder_forward.10} parent=0 // loop_body
    %s21 = ssub.s32 %s16, 1
    %s22 = ssub.s32 %s16, 2
    %s29 = sadd.s32 1, %s24
    %p30 = scmp.ge.s32.totalorder %s29, 1
    %s31 = scalar_select %p30, 0, %s29
    %s32 = sadd.s32 1, %s23
    %s33 = scalar_select %p30, %s32, %s23
    %p34 = scmp.ge.s32.totalorder %s33, 2
    %s35 = scalar_select %p34, 0, %s33
    %s36 = ssub.s32 %s23, %s35
    %s37 = ssub.s32 %s24, %s31
    %s38 = sor.u32 %s36, %s37
    %p39 = scmp.eq.s32.totalorder %s38, 0
    %s41 = sadd.s32 %s40, 1
    %s42 = scalar_select %p39, %s40, %s41
    %p45 = pneg %p39
    %p46 = scmp.eq.s32.totalorder %s16, 1
    %p47 = por %p45, %p46
    %p48 = scmp.ne.s32.totalorder %s40, %s43
    %p49 = scmp.eq.s32.totalorder %s16, 0
    %p50 = por %p48, %p49
    %p51 = scmp.ne.s32.totalorder %s40, %s43
    %p52 = scmp.eq.s32.totalorder %s21, 1
    %p53 = por %p51, %p52
    %p54 = scmp.ne.s32.totalorder %s43, %s44
    %p55 = scmp.eq.s32.totalorder %s21, 0
    %p56 = por %p54, %p55
    %p57 = scmp.ne.s32.totalorder %s43, %s44
    %p58 = scmp.eq.s32.totalorder %s22, 1
    %p59 = por %p57, %p58
    %p61 = scmp.ne.s32.totalorder %s44, %s60
    %p62 = scmp.eq.s32.totalorder %s22, 0
    %p63 = por %p61, %p62
    %s64 = ssub.s32 %s23, %s35
    %p65 = scmp.eq.s32.totalorder %s64, 0
    %s67 = sadd.s32 %s66, 1
    %s68 = scalar_select %p65, %s66, %s67
    %p71 = pneg %p65
    %p72 = scmp.eq.s32.totalorder %s16, 1
    %p73 = por %p71, %p72
    %p74 = scmp.ne.s32.totalorder %s66, %s69
    %p75 = scmp.eq.s32.totalorder %s16, 0
    %p76 = por %p74, %p75
    %p77 = scmp.ne.s32.totalorder %s66, %s69
    %p78 = scmp.eq.s32.totalorder %s21, 1
    %p79 = por %p77, %p78
    %p80 = scmp.ne.s32.totalorder %s69, %s70
    %p81 = scmp.eq.s32.totalorder %s21, 0
    %p82 = por %p80, %p81
    %p83 = scmp.ne.s32.totalorder %s69, %s70
    %p84 = scmp.eq.s32.totalorder %s22, 1
    %p85 = por %p83, %p84
    %p87 = scmp.ne.s32.totalorder %s70, %s86
    %p88 = scmp.eq.s32.totalorder %s22, 0
    %p89 = por %p87, %p88
    %s91 = sadd.s32 %s90, 1
    %p94 = scmp.eq.s32.totalorder %s16, 1
    %p95 = scmp.ne.s32.totalorder %s90, %s92
    %p96 = scmp.eq.s32.totalorder %s16, 0
    %p97 = por %p95, %p96
    %p98 = scmp.ne.s32.totalorder %s90, %s92
    %p99 = scmp.eq.s32.totalorder %s21, 1
    %p100 = por %p98, %p99
    %p101 = scmp.ne.s32.totalorder %s92, %s93
    %p102 = scmp.eq.s32.totalorder %s21, 0
    %p103 = por %p101, %p102
    %p104 = scmp.ne.s32.totalorder %s92, %s93
    %p105 = scmp.eq.s32.totalorder %s22, 1
    %p106 = por %p104, %p105
    %p108 = scmp.ne.s32.totalorder %s93, %s107
    %p109 = scmp.eq.s32.totalorder %s22, 0
    %p110 = por %p108, %p109
    %s112 = sadd.s32 %s111, 1
    %p115 = scmp.eq.s32.totalorder %s16, 1
    %p116 = scmp.ne.s32.totalorder %s111, %s113
    %p117 = scmp.eq.s32.totalorder %s16, 0
    %p118 = por %p116, %p117
    %p119 = scmp.ne.s32.totalorder %s111, %s113
    %p120 = scmp.eq.s32.totalorder %s21, 1
    %p121 = por %p119, %p120
    %p122 = scmp.ne.s32.totalorder %s113, %s114
    %p123 = scmp.eq.s32.totalorder %s21, 0
    %p124 = por %p122, %p123
    %p125 = scmp.ne.s32.totalorder %s113, %s114
    %p126 = scmp.eq.s32.totalorder %s22, 1
    %p127 = por %p125, %p126
    %p129 = scmp.ne.s32.totalorder %s114, %s128
    %p130 = scmp.eq.s32.totalorder %s22, 0
    %p131 = por %p129, %p130
    %s133 = sadd.s32 %s132, 1
    %p136 = scmp.eq.s32.totalorder %s16, 1
    %p137 = scmp.ne.s32.totalorder %s132, %s134
    %p138 = scmp.eq.s32.totalorder %s16, 0
    %p139 = por %p137, %p138
    %p140 = scmp.ne.s32.totalorder %s132, %s134
    %p141 = scmp.eq.s32.totalorder %s21, 1
    %p142 = por %p140, %p141
    %p143 = scmp.ne.s32.totalorder %s134, %s135
    %p144 = scmp.eq.s32.totalorder %s21, 0
    %p145 = por %p143, %p144
    %p146 = scmp.ne.s32.totalorder %s134, %s135
    %p147 = scmp.eq.s32.totalorder %s22, 1
    %p148 = por %p146, %p147
    %p150 = scmp.ne.s32.totalorder %s135, %s149
    %p151 = scmp.eq.s32.totalorder %s22, 0
    %p152 = por %p150, %p151
    %s154 = sadd.s32 %s153, 1
    %p157 = scmp.eq.s32.totalorder %s16, 1
    %p158 = scmp.ne.s32.totalorder %s153, %s155
    %p159 = scmp.eq.s32.totalorder %s16, 0
    %p160 = por %p158, %p159
    %p161 = scmp.ne.s32.totalorder %s153, %s155
    %p162 = scmp.eq.s32.totalorder %s21, 1
    %p163 = por %p161, %p162
    %p164 = scmp.ne.s32.totalorder %s155, %s156
    %p165 = scmp.eq.s32.totalorder %s21, 0
    %p166 = por %p164, %p165
    %p167 = scmp.ne.s32.totalorder %s155, %s156
    %p168 = scmp.eq.s32.totalorder %s22, 1
    %p169 = por %p167, %p168
    %p171 = scmp.ne.s32.totalorder %s156, %s170
    %p172 = scmp.eq.s32.totalorder %s22, 0
    %p173 = por %p171, %p172
    %s175 = sadd.s32 %s174, 1
    %p178 = scmp.eq.s32.totalorder %s16, 1
    %p179 = scmp.ne.s32.totalorder %s174, %s176
    %p180 = scmp.eq.s32.totalorder %s16, 0
    %p181 = por %p179, %p180
    %p182 = scmp.ne.s32.totalorder %s174, %s176
    %p183 = scmp.eq.s32.totalorder %s21, 1
    %p184 = por %p182, %p183
    %p185 = scmp.ne.s32.totalorder %s176, %s177
    %p186 = scmp.eq.s32.totalorder %s21, 0
    %p187 = por %p185, %p186
    %p188 = scmp.ne.s32.totalorder %s176, %s177
    %p189 = scmp.eq.s32.totalorder %s22, 1
    %p190 = por %p188, %p189
    %p192 = scmp.ne.s32.totalorder %s177, %s191
    %p193 = scmp.eq.s32.totalorder %s22, 0
    %p194 = por %p192, %p193
    %s196 = sadd.s32 %s195, 1
    %p199 = scmp.eq.s32.totalorder %s16, 1
    %p200 = scmp.ne.s32.totalorder %s195, %s197
    %p201 = scmp.eq.s32.totalorder %s16, 0
    %p202 = por %p200, %p201
    %p203 = scmp.ne.s32.totalorder %s195, %s197
    %p204 = scmp.eq.s32.totalorder %s21, 1
    %p205 = por %p203, %p204
    %p206 = scmp.ne.s32.totalorder %s197, %s198
    %p207 = scmp.eq.s32.totalorder %s21, 0
    %p208 = por %p206, %p207
    %p209 = scmp.ne.s32.totalorder %s197, %s198
    %p210 = scmp.eq.s32.totalorder %s22, 1
    %p211 = por %p209, %p210
    %p213 = scmp.ne.s32.totalorder %s198, %s212
    %p214 = scmp.eq.s32.totalorder %s22, 0
    %p215 = por %p213, %p214
    %s217 = sadd.s32 %s216, 1
    %p220 = scmp.eq.s32.totalorder %s16, 1
    %p221 = scmp.ne.s32.totalorder %s216, %s218
    %p222 = scmp.eq.s32.totalorder %s16, 0
    %p223 = por %p221, %p222
    %p224 = scmp.ne.s32.totalorder %s216, %s218
    %p225 = scmp.eq.s32.totalorder %s21, 1
    %p226 = por %p224, %p225
    %p227 = scmp.ne.s32.totalorder %s218, %s219
    %p228 = scmp.eq.s32.totalorder %s21, 0
    %p229 = por %p227, %p228
    %p230 = scmp.ne.s32.totalorder %s218, %s219
    %p231 = scmp.eq.s32.totalorder %s22, 1
    %p232 = por %p230, %p231
    %p234 = scmp.ne.s32.totalorder %s219, %s233
    %p235 = scmp.eq.s32.totalorder %s22, 0
    %p236 = por %p234, %p235
    %s238 = sadd.s32 %s237, 1
    %p241 = scmp.eq.s32.totalorder %s16, 1
    %p242 = scmp.ne.s32.totalorder %s237, %s239
    %p243 = scmp.eq.s32.totalorder %s16, 0
    %p244 = por %p242, %p243
    %p245 = scmp.ne.s32.totalorder %s237, %s239
    %p246 = scmp.eq.s32.totalorder %s21, 1
    %p247 = por %p245, %p246
    %p248 = scmp.ne.s32.totalorder %s239, %s240
    %p249 = scmp.eq.s32.totalorder %s21, 0
    %p250 = por %p248, %p249
    %p251 = scmp.ne.s32.totalorder %s239, %s240
    %p252 = scmp.eq.s32.totalorder %s22, 1
    %p253 = por %p251, %p252
    %p255 = scmp.ne.s32.totalorder %s240, %s254
    %p256 = scmp.eq.s32.totalorder %s22, 0
    %p257 = por %p255, %p256
    %s258 = ssub.s32 %s23, %s35
    %s259 = ssub.s32 %s24, %s31
    %s260 = sor.u32 %s258, %s259
    %p261 = scmp.eq.s32.totalorder %s260, 0
    %s263 = sadd.s32 %s262, 1
    %s264 = scalar_select %p261, %s262, %s263
    %p267 = pneg %p261
    %p268 = scmp.eq.s32.totalorder %s16, 1
    %p269 = por %p267, %p268
    %p270 = scmp.ne.s32.totalorder %s262, %s265
    %p271 = scmp.eq.s32.totalorder %s16, 0
    %p272 = por %p270, %p271
    %p273 = scmp.ne.s32.totalorder %s262, %s265
    %p274 = scmp.eq.s32.totalorder %s21, 1
    %p275 = por %p273, %p274
    %p276 = scmp.ne.s32.totalorder %s265, %s266
    %p277 = scmp.eq.s32.totalorder %s21, 0
    %p278 = por %p276, %p277
    %p279 = scmp.ne.s32.totalorder %s265, %s266
    %p280 = scmp.eq.s32.totalorder %s22, 1
    %p281 = por %p279, %p280
    %p283 = scmp.ne.s32.totalorder %s266, %s282
    %p284 = scmp.eq.s32.totalorder %s22, 0
    %p285 = por %p283, %p284
    %p286 = scmp.le.s32.totalorder 1, %s16
    %p287 = scmp.lt.s32.totalorder %s16, 3
    %p288 = pnand %p286, %p287
    %p289 = pneg %p288
    // Predicated region
    $region9: #{decoder_forward.10} parent=5 // pred_check
      _
    $region10: #{decoder_forward.10} parent=5 // pred_check_branch
      %291 = sbr.rel (%p288) target = $region12
    $region11: #{decoder_forward.10} parent=5 // pred_region
      %s292 = ssub.s32 %s16, 1
      // Predicated region
      $region13: #{decoder_forward.10} parent=11 // pred_check
        %p293 = pneg %p103
      $region14: #{decoder_forward.10} parent=11 // pred_check_branch
        %295 = sbr.rel (%p293) target = $region16
      $region15: #{decoder_forward.10} parent=11 // pred_region
        _
      $region16: #{decoder_forward.10} parent=11 // pred_fallthru
        _
      // Predicated region
      $region17: #{decoder_forward.10} parent=11 // pred_check
        %p296 = pneg %p124
      $region18: #{decoder_forward.10} parent=11 // pred_check_branch
        %298 = sbr.rel (%p296) target = $region20
      $region19: #{decoder_forward.10} parent=11 // pred_region
        _
      $region20: #{decoder_forward.10} parent=11 // pred_fallthru
        _
      // Predicated region
      $region21: #{decoder_forward.10} parent=11 // pred_check
        %p299 = pneg %p145
      $region22: #{decoder_forward.10} parent=11 // pred_check_branch
        %301 = sbr.rel (%p299) target = $region24
      $region23: #{decoder_forward.10} parent=11 // pred_region
        _
      $region24: #{decoder_forward.10} parent=11 // pred_fallthru
        _
      // Predicated region
      $region25: #{decoder_forward.10} parent=11 // pred_check
        %p302 = pneg %p166
      $region26: #{decoder_forward.10} parent=11 // pred_check_branch
        %304 = sbr.rel (%p302) target = $region28
      $region27: #{decoder_forward.10} parent=11 // pred_region
        _
      $region28: #{decoder_forward.10} parent=11 // pred_fallthru
        _
      // Predicated region
      $region29: #{decoder_forward.10} parent=11 // pred_check
        %p305 = pneg %p187
      $region30: #{decoder_forward.10} parent=11 // pred_check_branch
        %307 = sbr.rel (%p305) target = $region32
      $region31: #{decoder_forward.10} parent=11 // pred_region
        _
      $region32: #{decoder_forward.10} parent=11 // pred_fallthru
        _
      // Predicated region
      $region33: #{decoder_forward.10} parent=11 // pred_check
        %p308 = pneg %p208
      $region34: #{decoder_forward.10} parent=11 // pred_check_branch
        %310 = sbr.rel (%p308) target = $region36
      $region35: #{decoder_forward.10} parent=11 // pred_region
        _
      $region36: #{decoder_forward.10} parent=11 // pred_fallthru
        _
      // Predicated region
      $region37: #{decoder_forward.10} parent=11 // pred_check
        %p311 = pneg %p229
      $region38: #{decoder_forward.10} parent=11 // pred_check_branch
        %313 = sbr.rel (%p311) target = $region40
      $region39: #{decoder_forward.10} parent=11 // pred_region
        _
      $region40: #{decoder_forward.10} parent=11 // pred_fallthru
        _
      // Predicated region
      $region41: #{decoder_forward.10} parent=11 // pred_check
        %p314 = pneg %p250
      $region42: #{decoder_forward.10} parent=11 // pred_check_branch
        %316 = sbr.rel (%p314) target = $region44
      $region43: #{decoder_forward.10} parent=11 // pred_region
        _
      $region44: #{decoder_forward.10} parent=11 // pred_fallthru
        _
    $region12: #{decoder_forward.10} parent=5 // pred_fallthru
      _
    %p317 = scmp.lt.s32.totalorder %s16, 2
    // Predicated region
    $region45: #{decoder_forward.10} parent=5 // pred_check
      %p318 = pneg %p317
    $region46: #{decoder_forward.10} parent=5 // pred_check_branch
      %320 = sbr.rel (%p318) target = $region48
    $region47: #{decoder_forward.10} parent=5 // pred_region
      // Predicated region
      $region49: #{decoder_forward.10} parent=47 // pred_check
        %p321 = pneg %p50
      $region50: #{decoder_forward.10} parent=47 // pred_check_branch
        %323 = sbr.rel (%p321) target = $region52
      $region51: #{decoder_forward.10} parent=47 // pred_region
        %p324 = scmp.lt.s32.totalorder %s23, 1
        %s325 = scalar_select %p324, %s23, 1
        %p326 = scmp.lt.s32.totalorder %s24, 0
        %s327 = scalar_select %p326, %s24, 0
        %s328 = sadd.s32 %s327, %s325
        %s329 = smul.addr %s328, 8
        %s330 = scalar_lea.vmem %s0, %s329
      $region52: #{decoder_forward.10} parent=47 // pred_fallthru
        _
      // Predicated region
      $region53: #{decoder_forward.10} parent=47 // pred_check
        %p331 = pneg %p76
      $region54: #{decoder_forward.10} parent=47 // pred_check_branch
        %333 = sbr.rel (%p331) target = $region56
      $region55: #{decoder_forward.10} parent=47 // pred_region
        %p334 = scmp.lt.s32.totalorder %s23, 1
        %s335 = scalar_select %p334, %s23, 1
        %s336 = smul.addr %s335, 8
        %s337 = scalar_lea.vmem %s1, %s336
      $region56: #{decoder_forward.10} parent=47 // pred_fallthru
        _
    $region48: #{decoder_forward.10} parent=5 // pred_fallthru
      _
    %p338 = scmp.le.s32.totalorder 1, %s16
    %p339 = scmp.lt.s32.totalorder %s16, 3
    %p340 = pnand %p338, %p339
    %p341 = pneg %p340
    // Predicated region
    $region57: #{decoder_forward.10} parent=5 // pred_check
      _
    $region58: #{decoder_forward.10} parent=5 // pred_check_branch
      %343 = sbr.rel (%p340) target = $region60
    $region59: #{decoder_forward.10} parent=5 // pred_region
      %s344 = ssub.s32 %s16, 1
      %p345 = scmp.lt.s32.totalorder %s25, 1
      %s346 = scalar_select %p345, %s25, 1
      %p347 = scmp.lt.s32.totalorder %s26, 0
      %s348 = scalar_select %p347, %s26, 0
      %s349 = sadd.s32 %s348, %s346
      %s350 = smul.addr %s349, 8
      %s351 = scalar_lea.vmem %s0, %s350
      %p352 = pneg %p56
      %p353 = pneg %p53
      %p354 = scmp.lt.s32.totalorder %s25, 1
      %s355 = scalar_select %p354, %s25, 1
      %s356 = smul.addr %s355, 8
      %s357 = scalar_lea.vmem %s1, %s356
      %p358 = pneg %p82
      %p359 = pneg %p79
      %p360 = pneg %p103
      %p361 = pneg %p100
      %p362 = pneg %p124
      %p363 = pneg %p121
      %p364 = pneg %p145
      %p365 = pneg %p142
      %p366 = pneg %p166
      %p367 = pneg %p163
      %p368 = pneg %p187
      %p369 = pneg %p184
      %p370 = pneg %p208
      %p371 = pneg %p205
      %p372 = pneg %p229
      %p373 = pneg %p226
      %p374 = pneg %p250
      %p375 = pneg %p247
      %p376 = pneg %p278
      %p377 = pneg %p275
      %p378 = scmp.lt.s32.totalorder %s25, 1
      %s379 = scalar_select %p378, %s25, 1
      %p380 = scmp.lt.s32.totalorder %s26, 0
      %s381 = scalar_select %p380, %s26, 0
      %s382 = sadd.s32 %s381, %s379
      %s383 = smul.addr %s382, 8
      %s384 = scalar_lea.vmem %s10, %s383
      %p385 = scmp.lt.s32.totalorder %s25, 1
      %s386 = scalar_select %p385, %s25, 1
      %p387 = scmp.lt.s32.totalorder %s26, 0
      %s388 = scalar_select %p387, %s26, 0
      %s389 = sadd.s32 %s388, %s386
      %s390 = smul.addr %s389, 8
      %s391 = scalar_lea.vmem %s0, %s390
      %p392 = scmp.lt.s32.totalorder %s25, 1
      %s393 = scalar_select %p392, %s25, 1
      %s394 = smul.addr %s393, 8
      %s395 = scalar_lea.vmem %s1, %s394
      %p396 = scmp.lt.s32.totalorder %s25, 1
      %s397 = scalar_select %p396, %s25, 1
      %p398 = scmp.lt.s32.totalorder %s26, 0
      %s399 = scalar_select %p398, %s26, 0
      %s400 = sadd.s32 %s399, %s397
      %s401 = smul.addr %s400, 8
      %s402 = scalar_lea.vmem %s10, %s401
      %v403 = vld [vmem:[%s391] sm:$0xff]
      %v404 = vld [vmem:[%s2] sm:$0xff]
      %v405 = vld [vmem:[%s2 + $0x8] sm:$0xff]
      %v406 = vld [vmem:[%s2 + $0x10] sm:$0xff]
      %v407 = vld [vmem:[%s2 + $0x18] sm:$0xff]
      %v408 = vld [vmem:[%s3] sm:$0x1]
      %v410 = vlaneseq
      %v411 = vshrl.u32 %v410, 7
      %v412 = vsub.s32 0, %v411
      %v413 = vrot.slane %v408, %v412
      %vm415 = vcmask 261120
      %v417 = vsel %vm415, %v403, 0
      %419 = vmatprep.subr.mxu0 0.0
      %420 = vmatpush1.msra.mxu0 0.0
      %421 = vmatprep.subr.mxu0 0.0
      %422 = vmatpush1.msra.mxu0 0.0
      %423 = vmatprep.subr.mxu0 0.0
      %424 = vmatpush1.msra.mxu0 0.0
      %425 = vmatprep.subr.mxu0 0.0
      %426 = vmatpush1.msra.mxu0 0.0
      %427 = vmatprep.subr.mxu0 0.0
      %428 = vmatpush1.msra.mxu0 0.0
      %429 = vmatprep.subr.mxu0 0.0
      %430 = vmatpush1.msra.mxu0 0.0
      %431 = vmatprep.subr.mxu0 0.0
      %432 = vmatpush1.msra.mxu0 0.0
      %433 = vmatprep.subr.mxu0 0.0
      %434 = vmatpush1.msra.mxu0 0.0
      %435 = vmatprep.subr.mxu0 0.0
      %436 = vmatpush1.msra.mxu0 0.0
      %437 = vmatprep.subr.mxu0 0.0
      %438 = vmatpush1.msra.mxu0 0.0
      %439 = vmatprep.subr.mxu0 0.0
      %440 = vmatpush1.msra.mxu0 0.0
      %441 = vmatprep.subr.mxu0 0.0
      %442 = vmatpush1.msra.mxu0 0.0
      %443 = vmatprep.subr.mxu0 0.0
      %444 = vmatpush1.msra.mxu0 %v407
      %445 = vmatprep.subr.mxu0 0.0
      %446 = vmatpush1.msra.mxu0 %v406
      %447 = vmatprep.subr.mxu0 0.0
      %448 = vmatpush1.msra.mxu0 %v405
      %449 = vmatprep.subr.mxu0 0.0
      %450 = vmatpush1.msra.mxu0 %v404
      %451 = vmatprep.subr.mxu0 0.0
      %452 = vmatpush2.msra.mxu0 0.0
      %453 = vmatprep.subr.mxu0 0.0
      %454 = vmatpush2.msra.mxu0 0.0
      %455 = vmatprep.subr.mxu0 0.0
      %456 = vmatpush2.msra.mxu0 0.0
      %457 = vmatprep.subr.mxu0 0.0
      %458 = vmatpush2.msra.mxu0 0.0
      %459 = vmatprep.subr.mxu0 0.0
      %460 = vmatpush2.msra.mxu0 0.0
      %461 = vmatprep.subr.mxu0 0.0
      %462 = vmatpush2.msra.mxu0 0.0
      %463 = vmatprep.subr.mxu0 0.0
      %464 = vmatpush2.msra.mxu0 0.0
      %465 = vmatprep.subr.mxu0 0.0
      %466 = vmatpush2.msra.mxu0 0.0
      %467 = vmatprep.subr.mxu0 0.0
      %468 = vmatpush2.msra.mxu0 0.0
      %469 = vmatprep.subr.mxu0 0.0
      %470 = vmatpush2.msra.mxu0 0.0
      %471 = vmatprep.subr.mxu0 0.0
      %472 = vmatpush2.msra.mxu0 0.0
      %473 = vmatprep.subr.mxu0 0.0
      %474 = vmatpush2.msra.mxu0 0.0
      %475 = vmatprep.subr.mxu0 0.0
      %476 = vmatpush2.msra.mxu0 0.0
      %477 = vmatprep.subr.mxu0 0.0
      %478 = vmatpush2.msra.mxu0 0.0
      %479 = vmatprep.subr.mxu0 0.0
      %480 = vmatpush2.msra.mxu0 0.0
      %481 = vmatprep.subr.mxu0 0.0
      %482 = vmatpush2.msra.mxu0 0.0
      %483 = vmatprep.mubr.f32.mxu0 0.0
      %484 = vmatmul.mubr.f32.gmra.mxu0 %v417
      %v485 = vpop.f32.mrf.mxu0
      %v486 = vadd.f32 %v413, %v485
      %v487 = vpop.f32.mrf.mxu0
      %488 = vdwg.mxu0
      %v489 = vld [vmem:[%s395] sm:$0xff]
      %v490 = vld [vmem:[%s4] sm:$0xff]
      %v491 = vld [vmem:[%s4 + $0x8] sm:$0xff]
      %v492 = vld [vmem:[%s4 + $0x10] sm:$0xff]
      %v493 = vld [vmem:[%s4 + $0x18] sm:$0xff]
      %v494 = vld [vmem:[%s5] sm:$0x1]
      %v496 = vlaneseq
      %v497 = vshrl.u32 %v496, 7
      %v498 = vsub.s32 0, %v497
      %v499 = vrot.slane %v494, %v498
      %v502 = vsel %vm415, %v489, 0
      %504 = vmatprep.subr.mxu0 0.0
      %505 = vmatpush1.msra.mxu0 0.0
      %506 = vmatprep.subr.mxu0 0.0
      %507 = vmatpush1.msra.mxu0 0.0
      %508 = vmatprep.subr.mxu0 0.0
      %509 = vmatpush1.msra.mxu0 0.0
      %510 = vmatprep.subr.mxu0 0.0
      %511 = vmatpush1.msra.mxu0 0.0
      %512 = vmatprep.subr.mxu0 0.0
      %513 = vmatpush1.msra.mxu0 0.0
      %514 = vmatprep.subr.mxu0 0.0
      %515 = vmatpush1.msra.mxu0 0.0
      %516 = vmatprep.subr.mxu0 0.0
      %517 = vmatpush1.msra.mxu0 0.0
      %518 = vmatprep.subr.mxu0 0.0
      %519 = vmatpush1.msra.mxu0 0.0
      %520 = vmatprep.subr.mxu0 0.0
      %521 = vmatpush1.msra.mxu0 0.0
      %522 = vmatprep.subr.mxu0 0.0
      %523 = vmatpush1.msra.mxu0 0.0
      %524 = vmatprep.subr.mxu0 0.0
      %525 = vmatpush1.msra.mxu0 0.0
      %526 = vmatprep.subr.mxu0 0.0
      %527 = vmatpush1.msra.mxu0 0.0
      %528 = vmatprep.subr.mxu0 0.0
      %529 = vmatpush1.msra.mxu0 %v493
      %530 = vmatprep.subr.mxu0 0.0
      %531 = vmatpush1.msra.mxu0 %v492
      %532 = vmatprep.subr.mxu0 0.0
      %533 = vmatpush1.msra.mxu0 %v491
      %534 = vmatprep.subr.mxu0 0.0
      %535 = vmatpush1.msra.mxu0 %v490
      %536 = vmatprep.subr.mxu0 0.0
      %537 = vmatpush2.msra.mxu0 0.0
      %538 = vmatprep.subr.mxu0 0.0
      %539 = vmatpush2.msra.mxu0 0.0
      %540 = vmatprep.subr.mxu0 0.0
      %541 = vmatpush2.msra.mxu0 0.0
      %542 = vmatprep.subr.mxu0 0.0
      %543 = vmatpush2.msra.mxu0 0.0
      %544 = vmatprep.subr.mxu0 0.0
      %545 = vmatpush2.msra.mxu0 0.0
      %546 = vmatprep.subr.mxu0 0.0
      %547 = vmatpush2.msra.mxu0 0.0
      %548 = vmatprep.subr.mxu0 0.0
      %549 = vmatpush2.msra.mxu0 0.0
      %550 = vmatprep.subr.mxu0 0.0
      %551 = vmatpush2.msra.mxu0 0.0
      %552 = vmatprep.subr.mxu0 0.0
      %553 = vmatpush2.msra.mxu0 0.0
      %554 = vmatprep.subr.mxu0 0.0
      %555 = vmatpush2.msra.mxu0 0.0
      %556 = vmatprep.subr.mxu0 0.0
      %557 = vmatpush2.msra.mxu0 0.0
      %558 = vmatprep.subr.mxu0 0.0
      %559 = vmatpush2.msra.mxu0 0.0
      %560 = vmatprep.subr.mxu0 0.0
      %561 = vmatpush2.msra.mxu0 0.0
      %562 = vmatprep.subr.mxu0 0.0
      %563 = vmatpush2.msra.mxu0 0.0
      %564 = vmatprep.subr.mxu0 0.0
      %565 = vmatpush2.msra.mxu0 0.0
      %566 = vmatprep.subr.mxu0 0.0
      %567 = vmatpush2.msra.mxu0 0.0
      %568 = vmatprep.mubr.f32.mxu0 0.0
      %569 = vmatmul.mubr.f32.gmra.mxu0 %v502
      %v570 = vpop.f32.mrf.mxu0
      %v571 = vadd.f32 %v499, %v570
      %v572 = vpop.f32.mrf.mxu0
      %573 = vdwg.mxu0
      %s574 = smul.u32 %s26, 8
      %v575 = vlaneseq
      %v576 = vshrl.u32 %v575, 7
      %v577 = vstv %s574
      %v578 = vadd.s32 %v576, %v577
      %v579 = vlaneseq
      %v580 = vand.u32 %v579, 127
      %vm581 = vcmp.le.s32.totalorder %v580, %v578
      %vm582 = vcmask 64512
      %v584 = vsel %vm582, %v486, 0
      %v587 = vsel %vm582, %v571, 0
      %589 = vmatprep.subr.mxu0 0.0
      %590 = vmatpush1.xpose.msra.mxu0 0.0
      %591 = vmatprep.subr.mxu0 0.0
      %592 = vmatpush1.xpose.msra.mxu0 0.0
      %593 = vmatprep.subr.mxu0 0.0
      %594 = vmatpush1.xpose.msra.mxu0 0.0
      %595 = vmatprep.subr.mxu0 0.0
      %596 = vmatpush1.xpose.msra.mxu0 0.0
      %597 = vmatprep.subr.mxu0 0.0
      %598 = vmatpush1.xpose.msra.mxu0 0.0
      %599 = vmatprep.subr.mxu0 0.0
      %600 = vmatpush1.xpose.msra.mxu0 0.0
      %601 = vmatprep.subr.mxu0 0.0
      %602 = vmatpush1.xpose.msra.mxu0 0.0
      %603 = vmatprep.subr.mxu0 0.0
      %604 = vmatpush1.xpose.msra.mxu0 0.0
      %605 = vmatprep.subr.mxu0 0.0
      %606 = vmatpush1.xpose.msra.mxu0 0.0
      %607 = vmatprep.subr.mxu0 0.0
      %608 = vmatpush1.xpose.msra.mxu0 0.0
      %609 = vmatprep.subr.mxu0 0.0
      %610 = vmatpush1.xpose.msra.mxu0 0.0
      %611 = vmatprep.subr.mxu0 0.0
      %612 = vmatpush1.xpose.msra.mxu0 0.0
      %613 = vmatprep.subr.mxu0 0.0
      %614 = vmatpush1.xpose.msra.mxu0 0.0
      %615 = vmatprep.subr.mxu0 0.0
      %616 = vmatpush1.xpose.msra.mxu0 0.0
      %617 = vmatprep.subr.mxu0 0.0
      %618 = vmatpush1.xpose.msra.mxu0 0.0
      %619 = vmatprep.subr.mxu0 0.0
      %620 = vmatpush1.xpose.msra.mxu0 %v587
      %621 = vmatprep.subr.mxu0 0.0
      %622 = vmatpush2.xpose.msra.mxu0 0.0
      %623 = vmatprep.subr.mxu0 0.0
      %624 = vmatpush2.xpose.msra.mxu0 0.0
      %625 = vmatprep.subr.mxu0 0.0
      %626 = vmatpush2.xpose.msra.mxu0 0.0
      %627 = vmatprep.subr.mxu0 0.0
      %628 = vmatpush2.xpose.msra.mxu0 0.0
      %629 = vmatprep.subr.mxu0 0.0
      %630 = vmatpush2.xpose.msra.mxu0 0.0
      %631 = vmatprep.subr.mxu0 0.0
      %632 = vmatpush2.xpose.msra.mxu0 0.0
      %633 = vmatprep.subr.mxu0 0.0
      %634 = vmatpush2.xpose.msra.mxu0 0.0
      %635 = vmatprep.subr.mxu0 0.0
      %636 = vmatpush2.xpose.msra.mxu0 0.0
      %637 = vmatprep.subr.mxu0 0.0
      %638 = vmatpush2.xpose.msra.mxu0 0.0
      %639 = vmatprep.subr.mxu0 0.0
      %640 = vmatpush2.xpose.msra.mxu0 0.0
      %641 = vmatprep.subr.mxu0 0.0
      %642 = vmatpush2.xpose.msra.mxu0 0.0
      %643 = vmatprep.subr.mxu0 0.0
      %644 = vmatpush2.xpose.msra.mxu0 0.0
      %645 = vmatprep.subr.mxu0 0.0
      %646 = vmatpush2.xpose.msra.mxu0 0.0
      %647 = vmatprep.subr.mxu0 0.0
      %648 = vmatpush2.xpose.msra.mxu0 0.0
      %649 = vmatprep.subr.mxu0 0.0
      %650 = vmatpush2.xpose.msra.mxu0 0.0
      %651 = vmatprep.subr.mxu0 0.0
      %652 = vmatpush2.xpose.msra.mxu0 0.0
      %653 = vmatprep.mubr.f32.mxu0 0.0
      %654 = vmatmul.mubr.f32.gmra.mxu0 %v584
      %v655 = vpop.f32.mrf.mxu0
      %v656 = vadd.f32 0.0, %v655
      %v657 = vpop.f32.mrf.mxu0
      %658 = vdwg.mxu0
      %v659 = vmul.f32 %v656, 0.35355338
      %v660 = vsel %vm581, %v659, -1e+30
      %v661 = vsel %vm582, %v660, -inf
      %662 = vmax.xlane.f32.xlu0 %v661
      %v663 = vpop.xlane.xlu0 %662
      %v664 = vsub.f32 %v660, %v663
      %v665 = vmul.f32 %v664, 1.442695
      %v666 = vpow.pop %v665
      %v667 = vsel %vm582, %v666, 0.0
      %668 = vadd.xlane.f32.xlu0 %v667
      %v669 = vpop.xlane.xlu0 %668
      %v670 = vrcp.pop %v669
      %v671 = vmul.f32 %v666, %v670
      %672 = vrot.lane.b32.xlu0 %v571, 96
      %v673 = vpop.permute.xlu0 %672
      %v676 = vsel %vm582, %v671, 0
      %678 = vmatprep.subr.mxu0 0.0
      %679 = vmatpush1.msra.mxu0 0.0
      %680 = vmatprep.subr.mxu0 0.0
      %681 = vmatpush1.msra.mxu0 0.0
      %682 = vmatprep.subr.mxu0 0.0
      %683 = vmatpush1.msra.mxu0 0.0
      %684 = vmatprep.subr.mxu0 0.0
      %685 = vmatpush1.msra.mxu0 0.0
      %686 = vmatprep.subr.mxu0 0.0
      %687 = vmatpush1.msra.mxu0 0.0
      %688 = vmatprep.subr.mxu0 0.0
      %689 = vmatpush1.msra.mxu0 0.0
      %690 = vmatprep.subr.mxu0 0.0
      %691 = vmatpush1.msra.mxu0 0.0
      %692 = vmatprep.subr.mxu0 0.0
      %693 = vmatpush1.msra.mxu0 0.0
      %694 = vmatprep.subr.mxu0 0.0
      %695 = vmatpush1.msra.mxu0 0.0
      %696 = vmatprep.subr.mxu0 0.0
      %697 = vmatpush1.msra.mxu0 0.0
      %698 = vmatprep.subr.mxu0 0.0
      %699 = vmatpush1.msra.mxu0 0.0
      %700 = vmatprep.subr.mxu0 0.0
      %701 = vmatpush1.msra.mxu0 0.0
      %702 = vmatprep.subr.mxu0 0.0
      %703 = vmatpush1.msra.mxu0 0.0
      %704 = vmatprep.subr.mxu0 0.0
      %705 = vmatpush1.msra.mxu0 0.0
      %706 = vmatprep.subr.mxu0 0.0
      %707 = vmatpush1.msra.mxu0 0.0
      %708 = vmatprep.subr.mxu0 0.0
      %709 = vmatpush1.msra.mxu0 %v673
      %710 = vmatprep.subr.mxu0 0.0
      %711 = vmatpush2.msra.mxu0 0.0
      %712 = vmatprep.subr.mxu0 0.0
      %713 = vmatpush2.msra.mxu0 0.0
      %714 = vmatprep.subr.mxu0 0.0
      %715 = vmatpush2.msra.mxu0 0.0
      %716 = vmatprep.subr.mxu0 0.0
      %717 = vmatpush2.msra.mxu0 0.0
      %718 = vmatprep.subr.mxu0 0.0
      %719 = vmatpush2.msra.mxu0 0.0
      %720 = vmatprep.subr.mxu0 0.0
      %721 = vmatpush2.msra.mxu0 0.0
      %722 = vmatprep.subr.mxu0 0.0
      %723 = vmatpush2.msra.mxu0 0.0
      %724 = vmatprep.subr.mxu0 0.0
      %725 = vmatpush2.msra.mxu0 0.0
      %726 = vmatprep.subr.mxu0 0.0
      %727 = vmatpush2.msra.mxu0 0.0
      %728 = vmatprep.subr.mxu0 0.0
      %729 = vmatpush2.msra.mxu0 0.0
      %730 = vmatprep.subr.mxu0 0.0
      %731 = vmatpush2.msra.mxu0 0.0
      %732 = vmatprep.subr.mxu0 0.0
      %733 = vmatpush2.msra.mxu0 0.0
      %734 = vmatprep.subr.mxu0 0.0
      %735 = vmatpush2.msra.mxu0 0.0
      %736 = vmatprep.subr.mxu0 0.0
      %737 = vmatpush2.msra.mxu0 0.0
      %738 = vmatprep.subr.mxu0 0.0
      %739 = vmatpush2.msra.mxu0 0.0
      %740 = vmatprep.subr.mxu0 0.0
      %741 = vmatpush2.msra.mxu0 0.0
      %742 = vmatprep.mubr.f32.mxu0 0.0
      %743 = vmatmul.mubr.f32.gmra.mxu0 %v676
      %v744 = vpop.f32.mrf.mxu0
      %v745 = vadd.f32 0.0, %v744
      %v746 = vpop.f32.mrf.mxu0
      %747 = vdwg.mxu0
      %748 = vst.msk [vmem:[#allocation2] sm:$0xff] %vm582, %v745
      %749 = vrot.lane.b32.xlu0 %v486, 120
      %v750 = vpop.permute.xlu0 %749
      %751 = vrot.lane.b32.xlu0 %v571, 120
      %v752 = vpop.permute.xlu0 %751
      %v753 = vsel %vm582, %v750, 0
      %v755 = vsel %vm582, %v752, 0
      %757 = vmatprep.subr.mxu0 0.0
      %758 = vmatpush1.xpose.msra.mxu0 0.0
      %759 = vmatprep.subr.mxu0 0.0
      %760 = vmatpush1.xpose.msra.mxu0 0.0
      %761 = vmatprep.subr.mxu0 0.0
      %762 = vmatpush1.xpose.msra.mxu0 0.0
      %763 = vmatprep.subr.mxu0 0.0
      %764 = vmatpush1.xpose.msra.mxu0 0.0
      %765 = vmatprep.subr.mxu0 0.0
      %766 = vmatpush1.xpose.msra.mxu0 0.0
      %767 = vmatprep.subr.mxu0 0.0
      %768 = vmatpush1.xpose.msra.mxu0 0.0
      %769 = vmatprep.subr.mxu0 0.0
      %770 = vmatpush1.xpose.msra.mxu0 0.0
      %771 = vmatprep.subr.mxu0 0.0
      %772 = vmatpush1.xpose.msra.mxu0 0.0
      %773 = vmatprep.subr.mxu0 0.0
      %774 = vmatpush1.xpose.msra.mxu0 0.0
      %775 = vmatprep.subr.mxu0 0.0
      %776 = vmatpush1.xpose.msra.mxu0 0.0
      %777 = vmatprep.subr.mxu0 0.0
      %778 = vmatpush1.xpose.msra.mxu0 0.0
      %779 = vmatprep.subr.mxu0 0.0
      %780 = vmatpush1.xpose.msra.mxu0 0.0
      %781 = vmatprep.subr.mxu0 0.0
      %782 = vmatpush1.xpose.msra.mxu0 0.0
      %783 = vmatprep.subr.mxu0 0.0
      %784 = vmatpush1.xpose.msra.mxu0 0.0
      %785 = vmatprep.subr.mxu0 0.0
      %786 = vmatpush1.xpose.msra.mxu0 0.0
      %787 = vmatprep.subr.mxu0 0.0
      %788 = vmatpush1.xpose.msra.mxu0 %v755
      %789 = vmatprep.subr.mxu0 0.0
      %790 = vmatpush2.xpose.msra.mxu0 0.0
      %791 = vmatprep.subr.mxu0 0.0
      %792 = vmatpush2.xpose.msra.mxu0 0.0
      %793 = vmatprep.subr.mxu0 0.0
      %794 = vmatpush2.xpose.msra.mxu0 0.0
      %795 = vmatprep.subr.mxu0 0.0
      %796 = vmatpush2.xpose.msra.mxu0 0.0
      %797 = vmatprep.subr.mxu0 0.0
      %798 = vmatpush2.xpose.msra.mxu0 0.0
      %799 = vmatprep.subr.mxu0 0.0
      %800 = vmatpush2.xpose.msra.mxu0 0.0
      %801 = vmatprep.subr.mxu0 0.0
      %802 = vmatpush2.xpose.msra.mxu0 0.0
      %803 = vmatprep.subr.mxu0 0.0
      %804 = vmatpush2.xpose.msra.mxu0 0.0
      %805 = vmatprep.subr.mxu0 0.0
      %806 = vmatpush2.xpose.msra.mxu0 0.0
      %807 = vmatprep.subr.mxu0 0.0
      %808 = vmatpush2.xpose.msra.mxu0 0.0
      %809 = vmatprep.subr.mxu0 0.0
      %810 = vmatpush2.xpose.msra.mxu0 0.0
      %811 = vmatprep.subr.mxu0 0.0
      %812 = vmatpush2.xpose.msra.mxu0 0.0
      %813 = vmatprep.subr.mxu0 0.0
      %814 = vmatpush2.xpose.msra.mxu0 0.0
      %815 = vmatprep.subr.mxu0 0.0
      %816 = vmatpush2.xpose.msra.mxu0 0.0
      %817 = vmatprep.subr.mxu0 0.0
      %818 = vmatpush2.xpose.msra.mxu0 0.0
      %819 = vmatprep.subr.mxu0 0.0
      %820 = vmatpush2.xpose.msra.mxu0 0.0
      %821 = vmatprep.mubr.f32.mxu0 0.0
      %822 = vmatmul.mubr.f32.gmra.mxu0 %v753
      %v823 = vpop.f32.mrf.mxu0
      %v824 = vadd.f32 0.0, %v823
      %v825 = vpop.f32.mrf.mxu0
      %826 = vdwg.mxu0
      %v827 = vmul.f32 %v824, 0.35355338
      %v828 = vsel %vm581, %v827, -1e+30
      %v829 = vsel %vm582, %v828, -inf
      %830 = vmax.xlane.f32.xlu0 %v829
      %v831 = vpop.xlane.xlu0 %830
      %v832 = vsub.f32 %v828, %v831
      %v833 = vmul.f32 %v832, 1.442695
      %v834 = vpow.pop %v833
      %v835 = vsel %vm582, %v834, 0.0
      %836 = vadd.xlane.f32.xlu0 %v835
      %v837 = vpop.xlane.xlu0 %836
      %v838 = vrcp.pop %v837
      %v839 = vmul.f32 %v834, %v838
      %840 = vrot.lane.b32.xlu0 %v571, 88
      %v841 = vpop.permute.xlu0 %840
      %v844 = vsel %vm582, %v839, 0
      %846 = vmatprep.subr.mxu0 0.0
      %847 = vmatpush1.msra.mxu0 0.0
      %848 = vmatprep.subr.mxu0 0.0
      %849 = vmatpush1.msra.mxu0 0.0
      %850 = vmatprep.subr.mxu0 0.0
      %851 = vmatpush1.msra.mxu0 0.0
      %852 = vmatprep.subr.mxu0 0.0
      %853 = vmatpush1.msra.mxu0 0.0
      %854 = vmatprep.subr.mxu0 0.0
      %855 = vmatpush1.msra.mxu0 0.0
      %856 = vmatprep.subr.mxu0 0.0
      %857 = vmatpush1.msra.mxu0 0.0
      %858 = vmatprep.subr.mxu0 0.0
      %859 = vmatpush1.msra.mxu0 0.0
      %860 = vmatprep.subr.mxu0 0.0
      %861 = vmatpush1.msra.mxu0 0.0
      %862 = vmatprep.subr.mxu0 0.0
      %863 = vmatpush1.msra.mxu0 0.0
      %864 = vmatprep.subr.mxu0 0.0
      %865 = vmatpush1.msra.mxu0 0.0
      %866 = vmatprep.subr.mxu0 0.0
      %867 = vmatpush1.msra.mxu0 0.0
      %868 = vmatprep.subr.mxu0 0.0
      %869 = vmatpush1.msra.mxu0 0.0
      %870 = vmatprep.subr.mxu0 0.0
      %871 = vmatpush1.msra.mxu0 0.0
      %872 = vmatprep.subr.mxu0 0.0
      %873 = vmatpush1.msra.mxu0 0.0
      %874 = vmatprep.subr.mxu0 0.0
      %875 = vmatpush1.msra.mxu0 0.0
      %876 = vmatprep.subr.mxu0 0.0
      %877 = vmatpush1.msra.mxu0 %v841
      %878 = vmatprep.subr.mxu0 0.0
      %879 = vmatpush2.msra.mxu0 0.0
      %880 = vmatprep.subr.mxu0 0.0
      %881 = vmatpush2.msra.mxu0 0.0
      %882 = vmatprep.subr.mxu0 0.0
      %883 = vmatpush2.msra.mxu0 0.0
      %884 = vmatprep.subr.mxu0 0.0
      %885 = vmatpush2.msra.mxu0 0.0
      %886 = vmatprep.subr.mxu0 0.0
      %887 = vmatpush2.msra.mxu0 0.0
      %888 = vmatprep.subr.mxu0 0.0
      %889 = vmatpush2.msra.mxu0 0.0
      %890 = vmatprep.subr.mxu0 0.0
      %891 = vmatpush2.msra.mxu0 0.0
      %892 = vmatprep.subr.mxu0 0.0
      %893 = vmatpush2.msra.mxu0 0.0
      %894 = vmatprep.subr.mxu0 0.0
      %895 = vmatpush2.msra.mxu0 0.0
      %896 = vmatprep.subr.mxu0 0.0
      %897 = vmatpush2.msra.mxu0 0.0
      %898 = vmatprep.subr.mxu0 0.0
      %899 = vmatpush2.msra.mxu0 0.0
      %900 = vmatprep.subr.mxu0 0.0
      %901 = vmatpush2.msra.mxu0 0.0
      %902 = vmatprep.subr.mxu0 0.0
      %903 = vmatpush2.msra.mxu0 0.0
      %904 = vmatprep.subr.mxu0 0.0
      %905 = vmatpush2.msra.mxu0 0.0
      %906 = vmatprep.subr.mxu0 0.0
      %907 = vmatpush2.msra.mxu0 0.0
      %908 = vmatprep.subr.mxu0 0.0
      %909 = vmatpush2.msra.mxu0 0.0
      %910 = vmatprep.mubr.f32.mxu0 0.0
      %911 = vmatmul.mubr.f32.gmra.mxu0 %v844
      %v912 = vpop.f32.mrf.mxu0
      %v913 = vadd.f32 0.0, %v912
      %v914 = vpop.f32.mrf.mxu0
      %915 = vdwg.mxu0
      %917 = vrot.lane.b32.xlu0 %v913, 8
      %v918 = vpop.permute.xlu0 %917
      %vm920 = vcmask 130112
      %921 = vst.msk [vmem:[#allocation2] sm:$0xff] %vm920, %v918
      %922 = vrot.lane.b32.xlu0 %v486, 112
      %v923 = vpop.permute.xlu0 %922
      %924 = vrot.lane.b32.xlu0 %v571, 112
      %v925 = vpop.permute.xlu0 %924
      %v926 = vsel %vm582, %v923, 0
      %v928 = vsel %vm582, %v925, 0
      %930 = vmatprep.subr.mxu0 0.0
      %931 = vmatpush1.xpose.msra.mxu0 0.0
      %932 = vmatprep.subr.mxu0 0.0
      %933 = vmatpush1.xpose.msra.mxu0 0.0
      %934 = vmatprep.subr.mxu0 0.0
      %935 = vmatpush1.xpose.msra.mxu0 0.0
      %936 = vmatprep.subr.mxu0 0.0
      %937 = vmatpush1.xpose.msra.mxu0 0.0
      %938 = vmatprep.subr.mxu0 0.0
      %939 = vmatpush1.xpose.msra.mxu0 0.0
      %940 = vmatprep.subr.mxu0 0.0
      %941 = vmatpush1.xpose.msra.mxu0 0.0
      %942 = vmatprep.subr.mxu0 0.0
      %943 = vmatpush1.xpose.msra.mxu0 0.0
      %944 = vmatprep.subr.mxu0 0.0
      %945 = vmatpush1.xpose.msra.mxu0 0.0
      %946 = vmatprep.subr.mxu0 0.0
      %947 = vmatpush1.xpose.msra.mxu0 0.0
      %948 = vmatprep.subr.mxu0 0.0
      %949 = vmatpush1.xpose.msra.mxu0 0.0
      %950 = vmatprep.subr.mxu0 0.0
      %951 = vmatpush1.xpose.msra.mxu0 0.0
      %952 = vmatprep.subr.mxu0 0.0
      %953 = vmatpush1.xpose.msra.mxu0 0.0
      %954 = vmatprep.subr.mxu0 0.0
      %955 = vmatpush1.xpose.msra.mxu0 0.0
      %956 = vmatprep.subr.mxu0 0.0
      %957 = vmatpush1.xpose.msra.mxu0 0.0
      %958 = vmatprep.subr.mxu0 0.0
      %959 = vmatpush1.xpose.msra.mxu0 0.0
      %960 = vmatprep.subr.mxu0 0.0
      %961 = vmatpush1.xpose.msra.mxu0 %v928
      %962 = vmatprep.subr.mxu0 0.0
      %963 = vmatpush2.xpose.msra.mxu0 0.0
      %964 = vmatprep.subr.mxu0 0.0
      %965 = vmatpush2.xpose.msra.mxu0 0.0
      %966 = vmatprep.subr.mxu0 0.0
      %967 = vmatpush2.xpose.msra.mxu0 0.0
      %968 = vmatprep.subr.mxu0 0.0
      %969 = vmatpush2.xpose.msra.mxu0 0.0
      %970 = vmatprep.subr.mxu0 0.0
      %971 = vmatpush2.xpose.msra.mxu0 0.0
      %972 = vmatprep.subr.mxu0 0.0
      %973 = vmatpush2.xpose.msra.mxu0 0.0
      %974 = vmatprep.subr.mxu0 0.0
      %975 = vmatpush2.xpose.msra.mxu0 0.0
      %976 = vmatprep.subr.mxu0 0.0
      %977 = vmatpush2.xpose.msra.mxu0 0.0
      %978 = vmatprep.subr.mxu0 0.0
      %979 = vmatpush2.xpose.msra.mxu0 0.0
      %980 = vmatprep.subr.mxu0 0.0
      %981 = vmatpush2.xpose.msra.mxu0 0.0
      %982 = vmatprep.subr.mxu0 0.0
      %983 = vmatpush2.xpose.msra.mxu0 0.0
      %984 = vmatprep.subr.mxu0 0.0
      %985 = vmatpush2.xpose.msra.mxu0 0.0
      %986 = vmatprep.subr.mxu0 0.0
      %987 = vmatpush2.xpose.msra.mxu0 0.0
      %988 = vmatprep.subr.mxu0 0.0
      %989 = vmatpush2.xpose.msra.mxu0 0.0
      %990 = vmatprep.subr.mxu0 0.0
      %991 = vmatpush2.xpose.msra.mxu0 0.0
      %992 = vmatprep.subr.mxu0 0.0
      %993 = vmatpush2.xpose.msra.mxu0 0.0
      %994 = vmatprep.mubr.f32.mxu0 0.0
      %995 = vmatmul.mubr.f32.gmra.mxu0 %v926
      %v996 = vpop.f32.mrf.mxu0
      %v997 = vadd.f32 0.0, %v996
      %v998 = vpop.f32.mrf.mxu0
      %999 = vdwg.mxu0
      %v1000 = vmul.f32 %v997, 0.35355338
      %v1001 = vsel %vm581, %v1000, -1e+30
      %v1002 = vsel %vm582, %v1001, -inf
      %1003 = vmax.xlane.f32.xlu0 %v1002
      %v1004 = vpop.xlane.xlu0 %1003
      %v1005 = vsub.f32 %v1001, %v1004
      %v1006 = vmul.f32 %v1005, 1.442695
      %v1007 = vpow.pop %v1006
      %v1008 = vsel %vm582, %v1007, 0.0
      %1009 = vadd.xlane.f32.xlu0 %v1008
      %v1010 = vpop.xlane.xlu0 %1009
      %v1011 = vrcp.pop %v1010
      %v1012 = vmul.f32 %v1007, %v1011
      %1013 = vrot.lane.b32.xlu0 %v571, 80
      %v1014 = vpop.permute.xlu0 %1013
      %v1017 = vsel %vm582, %v1012, 0
      %1019 = vmatprep.subr.mxu0 0.0
      %1020 = vmatpush1.msra.mxu0 0.0
      %1021 = vmatprep.subr.mxu0 0.0
      %1022 = vmatpush1.msra.mxu0 0.0
      %1023 = vmatprep.subr.mxu0 0.0
      %1024 = vmatpush1.msra.mxu0 0.0
      %1025 = vmatprep.subr.mxu0 0.0
      %1026 = vmatpush1.msra.mxu0 0.0
      %1027 = vmatprep.subr.mxu0 0.0
      %1028 = vmatpush1.msra.mxu0 0.0
      %1029 = vmatprep.subr.mxu0 0.0
      %1030 = vmatpush1.msra.mxu0 0.0
      %1031 = vmatprep.subr.mxu0 0.0
      %1032 = vmatpush1.msra.mxu0 0.0
      %1033 = vmatprep.subr.mxu0 0.0
      %1034 = vmatpush1.msra.mxu0 0.0
      %1035 = vmatprep.subr.mxu0 0.0
      %1036 = vmatpush1.msra.mxu0 0.0
      %1037 = vmatprep.subr.mxu0 0.0
      %1038 = vmatpush1.msra.mxu0 0.0
      %1039 = vmatprep.subr.mxu0 0.0
      %1040 = vmatpush1.msra.mxu0 0.0
      %1041 = vmatprep.subr.mxu0 0.0
      %1042 = vmatpush1.msra.mxu0 0.0
      %1043 = vmatprep.subr.mxu0 0.0
      %1044 = vmatpush1.msra.mxu0 0.0
      %1045 = vmatprep.subr.mxu0 0.0
      %1046 = vmatpush1.msra.mxu0 0.0
      %1047 = vmatprep.subr.mxu0 0.0
      %1048 = vmatpush1.msra.mxu0 0.0
      %1049 = vmatprep.subr.mxu0 0.0
      %1050 = vmatpush1.msra.mxu0 %v1014
      %1051 = vmatprep.subr.mxu0 0.0
      %1052 = vmatpush2.msra.mxu0 0.0
      %1053 = vmatprep.subr.mxu0 0.0
      %1054 = vmatpush2.msra.mxu0 0.0
      %1055 = vmatprep.subr.mxu0 0.0
      %1056 = vmatpush2.msra.mxu0 0.0
      %1057 = vmatprep.subr.mxu0 0.0
      %1058 = vmatpush2.msra.mxu0 0.0
      %1059 = vmatprep.subr.mxu0 0.0
      %1060 = vmatpush2.msra.mxu0 0.0
      %1061 = vmatprep.subr.mxu0 0.0
      %1062 = vmatpush2.msra.mxu0 0.0
      %1063 = vmatprep.subr.mxu0 0.0
      %1064 = vmatpush2.msra.mxu0 0.0
      %1065 = vmatprep.subr.mxu0 0.0
      %1066 = vmatpush2.msra.mxu0 0.0
      %1067 = vmatprep.subr.mxu0 0.0
      %1068 = vmatpush2.msra.mxu0 0.0
      %1069 = vmatprep.subr.mxu0 0.0
      %1070 = vmatpush2.msra.mxu0 0.0
      %1071 = vmatprep.subr.mxu0 0.0
      %1072 = vmatpush2.msra.mxu0 0.0
      %1073 = vmatprep.subr.mxu0 0.0
      %1074 = vmatpush2.msra.mxu0 0.0
      %1075 = vmatprep.subr.mxu0 0.0
      %1076 = vmatpush2.msra.mxu0 0.0
      %1077 = vmatprep.subr.mxu0 0.0
      %1078 = vmatpush2.msra.mxu0 0.0
      %1079 = vmatprep.subr.mxu0 0.0
      %1080 = vmatpush2.msra.mxu0 0.0
      %1081 = vmatprep.subr.mxu0 0.0
      %1082 = vmatpush2.msra.mxu0 0.0
      %1083 = vmatprep.mubr.f32.mxu0 0.0
      %1084 = vmatmul.mubr.f32.gmra.mxu0 %v1017
      %v1085 = vpop.f32.mrf.mxu0
      %v1086 = vadd.f32 0.0, %v1085
      %v1087 = vpop.f32.mrf.mxu0
      %1088 = vdwg.mxu0
      %1090 = vrot.lane.b32.xlu0 %v1086, 16
      %v1091 = vpop.permute.xlu0 %1090
      %vm1093 = vcmask 195712
      %1094 = vst.msk [vmem:[#allocation2] sm:$0xff] %vm1093, %v1091
      %1095 = vrot.lane.b32.xlu0 %v486, 104
      %v1096 = vpop.permute.xlu0 %1095
      %1097 = vrot.lane.b32.xlu0 %v571, 104
      %v1098 = vpop.permute.xlu0 %1097
      %v1099 = vsel %vm582, %v1096, 0
      %v1101 = vsel %vm582, %v1098, 0
      %1103 = vmatprep.subr.mxu0 0.0
      %1104 = vmatpush1.xpose.msra.mxu0 0.0
      %1105 = vmatprep.subr.mxu0 0.0
      %1106 = vmatpush1.xpose.msra.mxu0 0.0
      %1107 = vmatprep.subr.mxu0 0.0
      %1108 = vmatpush1.xpose.msra.mxu0 0.0
      %1109 = vmatprep.subr.mxu0 0.0
      %1110 = vmatpush1.xpose.msra.mxu0 0.0
      %1111 = vmatprep.subr.mxu0 0.0
      %1112 = vmatpush1.xpose.msra.mxu0 0.0
      %1113 = vmatprep.subr.mxu0 0.0
      %1114 = vmatpush1.xpose.msra.mxu0 0.0
      %1115 = vmatprep.subr.mxu0 0.0
      %1116 = vmatpush1.xpose.msra.mxu0 0.0
      %1117 = vmatprep.subr.mxu0 0.0
      %1118 = vmatpush1.xpose.msra.mxu0 0.0
      %1119 = vmatprep.subr.mxu0 0.0
      %1120 = vmatpush1.xpose.msra.mxu0 0.0
      %1121 = vmatprep.subr.mxu0 0.0
      %1122 = vmatpush1.xpose.msra.mxu0 0.0
      %1123 = vmatprep.subr.mxu0 0.0
      %1124 = vmatpush1.xpose.msra.mxu0 0.0
      %1125 = vmatprep.subr.mxu0 0.0
      %1126 = vmatpush1.xpose.msra.mxu0 0.0
      %1127 = vmatprep.subr.mxu0 0.0
      %1128 = vmatpush1.xpose.msra.mxu0 0.0
      %1129 = vmatprep.subr.mxu0 0.0
      %1130 = vmatpush1.xpose.msra.mxu0 0.0
      %1131 = vmatprep.subr.mxu0 0.0
      %1132 = vmatpush1.xpose.msra.mxu0 0.0
      %1133 = vmatprep.subr.mxu0 0.0
      %1134 = vmatpush1.xpose.msra.mxu0 %v1101
      %1135 = vmatprep.subr.mxu0 0.0
      %1136 = vmatpush2.xpose.msra.mxu0 0.0
      %1137 = vmatprep.subr.mxu0 0.0
      %1138 = vmatpush2.xpose.msra.mxu0 0.0
      %1139 = vmatprep.subr.mxu0 0.0
      %1140 = vmatpush2.xpose.msra.mxu0 0.0
      %1141 = vmatprep.subr.mxu0 0.0
      %1142 = vmatpush2.xpose.msra.mxu0 0.0
      %1143 = vmatprep.subr.mxu0 0.0
      %1144 = vmatpush2.xpose.msra.mxu0 0.0
      %1145 = vmatprep.subr.mxu0 0.0
      %1146 = vmatpush2.xpose.msra.mxu0 0.0
      %1147 = vmatprep.subr.mxu0 0.0
      %1148 = vmatpush2.xpose.msra.mxu0 0.0
      %1149 = vmatprep.subr.mxu0 0.0
      %1150 = vmatpush2.xpose.msra.mxu0 0.0
      %1151 = vmatprep.subr.mxu0 0.0
      %1152 = vmatpush2.xpose.msra.mxu0 0.0
      %1153 = vmatprep.subr.mxu0 0.0
      %1154 = vmatpush2.xpose.msra.mxu0 0.0
      %1155 = vmatprep.subr.mxu0 0.0
      %1156 = vmatpush2.xpose.msra.mxu0 0.0
      %1157 = vmatprep.subr.mxu0 0.0
      %1158 = vmatpush2.xpose.msra.mxu0 0.0
      %1159 = vmatprep.subr.mxu0 0.0
      %1160 = vmatpush2.xpose.msra.mxu0 0.0
      %1161 = vmatprep.subr.mxu0 0.0
      %1162 = vmatpush2.xpose.msra.mxu0 0.0
      %1163 = vmatprep.subr.mxu0 0.0
      %1164 = vmatpush2.xpose.msra.mxu0 0.0
      %1165 = vmatprep.subr.mxu0 0.0
      %1166 = vmatpush2.xpose.msra.mxu0 0.0
      %1167 = vmatprep.mubr.f32.mxu0 0.0
      %1168 = vmatmul.mubr.f32.gmra.mxu0 %v1099
      %v1169 = vpop.f32.mrf.mxu0
      %v1170 = vadd.f32 0.0, %v1169
      %v1171 = vpop.f32.mrf.mxu0
      %1172 = vdwg.mxu0
      %v1173 = vmul.f32 %v1170, 0.35355338
      %v1174 = vsel %vm581, %v1173, -1e+30
      %v1175 = vsel %vm582, %v1174, -inf
      %1176 = vmax.xlane.f32.xlu0 %v1175
      %v1177 = vpop.xlane.xlu0 %1176
      %v1178 = vsub.f32 %v1174, %v1177
      %v1179 = vmul.f32 %v1178, 1.442695
      %v1180 = vpow.pop %v1179
      %v1181 = vsel %vm582, %v1180, 0.0
      %1182 = vadd.xlane.f32.xlu0 %v1181
      %v1183 = vpop.xlane.xlu0 %1182
      %v1184 = vrcp.pop %v1183
      %v1185 = vmul.f32 %v1180, %v1184
      %1186 = vrot.lane.b32.xlu0 %v571, 72
      %v1187 = vpop.permute.xlu0 %1186
      %v1190 = vsel %vm582, %v1185, 0
      %1192 = vmatprep.subr.mxu0 0.0
      %1193 = vmatpush1.msra.mxu0 0.0
      %1194 = vmatprep.subr.mxu0 0.0
      %1195 = vmatpush1.msra.mxu0 0.0
      %1196 = vmatprep.subr.mxu0 0.0
      %1197 = vmatpush1.msra.mxu0 0.0
      %1198 = vmatprep.subr.mxu0 0.0
      %1199 = vmatpush1.msra.mxu0 0.0
      %1200 = vmatprep.subr.mxu0 0.0
      %1201 = vmatpush1.msra.mxu0 0.0
      %1202 = vmatprep.subr.mxu0 0.0
      %1203 = vmatpush1.msra.mxu0 0.0
      %1204 = vmatprep.subr.mxu0 0.0
      %1205 = vmatpush1.msra.mxu0 0.0
      %1206 = vmatprep.subr.mxu0 0.0
      %1207 = vmatpush1.msra.mxu0 0.0
      %1208 = vmatprep.subr.mxu0 0.0
      %1209 = vmatpush1.msra.mxu0 0.0
      %1210 = vmatprep.subr.mxu0 0.0
      %1211 = vmatpush1.msra.mxu0 0.0
      %1212 = vmatprep.subr.mxu0 0.0
      %1213 = vmatpush1.msra.mxu0 0.0
      %1214 = vmatprep.subr.mxu0 0.0
      %1215 = vmatpush1.msra.mxu0 0.0
      %1216 = vmatprep.subr.mxu0 0.0
      %1217 = vmatpush1.msra.mxu0 0.0
      %1218 = vmatprep.subr.mxu0 0.0
      %1219 = vmatpush1.msra.mxu0 0.0
      %1220 = vmatprep.subr.mxu0 0.0
      %1221 = vmatpush1.msra.mxu0 0.0
      %1222 = vmatprep.subr.mxu0 0.0
      %1223 = vmatpush1.msra.mxu0 %v1187
      %1224 = vmatprep.subr.mxu0 0.0
      %1225 = vmatpush2.msra.mxu0 0.0
      %1226 = vmatprep.subr.mxu0 0.0
      %1227 = vmatpush2.msra.mxu0 0.0
      %1228 = vmatprep.subr.mxu0 0.0
      %1229 = vmatpush2.msra.mxu0 0.0
      %1230 = vmatprep.subr.mxu0 0.0
      %1231 = vmatpush2.msra.mxu0 0.0
      %1232 = vmatprep.subr.mxu0 0.0
      %1233 = vmatpush2.msra.mxu0 0.0
      %1234 = vmatprep.subr.mxu0 0.0
      %1235 = vmatpush2.msra.mxu0 0.0
      %1236 = vmatprep.subr.mxu0 0.0
      %1237 = vmatpush2.msra.mxu0 0.0
      %1238 = vmatprep.subr.mxu0 0.0
      %1239 = vmatpush2.msra.mxu0 0.0
      %1240 = vmatprep.subr.mxu0 0.0
      %1241 = vmatpush2.msra.mxu0 0.0
      %1242 = vmatprep.subr.mxu0 0.0
      %1243 = vmatpush2.msra.mxu0 0.0
      %1244 = vmatprep.subr.mxu0 0.0
      %1245 = vmatpush2.msra.mxu0 0.0
      %1246 = vmatprep.subr.mxu0 0.0
      %1247 = vmatpush2.msra.mxu0 0.0
      %1248 = vmatprep.subr.mxu0 0.0
      %1249 = vmatpush2.msra.mxu0 0.0
      %1250 = vmatprep.subr.mxu0 0.0
      %1251 = vmatpush2.msra.mxu0 0.0
      %1252 = vmatprep.subr.mxu0 0.0
      %1253 = vmatpush2.msra.mxu0 0.0
      %1254 = vmatprep.subr.mxu0 0.0
      %1255 = vmatpush2.msra.mxu0 0.0
      %1256 = vmatprep.mubr.f32.mxu0 0.0
      %1257 = vmatmul.mubr.f32.gmra.mxu0 %v1190
      %v1258 = vpop.f32.mrf.mxu0
      %v1259 = vadd.f32 0.0, %v1258
      %v1260 = vpop.f32.mrf.mxu0
      %1261 = vdwg.mxu0
      %1263 = vrot.lane.b32.xlu0 %v1259, 24
      %v1264 = vpop.permute.xlu0 %1263
      %vm1266 = vcmask 261312
      %1267 = vst.msk [vmem:[#allocation2] sm:$0xff] %vm1266, %v1264
      %v1268 = vld [vmem:[#allocation2] sm:$0xff]
      %v1269 = vld [vmem:[%s6] sm:$0xff]
      %v1270 = vld [vmem:[%s6 + $0x8] sm:$0xff]
      %v1271 = vld [vmem:[%s6 + $0x10] sm:$0xff]
      %v1272 = vld [vmem:[%s6 + $0x18] sm:$0xff]
      %v1274 = vsel %vm415, %v1268, 0
      %1276 = vmatprep.subr.mxu0 0.0
      %1277 = vmatpush1.msra.mxu0 0.0
      %1278 = vmatprep.subr.mxu0 0.0
      %1279 = vmatpush1.msra.mxu0 0.0
      %1280 = vmatprep.subr.mxu0 0.0
      %1281 = vmatpush1.msra.mxu0 0.0
      %1282 = vmatprep.subr.mxu0 0.0
      %1283 = vmatpush1.msra.mxu0 0.0
      %1284 = vmatprep.subr.mxu0 0.0
      %1285 = vmatpush1.msra.mxu0 0.0
      %1286 = vmatprep.subr.mxu0 0.0
      %1287 = vmatpush1.msra.mxu0 0.0
      %1288 = vmatprep.subr.mxu0 0.0
      %1289 = vmatpush1.msra.mxu0 0.0
      %1290 = vmatprep.subr.mxu0 0.0
      %1291 = vmatpush1.msra.mxu0 0.0
      %1292 = vmatprep.subr.mxu0 0.0
      %1293 = vmatpush1.msra.mxu0 0.0
      %1294 = vmatprep.subr.mxu0 0.0
      %1295 = vmatpush1.msra.mxu0 0.0
      %1296 = vmatprep.subr.mxu0 0.0
      %1297 = vmatpush1.msra.mxu0 0.0
      %1298 = vmatprep.subr.mxu0 0.0
      %1299 = vmatpush1.msra.mxu0 0.0
      %1300 = vmatprep.subr.mxu0 0.0
      %1301 = vmatpush1.msra.mxu0 %v1272
      %1302 = vmatprep.subr.mxu0 0.0
      %1303 = vmatpush1.msra.mxu0 %v1271
      %1304 = vmatprep.subr.mxu0 0.0
      %1305 = vmatpush1.msra.mxu0 %v1270
      %1306 = vmatprep.subr.mxu0 0.0
      %1307 = vmatpush1.msra.mxu0 %v1269
      %1308 = vmatprep.subr.mxu0 0.0
      %1309 = vmatpush2.msra.mxu0 0.0
      %1310 = vmatprep.subr.mxu0 0.0
      %1311 = vmatpush2.msra.mxu0 0.0
      %1312 = vmatprep.subr.mxu0 0.0
      %1313 = vmatpush2.msra.mxu0 0.0
      %1314 = vmatprep.subr.mxu0 0.0
      %1315 = vmatpush2.msra.mxu0 0.0
      %1316 = vmatprep.subr.mxu0 0.0
      %1317 = vmatpush2.msra.mxu0 0.0
      %1318 = vmatprep.subr.mxu0 0.0
      %1319 = vmatpush2.msra.mxu0 0.0
      %1320 = vmatprep.subr.mxu0 0.0
      %1321 = vmatpush2.msra.mxu0 0.0
      %1322 = vmatprep.subr.mxu0 0.0
      %1323 = vmatpush2.msra.mxu0 0.0
      %1324 = vmatprep.subr.mxu0 0.0
      %1325 = vmatpush2.msra.mxu0 0.0
      %1326 = vmatprep.subr.mxu0 0.0
      %1327 = vmatpush2.msra.mxu0 0.0
      %1328 = vmatprep.subr.mxu0 0.0
      %1329 = vmatpush2.msra.mxu0 0.0
      %1330 = vmatprep.subr.mxu0 0.0
      %1331 = vmatpush2.msra.mxu0 0.0
      %1332 = vmatprep.subr.mxu0 0.0
      %1333 = vmatpush2.msra.mxu0 0.0
      %1334 = vmatprep.subr.mxu0 0.0
      %1335 = vmatpush2.msra.mxu0 0.0
      %1336 = vmatprep.subr.mxu0 0.0
      %1337 = vmatpush2.msra.mxu0 0.0
      %1338 = vmatprep.subr.mxu0 0.0
      %1339 = vmatpush2.msra.mxu0 0.0
      %1340 = vmatprep.mubr.f32.mxu0 0.0
      %1341 = vmatmul.mubr.f32.gmra.mxu0 %v1274
      %v1342 = vpop.f32.mrf.mxu0
      %v1343 = vadd.f32 0.0, %v1342
      %v1344 = vpop.f32.mrf.mxu0
      %1345 = vdwg.mxu0
      %v1346 = vadd.f32 %v403, %v1343
      %v1347 = vld [vmem:[%s7] sm:$0x1]
      %v1349 = vlaneseq
      %v1350 = vshrl.u32 %v1349, 7
      %v1351 = vsub.s32 0, %v1350
      %v1352 = vrot.slane %v1347, %v1351
      %v1354 = vadd.f32 %v1346, %v1352
      %v1355 = vsel %vm415, %v1354, 0.0
      %1356 = vadd.xlane.f32.xlu0 %v1355
      %v1357 = vpop.xlane.xlu0 %1356
      %v1358 = vrcp.pop 32.0
      %v1359 = vmul.f32 %v1357, %v1358
      %v1360 = vsub.f32 %v1354, %v1359
      %v1361 = vmul.f32 %v1360, %v1360
      %v1362 = vsel %vm415, %v1361, 0.0
      %1363 = vadd.xlane.f32.xlu0 %v1362
      %v1364 = vpop.xlane.xlu0 %1363
      %v1365 = vmul.f32 %v1364, %v1358
      %v1366 = vadd.f32 %v1365, 1e-05
      %v1367 = vrsqrt.pop %v1366
      %v1368 = vmul.f32 %v1360, %v1367
      %v1369 = vld [vmem:[%s8] sm:$0x1]
      %v1371 = vlaneseq
      %v1372 = vshrl.u32 %v1371, 7
      %v1373 = vsub.s32 0, %v1372
      %v1374 = vrot.slane %v1369, %v1373
      %v1376 = vmul.f32 %v1368, %v1374
      %v1377 = vld [vmem:[%s9] sm:$0x1]
      %v1379 = vlaneseq
      %v1380 = vshrl.u32 %v1379, 7
      %v1381 = vsub.s32 0, %v1380
      %v1382 = vrot.slane %v1377, %v1381
      %v1384 = vadd.f32 %v1376, %v1382
      %1385 = vst.msk [vmem:[%s402] sm:$0xff] %vm415, %v1384
      %p1386 = scmp.lt.s32.totalorder %s25, 1
      %s1387 = scalar_select %p1386, %s25, 1
      %p1388 = scmp.lt.s32.totalorder %s26, 0
      %s1389 = scalar_select %p1388, %s26, 0
      %s1390 = sadd.s32 %s1389, %s1387
      %s1391 = smul.addr %s1390, 8
      %s1392 = scalar_lea.vmem %s10, %s1391
      // Predicated region
      $region61: #{decoder_forward.10} parent=59 // pred_check
        %p1393 = pneg %p275
      $region62: #{decoder_forward.10} parent=59 // pred_check_branch
        %1395 = sbr.rel (%p1393) target = $region64
      $region63: #{decoder_forward.10} parent=59 // pred_region
        _
      $region64: #{decoder_forward.10} parent=59 // pred_fallthru
        _
    $region60: #{decoder_forward.10} parent=5 // pred_fallthru
      _
    %p1396 = scmp.le.s32.totalorder 2, %s16
    // Predicated region
    $region65: #{decoder_forward.10} parent=5 // pred_check
      %p1397 = pneg %p1396
    $region66: #{decoder_forward.10} parent=5 // pred_check_branch
      %1399 = sbr.rel (%p1397) target = $region68
    $region67: #{decoder_forward.10} parent=5 // pred_region
      %s1400 = ssub.s32 %s16, 2
      // Predicated region
      $region69: #{decoder_forward.10} parent=67 // pred_check
        %p1401 = pneg %p281
      $region70: #{decoder_forward.10} parent=67 // pred_check_branch
        %1403 = sbr.rel (%p1401) target = $region72
      $region71: #{decoder_forward.10} parent=67 // pred_region
        %p1404 = scmp.lt.s32.totalorder %s27, 1
        %s1405 = scalar_select %p1404, %s27, 1
        %p1406 = scmp.lt.s32.totalorder %s28, 0
        %s1407 = scalar_select %p1406, %s28, 0
        %s1408 = sadd.s32 %s1407, %s1405
        %s1409 = smul.addr %s1408, 8
        %s1410 = scalar_lea.vmem %s10, %s1409
      $region72: #{decoder_forward.10} parent=67 // pred_fallthru
        _
    $region68: #{decoder_forward.10} parent=5 // pred_fallthru
      _
  $region6: #{decoder_forward.10} parent=0 // loop_footer
    %s20 = sadd.s32 1, %s16
  $region7: #{decoder_forward.10} parent=0 // loop_footer_branch
    %15 = sbr.rel target = $region3
  $region8: #{decoder_forward.10} parent=0 // loop_exit
    _

// kernel: decoder_forward.13
$region0: #{decoder_forward.13}
  #allocation0 [shape = 'u32[]', space=smem, size = 0x4, offset = 0x4, fixed_abs, tag = 'smem constant byte address 0x4 - core index']
  #allocation1 [shape = 'u32[144,128]{1,0:T(1,128)}', space=vmem, size = 0x12000, scoped, tag = 'internal scratch']
  %s0 = inlined_call_operand.vmem [shape: f32[16,32], index: 0, kind: input, shape index: {}]
  %s1 = inlined_call_operand.vmem [shape: f32[1,32], index: 1, kind: input, shape index: {}]
  %s2 = inlined_call_operand.vmem [shape: f32[1,32], index: 2, kind: input, shape index: {}]
  %s3 = inlined_call_operand.hbm [shape: f32[16,32], index: 3, kind: output, shape index: {}]
  %s4 = sld [smem:[#allocation0]]
  $region22: #{decoder_forward.13} parent=0
    _
  %s6 = ssub.s32 1, %s4
  %s7 = scalar_select 0, %s6, %s4
  $region1: #{decoder_forward.13} parent=0
    #allocation2 [shape = 'u8[8192]{0}', space=vmem, size = 0x2000, scoped, tag = 'output window, operand 0, single buffered']
    #allocation3 [shape = 's32[1]{0}', space=sflag, size = 0x4, scoped, tag = 'scoped memory for decoder_forward.13']
    %8 = vsyncpa [#allocation3], 0
    // Predicated region
    $region2: #{decoder_forward.13} parent=1 // pred_check
      _
    $region3: #{decoder_forward.13} parent=1 // pred_check_branch
      %10 = sbr.rel (0) target = $region5
    $region4: #{decoder_forward.13} parent=1 // pred_region
      _
    $region5: #{decoder_forward.13} parent=1 // pred_fallthru
      _
    // Predicated region
    $region6: #{decoder_forward.13} parent=1 // pred_check
      _
    $region7: #{decoder_forward.13} parent=1 // pred_check_branch
      %12 = sbr.rel (0) target = $region9
    $region8: #{decoder_forward.13} parent=1 // pred_region
      _
    $region9: #{decoder_forward.13} parent=1 // pred_fallthru
      _
    // Predicated region
    $region10: #{decoder_forward.13} parent=1 // pred_check
      _
    $region11: #{decoder_forward.13} parent=1 // pred_check_branch
      %14 = sbr.rel (0) target = $region13
    $region12: #{decoder_forward.13} parent=1 // pred_region
      _
    $region13: #{decoder_forward.13} parent=1 // pred_fallthru
      _
    %v15 = vld [vmem:[%s0] sm:$0xff]
    %v16 = vld [vmem:[%s0 + $0x8] sm:$0xff]
    %vm17 = vcmask 261120
    %v18 = vsel %vm17, %v15, 0.0
    %19 = vadd.xlane.f32.xlu0 %v18
    %v20 = vpop.xlane.xlu0 %19
    %v21 = vsel %vm17, %v16, 0.0
    %22 = vadd.xlane.f32.xlu0 %v21
    %v23 = vpop.xlane.xlu0 %22
    %v24 = vrcp.pop 32.0
    %v25 = vmul.f32 %v20, %v24
    %v26 = vmul.f32 %v23, %v24
    %v27 = vsub.f32 %v15, %v25
    %v28 = vsub.f32 %v16, %v26
    %v29 = vmul.f32 %v27, %v27
    %v30 = vmul.f32 %v28, %v28
    %v31 = vsel %vm17, %v29, 0.0
    %32 = vadd.xlane.f32.xlu0 %v31
    %v33 = vpop.xlane.xlu0 %32
    %v34 = vsel %vm17, %v30, 0.0
    %35 = vadd.xlane.f32.xlu0 %v34
    %v36 = vpop.xlane.xlu0 %35
    %v37 = vmul.f32 %v33, %v24
    %v38 = vmul.f32 %v36, %v24
    %v39 = vadd.f32 %v37, 1e-05
    %v40 = vadd.f32 %v38, 1e-05
    %v41 = vrsqrt.pop %v39
    %v42 = vrsqrt.pop %v40
    %v43 = vmul.f32 %v27, %v41
    %v44 = vmul.f32 %v28, %v42
    %v45 = vld [vmem:[%s1] sm:$0x1]
    %v47 = vlaneseq
    %v48 = vshrl.u32 %v47, 7
    %v49 = vsub.s32 0, %v48
    %v50 = vrot.slane %v45, %v49
    %v52 = vmul.f32 %v43, %v50
    %v53 = vmul.f32 %v44, %v50
    %v54 = vld [vmem:[%s2] sm:$0x1]
    %v56 = vlaneseq
    %v57 = vshrl.u32 %v56, 7
    %v58 = vsub.s32 0, %v57
    %v59 = vrot.slane %v54, %v58
    %v61 = vadd.f32 %v52, %v59
    %v62 = vadd.f32 %v53, %v59
    %63 = vst.msk [vmem:[#allocation2] sm:$0xff] %vm17, %v61
    %64 = vst.msk [vmem:[#allocation2 + $0x8] sm:$0xff] %vm17, %v62
    // Predicated region
    $region14: #{decoder_forward.13} parent=1 // pred_check
      _
    $region15: #{decoder_forward.13} parent=1 // pred_check_branch
      %66 = sbr.rel (0) target = $region17
    $region16: #{decoder_forward.13} parent=1 // pred_region
      %s68 = ssub.s32 256, 256
      %69 = vsyncadd [#allocation3], %s68
      %s70 = sshll.u32 [#allocation2], 4
      %s71 = int_to_ptr.vmem [resolvable:$true] %s70
      %76 = dma.vmem_to_hbm [thread:$0]  %s71, 256, %s3, [#allocation3], 128, 128, 8
    $region17: #{decoder_forward.13} parent=1 // pred_fallthru
      _
    // Predicated region
    $region18: #{decoder_forward.13} parent=1 // pred_check
      _
    $region19: #{decoder_forward.13} parent=1 // pred_check_branch
      %78 = sbr.rel (0) target = $region21
    $region20: #{decoder_forward.13} parent=1 // pred_region
      %79 = dma.done [#allocation3], 256
    $region21: #{decoder_forward.13} parent=1 // pred_fallthru
      _
    %80 = vsyncpa [#allocation3], 1

</llo_original>
